<compile_context>
chip_gen: v7x
topology: tpu7x:2x2x1
jax: 0.10.0
libtpu: 0.0.40
codegen_flags: <defaults>
</compile_context>

<pallas_src>
import functools

import jax
import jax.numpy as jnp
from jax.experimental import pallas as pl
from jax.experimental.pallas import tpu as pltpu

# ----------------------------- config (args) ---------------------------------
LATENT_DIM = 4      # args.latent_dim
FOURIER_RES = 4     # args.fourier_res (num_frequencies)
NET_W = 32          # args.net_w
NET_D = 3           # args.net_d  (number of hidden Linear+ReLU layers)
OUT_DIM = 7         # output_dimensions
LF = LATENT_DIM * FOURIER_RES                      # 16 sin feats (+16 cos)
EMB_DIM = LATENT_DIM + 2 * LF                      # 36: include_input + sin/cos

TM = 2048           # max row tile (rows live on the lane axis); sweep 2048..4096
assert TM % 128 == 0

PARAM_COLS = 128    # one lane-group-wide parameter slab


def _rup8(r):
    return (r + 7) // 8 * 8


def _pick_tile(n, tm_max):
    """Tile (multiple of 128, <= tm_max) such that the grid has >=2 steps
    whenever n > 128, so both v7x TensorCores get work."""
    half = (n + 1) // 2
    half = ((half + 127) // 128) * 128
    return max(128, min(tm_max, half))


# --------------------------- parameter packing --------------------------------
def pack_params(weights, biases):
    """Pack all weights/biases (+ scale-baked Fourier matrix) into one slab.

    Call ONCE at model init (hoisted out of the per-forward path).

    weights[i]: (in_features, out_features) f32   (y = x @ W + b convention)
    biases[i] : (1, out_features) or (out_features,) f32
    Returns (params, offsets); offsets are static Python ints.

    Slab layout (rows x 128 lanes, f32):
      [off_e  : off_e+LF   , 0:L    ]  E^T, Fourier scales baked in
      [off_w1 : off_w1+W   , 0:36   ]  W1' (columns ordered sin|cos|x), col 36 = b1
      [r      : r+W        , 0:W    ]  hidden W^T, col W = bias        (per layer)
      [off_wf : off_wf+OUT , 0:W    ]  final W^T,  col W = bias
    """
    n_layers = len(weights)
    assert weights[0].shape == (EMB_DIM, NET_W)

    off_e = 0
    off_w1 = _rup8(off_e + LF)
    row = _rup8(off_w1 + NET_W)
    hidden_offs = []
    for _ in range(n_layers - 2):
        hidden_offs.append(row)
        row = _rup8(row + NET_W)
    off_wf = row
    total_rows = _rup8(off_wf + OUT_DIM)

    params = jnp.zeros((total_rows, PARAM_COLS), jnp.float32)

    # Fourier matrix E^T with scales baked in:  xb_t = E^T @ x_t,
    # xb_t[c*F + f, n] = scales[f] * x[n, c]  (channel-major, freq-minor,
    # exactly matching (x[..., None] * scales).reshape(..., L*F)).
    scales = (2.0 ** jnp.linspace(0.0, FOURIER_RES - 1, FOURIER_RES)
              ).astype(jnp.float32)
    e_t = (jnp.repeat(jnp.eye(LATENT_DIM, dtype=jnp.float32), FOURIER_RES, axis=0)
           * jnp.tile(scales, (LATENT_DIM,))[:, None])               # (LF, L)
    params = params.at[off_e:off_e + LF, 0:LATENT_DIM].set(e_t)

    # First Linear, fused into ONE (NET_W, 36) block; column order matches the
    # in-kernel emb = [sin | cos | x].  Original w1 rows: 0:L = x, L:L+LF = sin,
    # L+LF:36 = cos.
    w1 = weights[0].astype(jnp.float32)
    w1_perm = jnp.concatenate([w1[LATENT_DIM:LATENT_DIM + LF],       # sin part
                               w1[LATENT_DIM + LF:EMB_DIM],          # cos part
                               w1[0:LATENT_DIM]], axis=0)            # x part
    params = params.at[off_w1:off_w1 + NET_W, 0:EMB_DIM].set(w1_perm.T)
    params = params.at[off_w1:off_w1 + NET_W, EMB_DIM].set(
        jnp.reshape(biases[0], (-1,)).astype(jnp.float32))

    # Remaining hidden layers.
    for k, r in enumerate(hidden_offs):
        w = weights[1 + k].astype(jnp.float32)
        b = jnp.reshape(biases[1 + k], (-1,)).astype(jnp.float32)
        params = params.at[r:r + NET_W, 0:NET_W].set(w.T)
        params = params.at[r:r + NET_W, NET_W].set(b)

    # Final layer.
    params = params.at[off_wf:off_wf + OUT_DIM, 0:NET_W].set(
        weights[-1].astype(jnp.float32).T)
    params = params.at[off_wf:off_wf + OUT_DIM, NET_W].set(
        jnp.reshape(biases[-1], (-1,)).astype(jnp.float32))

    offs = (off_e, off_w1, tuple(hidden_offs), off_wf)
    return params, offs


# ------------------------------- kernel --------------------------------------
def brdf_decoder_kernel(offs, x_ref, p_ref, out_ref):
    off_e, off_w1, hidden_offs, off_wf = offs

    x = x_ref[...]                                                   # (L, tm)

    # Fourier embedding: one tiny matmul + sin over the concatenated phases
    # (mirrors sin(cat([xb, xb + pi/2])) of the reference exactly).
    e_t = p_ref[off_e:off_e + LF, 0:LATENT_DIM]                      # (LF, L)
    xb = jnp.dot(e_t, x, preferred_element_type=jnp.float32)         # (LF, tm)
    four = jnp.sin(jnp.concatenate([xb, xb + 0.5 * jnp.pi], axis=0))  # (2*LF, tm)

    # Full embedding [sin | cos | x]; sublane-concat pieces start at 8-aligned
    # offsets (0 and 32) -> free vreg stacking.
    emb = jnp.concatenate([four, x], axis=0)                         # (36, tm)

    # First Linear (single fused matmul) + ReLU.
    w1 = p_ref[off_w1:off_w1 + NET_W, 0:EMB_DIM]                     # (W, 36)
    b1 = p_ref[off_w1:off_w1 + NET_W, EMB_DIM:EMB_DIM + 1]           # (W, 1)
    h = jnp.maximum(
        jnp.dot(w1, emb, preferred_element_type=jnp.float32) + b1, 0.0)

    # Remaining hidden Linear + ReLU layers (feature-major, lane-dense).
    for r in hidden_offs:
        w = p_ref[r:r + NET_W, 0:NET_W]
        b = p_ref[r:r + NET_W, NET_W:NET_W + 1]
        h = jnp.maximum(
            jnp.dot(w, h, preferred_element_type=jnp.float32) + b, 0.0)

    # Final Linear + Sigmoid; output block is (OUT_DIM, tm): lane-dense stores.
    wf = p_ref[off_wf:off_wf + OUT_DIM, 0:NET_W]                     # (OUT, W)
    bf = p_ref[off_wf:off_wf + OUT_DIM, NET_W:NET_W + 1]             # (OUT, 1)
    o = jnp.dot(wf, h, preferred_element_type=jnp.float32) + bf
    out_ref[...] = jax.nn.sigmoid(o).astype(out_ref.dtype)


# ------------------------------- wrappers --------------------------------------
def brdf_decoder_fm(x_t, params, offs, *, tm=TM):
    """Feature-major path (preferred): x_t (LATENT_DIM, N) f32 -> (OUT_DIM, N).

    No wrapper-side transpose passes; only a tail zero-pad to a tile multiple.
    """
    L, N = x_t.shape
    assert L == LATENT_DIM
    tile = _pick_tile(N, tm)
    n_pad = pl.cdiv(N, tile) * tile
    if n_pad != N:
        x_t = jnp.pad(x_t, ((0, 0), (0, n_pad - N)))

    n_hidden = len(offs[2]) + 1
    flops = 2 * n_pad * (LF * LATENT_DIM
                         + NET_W * EMB_DIM
                         + (n_hidden - 1) * NET_W * NET_W
                         + OUT_DIM * NET_W)
    cost = pl.CostEstimate(
        flops=int(flops),
        transcendentals=int(n_pad * (2 * LF + OUT_DIM)),
        bytes_accessed=int(4 * (n_pad * (LATENT_DIM + OUT_DIM) + params.size)),
    )

    out_t = pl.pallas_call(
        functools.partial(brdf_decoder_kernel, offs),
        out_shape=jax.ShapeDtypeStruct((OUT_DIM, n_pad), jnp.float32),
        grid=(n_pad // tile,),
        in_specs=[
            # (4, tile): no padded rows DMA'd; 4 == full array dim -> legal.
            pl.BlockSpec((LATENT_DIM, tile), lambda i: (0, i)),
            # Packed parameter slab, resident (constant index_map).
            pl.BlockSpec(params.shape, lambda i: (0, 0)),
        ],
        # (7, tile): 7 == full array dim -> legal; no padded output row.
        out_specs=pl.BlockSpec((OUT_DIM, tile), lambda i: (0, i)),
        compiler_params=pltpu.CompilerParams(
            dimension_semantics=("parallel",)),
        cost_estimate=cost,
    )(x_t, params)

    return out_t[:, :N]


def brdf_decoder(x, params, offs, *, tm=TM):
    """Module-compatible API: x (N, LATENT_DIM) -> (N, OUT_DIM).

    Prefer brdf_decoder_fm in feature-major pipelines to avoid the two
    layout passes (they are extra HBM round trips on a memory-bound op).
    """
    out_t = brdf_decoder_fm(x.astype(jnp.float32).T, params, offs, tm=tm)
    return out_t.T


def make_brdf_decoder(weights, biases, *, tm=TM):
    """Pack parameters ONCE at init and return a jitted forward fn."""
    params, offs = pack_params(weights, biases)

    @jax.jit
    def fwd(x):
        return brdf_decoder(x, params, offs, tm=tm)

    return fwd


# --------------------------- pure-JAX reference -------------------------------
def brdf_decoder_ref(x, weights, biases):
    scales = (2.0 ** jnp.linspace(0.0, FOURIER_RES - 1, FOURIER_RES)
              ).astype(jnp.float32)
    xb = (x[..., None] * scales).reshape(x.shape[0], LF)
    four = jnp.sin(jnp.concatenate([xb, xb + 0.5 * jnp.pi], axis=-1))
    h = jnp.concatenate([x, four], axis=-1)
    for w, b in zip(weights[:-1], biases[:-1]):
        h = jnp.maximum(h @ w + b, 0.0)
    return jax.nn.sigmoid(h @ weights[-1] + biases[-1])


# --------------------------------- main ---------------------------------------
if __name__ == "__main__":
    key = jax.random.PRNGKey(0)

    # Deterministic synthetic parameters (nn.Linear-style uniform init).
    layer_dims = ([(EMB_DIM, NET_W)] + [(NET_W, NET_W)] * (NET_D - 1)
                  + [(NET_W, OUT_DIM)])
    weights, biases = [], []
    for fan_in, fan_out in layer_dims:
        key, kw, kb = jax.random.split(key, 3)
        bound = 1.0 / (fan_in ** 0.5)
        weights.append(jax.random.uniform(kw, (fan_in, fan_out), jnp.float32,
                                          minval=-bound, maxval=bound))
        biases.append(jax.random.uniform(kb, (1, fan_out), jnp.float32,
                                         minval=-bound, maxval=bound))

    # Parameters packed once, forward jitted once.
    decoder = make_brdf_decoder(weights, biases)

    # Latent codes in [-1, 1] (matches random_sample()); N deliberately not a
    # tile multiple so the padded-tail path is exercised and the grid has 2
    # steps (both v7x TensorCores used).
    key, kx = jax.random.split(key)
    N = 2000
    x = jnp.clip(0.3 * jax.random.normal(kx, (N, LATENT_DIM), jnp.float32),
                 -1.0, 1.0)

    out = jax.block_until_ready(decoder(x))

    ref = brdf_decoder_ref(x, weights, biases)
    assert out.shape == (N, OUT_DIM)
    assert jnp.allclose(out, ref, atol=1e-5, rtol=1e-5), "mismatch vs reference"

    print("KERNEL_OK")
</pallas_src>

<mosaic_0001>
module attributes {stable_mosaic.version = 11 : i64} {
  func.func @brdf_decoder_kernel(%arg0: i32, %arg1: memref<4x1024xf32, #tpu.memory_space<vmem>>, %arg2: memref<120x128xf32, #tpu.memory_space<vmem>>, %arg3: memref<7x1024xf32, #tpu.memory_space<vmem>>) attributes {dimension_semantics = [#tpu.dimension_semantics<parallel>], iteration_bounds = array<i64: 2>, scalar_prefetch = 0 : i64, scratch_operands = 0 : i64, tpu.core_type = #tpu.core_type<tc>, window_params = [{transform_indices = @transform_0, window_bounds = array<i64: 4, 1024>}, {pipeline_mode = #tpu.pipeline_mode<synchronous>, transform_indices = @transform_1, window_bounds = array<i64: 120, 128>}, {transform_indices = @transform_2, window_bounds = array<i64: 7, 1024>}]} {
    %c0 = arith.constant 0 : index
    %c0_0 = arith.constant 0 : index
    %0 = vector.load %arg1[%c0, %c0_0] : memref<4x1024xf32, #tpu.memory_space<vmem>>, vector<4x1024xf32>
    %c0_1 = arith.constant 0 : index
    %c0_2 = arith.constant 0 : index
    %1 = vector.load %arg2[%c0_1, %c0_2] : memref<120x128xf32, #tpu.memory_space<vmem>>, vector<16x4xf32>
    %cst = arith.constant dense<0.000000e+00> : vector<16x1024xf32>
    %2 = tpu.matmul %1, %0, %cst {dimension_numbers = #tpu.dot_dimension_numbers<[1], [0], [0], [1], [0, 0, 1, 1], [], []>} : vector<16x4xf32>, vector<4x1024xf32>, vector<16x1024xf32> -> vector<16x1024xf32>
    %cst_3 = arith.constant 1.57079637 : f32
    %3 = vector.broadcast %cst_3 : f32 to vector<16x1024xf32>
    %4 = arith.addf %2, %3 : vector<16x1024xf32>
    %5 = tpu.concatenate %2, %4 in 0 : vector<16x1024xf32>, vector<16x1024xf32> -> vector<32x1024xf32>
    %6 = math.sin %5 : vector<32x1024xf32>
    %7 = tpu.concatenate %6, %0 in 0 : vector<32x1024xf32>, vector<4x1024xf32> -> vector<36x1024xf32>
    %c16 = arith.constant 16 : index
    %c0_4 = arith.constant 0 : index
    %8 = vector.load %arg2[%c16, %c0_4] : memref<120x128xf32, #tpu.memory_space<vmem>>, vector<32x36xf32>
    %c16_5 = arith.constant 16 : index
    %c36 = arith.constant 36 : index
    %9 = vector.load %arg2[%c16_5, %c36] : memref<120x128xf32, #tpu.memory_space<vmem>>, vector<32x1xf32>
    %cst_6 = arith.constant dense<0.000000e+00> : vector<32x1024xf32>
    %10 = tpu.matmul %8, %7, %cst_6 {dimension_numbers = #tpu.dot_dimension_numbers<[1], [0], [0], [1], [0, 0, 1, 1], [], []>} : vector<32x36xf32>, vector<36x1024xf32>, vector<32x1024xf32> -> vector<32x1024xf32>
    %11 = vector.broadcast %9 : vector<32x1xf32> to vector<32x1024xf32>
    %12 = arith.addf %10, %11 : vector<32x1024xf32>
    %cst_7 = arith.constant 0.000000e+00 : f32
    %13 = vector.broadcast %cst_7 : f32 to vector<32x1024xf32>
    %14 = arith.maximumf %12, %13 : vector<32x1024xf32>
    %c48 = arith.constant 48 : index
    %c0_8 = arith.constant 0 : index
    %15 = vector.load %arg2[%c48, %c0_8] : memref<120x128xf32, #tpu.memory_space<vmem>>, vector<32x32xf32>
    %c48_9 = arith.constant 48 : index
    %c32 = arith.constant 32 : index
    %16 = vector.load %arg2[%c48_9, %c32] : memref<120x128xf32, #tpu.memory_space<vmem>>, vector<32x1xf32>
    %cst_10 = arith.constant dense<0.000000e+00> : vector<32x1024xf32>
    %17 = tpu.matmul %15, %14, %cst_10 {dimension_numbers = #tpu.dot_dimension_numbers<[1], [0], [0], [1], [0, 0, 1, 1], [], []>} : vector<32x32xf32>, vector<32x1024xf32>, vector<32x1024xf32> -> vector<32x1024xf32>
    %18 = vector.broadcast %16 : vector<32x1xf32> to vector<32x1024xf32>
    %19 = arith.addf %17, %18 : vector<32x1024xf32>
    %cst_11 = arith.constant 0.000000e+00 : f32
    %20 = vector.broadcast %cst_11 : f32 to vector<32x1024xf32>
    %21 = arith.maximumf %19, %20 : vector<32x1024xf32>
    %c80 = arith.constant 80 : index
    %c0_12 = arith.constant 0 : index
    %22 = vector.load %arg2[%c80, %c0_12] : memref<120x128xf32, #tpu.memory_space<vmem>>, vector<32x32xf32>
    %c80_13 = arith.constant 80 : index
    %c32_14 = arith.constant 32 : index
    %23 = vector.load %arg2[%c80_13, %c32_14] : memref<120x128xf32, #tpu.memory_space<vmem>>, vector<32x1xf32>
    %cst_15 = arith.constant dense<0.000000e+00> : vector<32x1024xf32>
    %24 = tpu.matmul %22, %21, %cst_15 {dimension_numbers = #tpu.dot_dimension_numbers<[1], [0], [0], [1], [0, 0, 1, 1], [], []>} : vector<32x32xf32>, vector<32x1024xf32>, vector<32x1024xf32> -> vector<32x1024xf32>
    %25 = vector.broadcast %23 : vector<32x1xf32> to vector<32x1024xf32>
    %26 = arith.addf %24, %25 : vector<32x1024xf32>
    %cst_16 = arith.constant 0.000000e+00 : f32
    %27 = vector.broadcast %cst_16 : f32 to vector<32x1024xf32>
    %28 = arith.maximumf %26, %27 : vector<32x1024xf32>
    %c112 = arith.constant 112 : index
    %c0_17 = arith.constant 0 : index
    %29 = vector.load %arg2[%c112, %c0_17] : memref<120x128xf32, #tpu.memory_space<vmem>>, vector<7x32xf32>
    %c112_18 = arith.constant 112 : index
    %c32_19 = arith.constant 32 : index
    %30 = vector.load %arg2[%c112_18, %c32_19] : memref<120x128xf32, #tpu.memory_space<vmem>>, vector<7x1xf32>
    %cst_20 = arith.constant dense<0.000000e+00> : vector<7x1024xf32>
    %31 = tpu.matmul %29, %28, %cst_20 {dimension_numbers = #tpu.dot_dimension_numbers<[1], [0], [0], [1], [0, 0, 1, 1], [], []>} : vector<7x32xf32>, vector<32x1024xf32>, vector<7x1024xf32> -> vector<7x1024xf32>
    %32 = vector.broadcast %30 : vector<7x1xf32> to vector<7x1024xf32>
    %33 = arith.addf %31, %32 : vector<7x1024xf32>
    %34 = arith.negf %33 : vector<7x1024xf32>
    %35 = math.exp %34 : vector<7x1024xf32>
    %cst_21 = arith.constant 1.000000e+00 : f32
    %36 = vector.broadcast %cst_21 : f32 to vector<7x1024xf32>
    %37 = arith.addf %36, %35 : vector<7x1024xf32>
    %38 = arith.divf %36, %37 : vector<7x1024xf32>
    %c0_22 = arith.constant 0 : index
    %c0_23 = arith.constant 0 : index
    %39 = vector.load %arg3[%c0_22, %c0_23] : memref<7x1024xf32, #tpu.memory_space<vmem>>, vector<7x1024xf32>
    tpu.vector_store %arg3[%c0_22, %c0_23], %38 {strides = array<i32>} : memref<7x1024xf32, #tpu.memory_space<vmem>>, vector<7x1024xf32>,
    return
  }
  func.func @transform_0(%arg0: i32) -> (i32, i32) {
    %c0_i32 = arith.constant 0 : i32
    %c0_i32_0 = arith.constant 0 : i32
    return %c0_i32, %arg0 : i32, i32
  }
  func.func @transform_1(%arg0: i32) -> (i32, i32) {
    %c0_i32 = arith.constant 0 : i32
    %c0_i32_0 = arith.constant 0 : i32
    %c0_i32_1 = arith.constant 0 : i32
    return %c0_i32, %c0_i32_0 : i32, i32
  }
  func.func @transform_2(%arg0: i32) -> (i32, i32) {
    %c0_i32 = arith.constant 0 : i32
    %c0_i32_0 = arith.constant 0 : i32
    return %c0_i32, %arg0 : i32, i32
  }
}

</mosaic_0001>

<llo_original>
// kernel: fwd.1
$region0: #{fwd.1}
  #allocation0 [shape = 'u32[]', space=smem, size = 0x4, offset = 0x4, fixed_abs, tag = 'smem constant byte address 0x4 - core index']
  #allocation1 [shape = 'u32[144,128]{1,0:T(1,128)}', space=vmem, size = 0x12000, scoped, tag = 'internal scratch']
  %s0 = inlined_call_operand.vmem [shape: f32[4,2048], index: 0, kind: input, shape index: {}]
  %s1 = inlined_call_operand.vmem [shape: f32[120,128], index: 1, kind: input, shape index: {}]
  %s2 = inlined_call_operand.vmem [shape: f32[7,2048], index: 2, kind: output, shape index: {}]
  %s3 = sld [smem:[#allocation0]]
  $region41: #{fwd.1} parent=0
    _
  %s5 = ssub.s32 1, %s3
  %s6 = scalar_select 0, %s5, %s3
  loop: start=0, step=1, limit=4
  $region2: #{fwd.1} parent=0 // loop_pre_header
    _
  $region3: #{fwd.1} parent=0 // loop_header
    %s8 = sphi 0, %s12
    %p9 = scmp.ge.s32.totalorder %s8, 4
    %s18 = sphi 0, %s20
    %s21 = sphi 0, %s18
    %s22 = sphi 0, %s21
    %s38 = sphi 0, %s22
    %s42 = sphi 0, %s42
    %s44 = sphi 0, %s42
    %s45 = sphi 0, %s44
    %s59 = sphi 0, %s45
    %s65 = sphi 0, %s67
    %s68 = sphi 0, %s65
    %s69 = sphi 0, %s68
    %s85 = sphi 0, %s69
  $region4: #{fwd.1} parent=0 // loop_header_branch
    %11 = sbr.rel (%p9) target = $region8
  $region5: #{fwd.1} parent=0 // loop_body
    %s13 = ssub.s32 %s8, 1
    %s14 = ssub.s32 %s8, 2
    %s15 = sadd.s32 %s8, 1
    %s16 = ssub.s32 %s8, %s15
    %p17 = scmp.eq.s32.totalorder %s16, 0
    %s19 = sadd.s32 %s18, 1
    %s20 = scalar_select %p17, %s18, %s19
    %p23 = pneg %p17
    %p24 = scmp.eq.s32.totalorder %s8, 1
    %p25 = por %p23, %p24
    %p26 = scmp.ne.s32.totalorder %s18, %s21
    %p27 = scmp.eq.s32.totalorder %s8, 0
    %p28 = por %p26, %p27
    %p29 = scmp.ne.s32.totalorder %s18, %s21
    %p30 = scmp.eq.s32.totalorder %s13, 1
    %p31 = por %p29, %p30
    %p32 = scmp.ne.s32.totalorder %s21, %s22
    %p33 = scmp.eq.s32.totalorder %s13, 0
    %p34 = por %p32, %p33
    %p35 = scmp.ne.s32.totalorder %s21, %s22
    %p36 = scmp.eq.s32.totalorder %s14, 1
    %p37 = por %p35, %p36
    %p39 = scmp.ne.s32.totalorder %s22, %s38
    %p40 = scmp.eq.s32.totalorder %s14, 0
    %p41 = por %p39, %p40
    %s43 = sadd.s32 %s42, 1
    %p46 = scmp.eq.s32.totalorder %s8, 1
    %p47 = scmp.ne.s32.totalorder %s42, %s44
    %p48 = scmp.eq.s32.totalorder %s8, 0
    %p49 = por %p47, %p48
    %p50 = scmp.ne.s32.totalorder %s42, %s44
    %p51 = scmp.eq.s32.totalorder %s13, 1
    %p52 = por %p50, %p51
    %p53 = scmp.ne.s32.totalorder %s44, %s45
    %p54 = scmp.eq.s32.totalorder %s13, 0
    %p55 = por %p53, %p54
    %p56 = scmp.ne.s32.totalorder %s44, %s45
    %p57 = scmp.eq.s32.totalorder %s14, 1
    %p58 = por %p56, %p57
    %p60 = scmp.ne.s32.totalorder %s45, %s59
    %p61 = scmp.eq.s32.totalorder %s14, 0
    %p62 = por %p60, %p61
    %s63 = ssub.s32 %s8, %s15
    %p64 = scmp.eq.s32.totalorder %s63, 0
    %s66 = sadd.s32 %s65, 1
    %s67 = scalar_select %p64, %s65, %s66
    %p70 = pneg %p64
    %p71 = scmp.eq.s32.totalorder %s8, 1
    %p72 = por %p70, %p71
    %p73 = scmp.ne.s32.totalorder %s65, %s68
    %p74 = scmp.eq.s32.totalorder %s8, 0
    %p75 = por %p73, %p74
    %p76 = scmp.ne.s32.totalorder %s65, %s68
    %p77 = scmp.eq.s32.totalorder %s13, 1
    %p78 = por %p76, %p77
    %p79 = scmp.ne.s32.totalorder %s68, %s69
    %p80 = scmp.eq.s32.totalorder %s13, 0
    %p81 = por %p79, %p80
    %p82 = scmp.ne.s32.totalorder %s68, %s69
    %p83 = scmp.eq.s32.totalorder %s14, 1
    %p84 = por %p82, %p83
    %p86 = scmp.ne.s32.totalorder %s69, %s85
    %p87 = scmp.eq.s32.totalorder %s14, 0
    %p88 = por %p86, %p87
    %p89 = scmp.le.s32.totalorder 1, %s8
    %p90 = scmp.lt.s32.totalorder %s8, 3
    %p91 = pnand %p89, %p90
    %p92 = pneg %p91
    // Predicated region
    $region9: #{fwd.1} parent=5 // pred_check
      _
    $region10: #{fwd.1} parent=5 // pred_check_branch
      %94 = sbr.rel (%p91) target = $region12
    $region11: #{fwd.1} parent=5 // pred_region
      %s95 = ssub.s32 %s8, 1
      // Predicated region
      $region13: #{fwd.1} parent=11 // pred_check
        %p96 = pneg %p55
      $region14: #{fwd.1} parent=11 // pred_check_branch
        %98 = sbr.rel (%p96) target = $region16
      $region15: #{fwd.1} parent=11 // pred_region
        _
      $region16: #{fwd.1} parent=11 // pred_fallthru
        _
    $region12: #{fwd.1} parent=5 // pred_fallthru
      _
    %p99 = scmp.lt.s32.totalorder %s8, 2
    // Predicated region
    $region17: #{fwd.1} parent=5 // pred_check
      %p100 = pneg %p99
    $region18: #{fwd.1} parent=5 // pred_check_branch
      %102 = sbr.rel (%p100) target = $region20
    $region19: #{fwd.1} parent=5 // pred_region
      // Predicated region
      $region21: #{fwd.1} parent=19 // pred_check
        %p103 = pneg %p28
      $region22: #{fwd.1} parent=19 // pred_check_branch
        %105 = sbr.rel (%p103) target = $region24
      $region23: #{fwd.1} parent=19 // pred_region
        %s106 = smul.u32 8, %s8
        %p107 = scmp.lt.s32.totalorder %s106, 15
        %s108 = scalar_select %p107, %s106, 15
        %s109 = smul.addr %s108, 4
        %s110 = scalar_lea.vmem %s0, %s109
        %s111 = smul.u32 8, %s8
      $region24: #{fwd.1} parent=19 // pred_fallthru
        _
    $region20: #{fwd.1} parent=5 // pred_fallthru
      _
    %p112 = scmp.le.s32.totalorder 1, %s8
    %p113 = scmp.lt.s32.totalorder %s8, 3
    %p114 = pnand %p112, %p113
    %p115 = pneg %p114
    // Predicated region
    $region25: #{fwd.1} parent=5 // pred_check
      _
    $region26: #{fwd.1} parent=5 // pred_check_branch
      %117 = sbr.rel (%p114) target = $region28
    $region27: #{fwd.1} parent=5 // pred_region
      %s118 = ssub.s32 %s8, 1
      %s119 = smul.u32 8, %s13
      %p120 = scmp.lt.s32.totalorder %s119, 15
      %s121 = scalar_select %p120, %s119, 15
      %s122 = smul.addr %s121, 4
      %s123 = scalar_lea.vmem %s0, %s122
      %p124 = pneg %p34
      %p125 = pneg %p31
      %p126 = pneg %p55
      %p127 = pneg %p52
      %p128 = pneg %p81
      %p129 = pneg %p78
      %s130 = smul.u32 8, %s13
      %p131 = scmp.lt.s32.totalorder %s130, 15
      %s132 = scalar_select %p131, %s130, 15
      %s133 = smul.addr %s132, 8
      %s134 = scalar_lea.vmem %s2, %s133
      %s135 = smul.u32 8, %s13
      %p136 = scmp.lt.s32.totalorder %s135, 15
      %s137 = scalar_select %p136, %s135, 15
      %s138 = smul.addr %s137, 4
      %s139 = scalar_lea.vmem %s0, %s138
      %s140 = smul.u32 8, %s13
      %s141 = smul.u32 8, %s13
      %p142 = scmp.lt.s32.totalorder %s141, 15
      %s143 = scalar_select %p142, %s141, 15
      %s144 = smul.addr %s143, 8
      %s145 = scalar_lea.vmem %s2, %s144
      %s146 = smul.u32 8, %s13
      %v147 = vld [vmem:[%s139] sm:$0xff]
      %v148 = vld [vmem:[%s139 + $0x8] sm:$0xff]
      %v149 = vld [vmem:[%s139 + $0x10] sm:$0xff]
      %v150 = vld [vmem:[%s139 + $0x18] sm:$0xff]
      %v151 = vld [vmem:[%s1] sm:$0xff]
      %v152 = vld [vmem:[%s1 + $0x8] sm:$0xff]
      %v157 = vcombine.high %v147, %v147
      %v158 = vcombine.high %v148, %v148
      %v159 = vcombine.high %v149, %v149
      %v160 = vcombine.high %v150, %v150
      %vm161 = vcmask 31744
      %v163 = vsel %vm161, %v151, 0
      %v166 = vsel %vm161, %v152, 0
      %vm168 = vcmask 1043456
      %v169 = vsel %vm168, %v147, 0
      %v171 = vsel %vm168, %v157, 0
      %v173 = vsel %vm168, %v148, 0
      %v175 = vsel %vm168, %v158, 0
      %v177 = vsel %vm168, %v149, 0
      %v179 = vsel %vm168, %v159, 0
      %v181 = vsel %vm168, %v150, 0
      %v183 = vsel %vm168, %v160, 0
      %185 = vmatprep.subr.mxu0 %v171
      %186 = vmatpush1.msra.mxu0 %v169
      %187 = vmatprep.subr.mxu0 0.0
      %188 = vmatpush1.msra.mxu0 0.0
      %189 = vmatprep.subr.mxu0 0.0
      %190 = vmatpush1.msra.mxu0 0.0
      %191 = vmatprep.subr.mxu0 0.0
      %192 = vmatpush1.msra.mxu0 0.0
      %193 = vmatprep.subr.mxu0 0.0
      %194 = vmatpush1.msra.mxu0 0.0
      %195 = vmatprep.subr.mxu0 0.0
      %196 = vmatpush1.msra.mxu0 0.0
      %197 = vmatprep.subr.mxu0 0.0
      %198 = vmatpush1.msra.mxu0 0.0
      %199 = vmatprep.subr.mxu0 0.0
      %200 = vmatpush1.msra.mxu0 0.0
      %201 = vmatprep.subr.mxu0 0.0
      %202 = vmatpush1.msra.mxu0 0.0
      %203 = vmatprep.subr.mxu0 0.0
      %204 = vmatpush1.msra.mxu0 0.0
      %205 = vmatprep.subr.mxu0 0.0
      %206 = vmatpush1.msra.mxu0 0.0
      %207 = vmatprep.subr.mxu0 0.0
      %208 = vmatpush1.msra.mxu0 0.0
      %209 = vmatprep.subr.mxu0 0.0
      %210 = vmatpush1.msra.mxu0 0.0
      %211 = vmatprep.subr.mxu0 0.0
      %212 = vmatpush1.msra.mxu0 0.0
      %213 = vmatprep.subr.mxu0 0.0
      %214 = vmatpush1.msra.mxu0 0.0
      %215 = vmatprep.subr.mxu0 0.0
      %216 = vmatpush1.msra.mxu0 0.0
      %217 = vmatprep.subr.mxu0 0.0
      %218 = vmatpush1.msra.mxu0 0.0
      %219 = vmatprep.subr.mxu0 0.0
      %220 = vmatpush1.msra.mxu0 0.0
      %221 = vmatprep.subr.mxu0 0.0
      %222 = vmatpush1.msra.mxu0 0.0
      %223 = vmatprep.subr.mxu0 0.0
      %224 = vmatpush1.msra.mxu0 0.0
      %225 = vmatprep.subr.mxu0 0.0
      %226 = vmatpush1.msra.mxu0 0.0
      %227 = vmatprep.subr.mxu0 0.0
      %228 = vmatpush1.msra.mxu0 0.0
      %229 = vmatprep.subr.mxu0 0.0
      %230 = vmatpush1.msra.mxu0 0.0
      %231 = vmatprep.subr.mxu0 0.0
      %232 = vmatpush1.msra.mxu0 0.0
      %233 = vmatprep.subr.mxu0 0.0
      %234 = vmatpush1.msra.mxu0 0.0
      %235 = vmatprep.subr.mxu0 0.0
      %236 = vmatpush1.msra.mxu0 0.0
      %237 = vmatprep.subr.mxu0 0.0
      %238 = vmatpush1.msra.mxu0 0.0
      %239 = vmatprep.subr.mxu0 0.0
      %240 = vmatpush1.msra.mxu0 0.0
      %241 = vmatprep.subr.mxu0 0.0
      %242 = vmatpush1.msra.mxu0 0.0
      %243 = vmatprep.subr.mxu0 0.0
      %244 = vmatpush1.msra.mxu0 0.0
      %245 = vmatprep.subr.mxu0 0.0
      %246 = vmatpush1.msra.mxu0 0.0
      %247 = vmatprep.subr.mxu0 0.0
      %248 = vmatpush1.msra.mxu0 0.0
      %249 = vmatprep.mubr.f32.mxu0 0.0
      %250 = vmatmul.mubr.f32.gmra.mrb[0].mxu0 %v163
      %v251 = vpop.f32.mrb[0].mxu0
      %v252 = vadd.f32 0.0, %v251
      %v253 = vpop.f32.mrb[0].mxu0
      %v254 = vadd.f32 0.0, %v253
      %255 = vmatprep.mubr.f32.mxu0 0.0
      %256 = vmatmul.mubr.f32.gmra.mrb[0].mxu0 %v166
      %v257 = vpop.f32.mrb[0].mxu0
      %v258 = vadd.f32 0.0, %v257
      %v259 = vpop.f32.mrb[0].mxu0
      %v260 = vadd.f32 0.0, %v259
      %261 = vdwg.mxu0
      %262 = vmatprep.subr.mxu0 %v175
      %263 = vmatpush1.msra.mxu0 %v173
      %264 = vmatprep.subr.mxu0 0.0
      %265 = vmatpush1.msra.mxu0 0.0
      %266 = vmatprep.subr.mxu0 0.0
      %267 = vmatpush1.msra.mxu0 0.0
      %268 = vmatprep.subr.mxu0 0.0
      %269 = vmatpush1.msra.mxu0 0.0
      %270 = vmatprep.subr.mxu0 0.0
      %271 = vmatpush1.msra.mxu0 0.0
      %272 = vmatprep.subr.mxu0 0.0
      %273 = vmatpush1.msra.mxu0 0.0
      %274 = vmatprep.subr.mxu0 0.0
      %275 = vmatpush1.msra.mxu0 0.0
      %276 = vmatprep.subr.mxu0 0.0
      %277 = vmatpush1.msra.mxu0 0.0
      %278 = vmatprep.subr.mxu0 0.0
      %279 = vmatpush1.msra.mxu0 0.0
      %280 = vmatprep.subr.mxu0 0.0
      %281 = vmatpush1.msra.mxu0 0.0
      %282 = vmatprep.subr.mxu0 0.0
      %283 = vmatpush1.msra.mxu0 0.0
      %284 = vmatprep.subr.mxu0 0.0
      %285 = vmatpush1.msra.mxu0 0.0
      %286 = vmatprep.subr.mxu0 0.0
      %287 = vmatpush1.msra.mxu0 0.0
      %288 = vmatprep.subr.mxu0 0.0
      %289 = vmatpush1.msra.mxu0 0.0
      %290 = vmatprep.subr.mxu0 0.0
      %291 = vmatpush1.msra.mxu0 0.0
      %292 = vmatprep.subr.mxu0 0.0
      %293 = vmatpush1.msra.mxu0 0.0
      %294 = vmatprep.subr.mxu0 0.0
      %295 = vmatpush1.msra.mxu0 0.0
      %296 = vmatprep.subr.mxu0 0.0
      %297 = vmatpush1.msra.mxu0 0.0
      %298 = vmatprep.subr.mxu0 0.0
      %299 = vmatpush1.msra.mxu0 0.0
      %300 = vmatprep.subr.mxu0 0.0
      %301 = vmatpush1.msra.mxu0 0.0
      %302 = vmatprep.subr.mxu0 0.0
      %303 = vmatpush1.msra.mxu0 0.0
      %304 = vmatprep.subr.mxu0 0.0
      %305 = vmatpush1.msra.mxu0 0.0
      %306 = vmatprep.subr.mxu0 0.0
      %307 = vmatpush1.msra.mxu0 0.0
      %308 = vmatprep.subr.mxu0 0.0
      %309 = vmatpush1.msra.mxu0 0.0
      %310 = vmatprep.subr.mxu0 0.0
      %311 = vmatpush1.msra.mxu0 0.0
      %312 = vmatprep.subr.mxu0 0.0
      %313 = vmatpush1.msra.mxu0 0.0
      %314 = vmatprep.subr.mxu0 0.0
      %315 = vmatpush1.msra.mxu0 0.0
      %316 = vmatprep.subr.mxu0 0.0
      %317 = vmatpush1.msra.mxu0 0.0
      %318 = vmatprep.subr.mxu0 0.0
      %319 = vmatpush1.msra.mxu0 0.0
      %320 = vmatprep.subr.mxu0 0.0
      %321 = vmatpush1.msra.mxu0 0.0
      %322 = vmatprep.subr.mxu0 0.0
      %323 = vmatpush1.msra.mxu0 0.0
      %324 = vmatprep.subr.mxu0 0.0
      %325 = vmatpush1.msra.mxu0 0.0
      %326 = vmatprep.mubr.f32.mxu0 0.0
      %327 = vmatmul.mubr.f32.gmra.mrb[0].mxu0 %v163
      %v328 = vpop.f32.mrb[0].mxu0
      %v329 = vadd.f32 0.0, %v328
      %v330 = vpop.f32.mrb[0].mxu0
      %v331 = vadd.f32 0.0, %v330
      %332 = vmatprep.mubr.f32.mxu0 0.0
      %333 = vmatmul.mubr.f32.gmra.mrb[0].mxu0 %v166
      %v334 = vpop.f32.mrb[0].mxu0
      %v335 = vadd.f32 0.0, %v334
      %v336 = vpop.f32.mrb[0].mxu0
      %v337 = vadd.f32 0.0, %v336
      %338 = vdwg.mxu0
      %339 = vmatprep.subr.mxu0 %v179
      %340 = vmatpush1.msra.mxu0 %v177
      %341 = vmatprep.subr.mxu0 0.0
      %342 = vmatpush1.msra.mxu0 0.0
      %343 = vmatprep.subr.mxu0 0.0
      %344 = vmatpush1.msra.mxu0 0.0
      %345 = vmatprep.subr.mxu0 0.0
      %346 = vmatpush1.msra.mxu0 0.0
      %347 = vmatprep.subr.mxu0 0.0
      %348 = vmatpush1.msra.mxu0 0.0
      %349 = vmatprep.subr.mxu0 0.0
      %350 = vmatpush1.msra.mxu0 0.0
      %351 = vmatprep.subr.mxu0 0.0
      %352 = vmatpush1.msra.mxu0 0.0
      %353 = vmatprep.subr.mxu0 0.0
      %354 = vmatpush1.msra.mxu0 0.0
      %355 = vmatprep.subr.mxu0 0.0
      %356 = vmatpush1.msra.mxu0 0.0
      %357 = vmatprep.subr.mxu0 0.0
      %358 = vmatpush1.msra.mxu0 0.0
      %359 = vmatprep.subr.mxu0 0.0
      %360 = vmatpush1.msra.mxu0 0.0
      %361 = vmatprep.subr.mxu0 0.0
      %362 = vmatpush1.msra.mxu0 0.0
      %363 = vmatprep.subr.mxu0 0.0
      %364 = vmatpush1.msra.mxu0 0.0
      %365 = vmatprep.subr.mxu0 0.0
      %366 = vmatpush1.msra.mxu0 0.0
      %367 = vmatprep.subr.mxu0 0.0
      %368 = vmatpush1.msra.mxu0 0.0
      %369 = vmatprep.subr.mxu0 0.0
      %370 = vmatpush1.msra.mxu0 0.0
      %371 = vmatprep.subr.mxu0 0.0
      %372 = vmatpush1.msra.mxu0 0.0
      %373 = vmatprep.subr.mxu0 0.0
      %374 = vmatpush1.msra.mxu0 0.0
      %375 = vmatprep.subr.mxu0 0.0
      %376 = vmatpush1.msra.mxu0 0.0
      %377 = vmatprep.subr.mxu0 0.0
      %378 = vmatpush1.msra.mxu0 0.0
      %379 = vmatprep.subr.mxu0 0.0
      %380 = vmatpush1.msra.mxu0 0.0
      %381 = vmatprep.subr.mxu0 0.0
      %382 = vmatpush1.msra.mxu0 0.0
      %383 = vmatprep.subr.mxu0 0.0
      %384 = vmatpush1.msra.mxu0 0.0
      %385 = vmatprep.subr.mxu0 0.0
      %386 = vmatpush1.msra.mxu0 0.0
      %387 = vmatprep.subr.mxu0 0.0
      %388 = vmatpush1.msra.mxu0 0.0
      %389 = vmatprep.subr.mxu0 0.0
      %390 = vmatpush1.msra.mxu0 0.0
      %391 = vmatprep.subr.mxu0 0.0
      %392 = vmatpush1.msra.mxu0 0.0
      %393 = vmatprep.subr.mxu0 0.0
      %394 = vmatpush1.msra.mxu0 0.0
      %395 = vmatprep.subr.mxu0 0.0
      %396 = vmatpush1.msra.mxu0 0.0
      %397 = vmatprep.subr.mxu0 0.0
      %398 = vmatpush1.msra.mxu0 0.0
      %399 = vmatprep.subr.mxu0 0.0
      %400 = vmatpush1.msra.mxu0 0.0
      %401 = vmatprep.subr.mxu0 0.0
      %402 = vmatpush1.msra.mxu0 0.0
      %403 = vmatprep.mubr.f32.mxu0 0.0
      %404 = vmatmul.mubr.f32.gmra.mrb[0].mxu0 %v163
      %v405 = vpop.f32.mrb[0].mxu0
      %v406 = vadd.f32 0.0, %v405
      %v407 = vpop.f32.mrb[0].mxu0
      %v408 = vadd.f32 0.0, %v407
      %409 = vmatprep.mubr.f32.mxu0 0.0
      %410 = vmatmul.mubr.f32.gmra.mrb[0].mxu0 %v166
      %v411 = vpop.f32.mrb[0].mxu0
      %v412 = vadd.f32 0.0, %v411
      %v413 = vpop.f32.mrb[0].mxu0
      %v414 = vadd.f32 0.0, %v413
      %415 = vdwg.mxu0
      %416 = vmatprep.subr.mxu0 %v183
      %417 = vmatpush1.msra.mxu0 %v181
      %418 = vmatprep.subr.mxu0 0.0
      %419 = vmatpush1.msra.mxu0 0.0
      %420 = vmatprep.subr.mxu0 0.0
      %421 = vmatpush1.msra.mxu0 0.0
      %422 = vmatprep.subr.mxu0 0.0
      %423 = vmatpush1.msra.mxu0 0.0
      %424 = vmatprep.subr.mxu0 0.0
      %425 = vmatpush1.msra.mxu0 0.0
      %426 = vmatprep.subr.mxu0 0.0
      %427 = vmatpush1.msra.mxu0 0.0
      %428 = vmatprep.subr.mxu0 0.0
      %429 = vmatpush1.msra.mxu0 0.0
      %430 = vmatprep.subr.mxu0 0.0
      %431 = vmatpush1.msra.mxu0 0.0
      %432 = vmatprep.subr.mxu0 0.0
      %433 = vmatpush1.msra.mxu0 0.0
      %434 = vmatprep.subr.mxu0 0.0
      %435 = vmatpush1.msra.mxu0 0.0
      %436 = vmatprep.subr.mxu0 0.0
      %437 = vmatpush1.msra.mxu0 0.0
      %438 = vmatprep.subr.mxu0 0.0
      %439 = vmatpush1.msra.mxu0 0.0
      %440 = vmatprep.subr.mxu0 0.0
      %441 = vmatpush1.msra.mxu0 0.0
      %442 = vmatprep.subr.mxu0 0.0
      %443 = vmatpush1.msra.mxu0 0.0
      %444 = vmatprep.subr.mxu0 0.0
      %445 = vmatpush1.msra.mxu0 0.0
      %446 = vmatprep.subr.mxu0 0.0
      %447 = vmatpush1.msra.mxu0 0.0
      %448 = vmatprep.subr.mxu0 0.0
      %449 = vmatpush1.msra.mxu0 0.0
      %450 = vmatprep.subr.mxu0 0.0
      %451 = vmatpush1.msra.mxu0 0.0
      %452 = vmatprep.subr.mxu0 0.0
      %453 = vmatpush1.msra.mxu0 0.0
      %454 = vmatprep.subr.mxu0 0.0
      %455 = vmatpush1.msra.mxu0 0.0
      %456 = vmatprep.subr.mxu0 0.0
      %457 = vmatpush1.msra.mxu0 0.0
      %458 = vmatprep.subr.mxu0 0.0
      %459 = vmatpush1.msra.mxu0 0.0
      %460 = vmatprep.subr.mxu0 0.0
      %461 = vmatpush1.msra.mxu0 0.0
      %462 = vmatprep.subr.mxu0 0.0
      %463 = vmatpush1.msra.mxu0 0.0
      %464 = vmatprep.subr.mxu0 0.0
      %465 = vmatpush1.msra.mxu0 0.0
      %466 = vmatprep.subr.mxu0 0.0
      %467 = vmatpush1.msra.mxu0 0.0
      %468 = vmatprep.subr.mxu0 0.0
      %469 = vmatpush1.msra.mxu0 0.0
      %470 = vmatprep.subr.mxu0 0.0
      %471 = vmatpush1.msra.mxu0 0.0
      %472 = vmatprep.subr.mxu0 0.0
      %473 = vmatpush1.msra.mxu0 0.0
      %474 = vmatprep.subr.mxu0 0.0
      %475 = vmatpush1.msra.mxu0 0.0
      %476 = vmatprep.subr.mxu0 0.0
      %477 = vmatpush1.msra.mxu0 0.0
      %478 = vmatprep.subr.mxu0 0.0
      %479 = vmatpush1.msra.mxu0 0.0
      %480 = vmatprep.mubr.f32.mxu0 0.0
      %481 = vmatmul.mubr.f32.gmra.mrb[0].mxu0 %v163
      %v482 = vpop.f32.mrb[0].mxu0
      %v483 = vadd.f32 0.0, %v482
      %v484 = vpop.f32.mrb[0].mxu0
      %v485 = vadd.f32 0.0, %v484
      %486 = vmatprep.mubr.f32.mxu0 0.0
      %487 = vmatmul.mubr.f32.gmra.mrb[0].mxu0 %v166
      %v488 = vpop.f32.mrb[0].mxu0
      %v489 = vadd.f32 0.0, %v488
      %v490 = vpop.f32.mrb[0].mxu0
      %v491 = vadd.f32 0.0, %v490
      %492 = vdwg.mxu0
      %v493 = vadd.f32 %v252, 1.5707964
      %v494 = vadd.f32 %v254, 1.5707964
      %v495 = vadd.f32 %v329, 1.5707964
      %v496 = vadd.f32 %v331, 1.5707964
      %v497 = vadd.f32 %v406, 1.5707964
      %v498 = vadd.f32 %v408, 1.5707964
      %v499 = vadd.f32 %v483, 1.5707964
      %v500 = vadd.f32 %v485, 1.5707964
      %v501 = vadd.f32 %v258, 1.5707964
      %v502 = vadd.f32 %v260, 1.5707964
      %v503 = vadd.f32 %v335, 1.5707964
      %v504 = vadd.f32 %v337, 1.5707964
      %v505 = vadd.f32 %v412, 1.5707964
      %v506 = vadd.f32 %v414, 1.5707964
      %v507 = vadd.f32 %v489, 1.5707964
      %v508 = vadd.f32 %v491, 1.5707964
      %v509 = vand.u32 2147483647, %v252
      %vm510 = vcmp.le.f32.partialorder %v509, 0.7853982
      %vm511 = vcmp.lt.s32.totalorder %v252, 0
      %v512 = vand.u32 %v252, 2139095040
      %v513 = vshrl.u32 %v512, 23
      %v514 = vsub.s32 %v513, 127
      %v515 = vand.u32 2147483647, %v252
      %v516 = vand.u32 %v515, 8388607
      %v517 = vor.u32 %v516, 8388608
      %v518 = vsub.s32 0, %v517
      %v519 = vadd.s32 %v514, 1
      %vm520 = vcmp.gt.s32.totalorder %v519, 0
      %v521 = vsel %vm520, %v519, 0
      %v522 = vshrl.u32 %v521, 5
      %v523 = vand.u32 %v521, 31
      %v524 = vsub.s32 32, %v523
      %v525 = vshrl.u32 683565275, %v524
      %v526 = vshll.u32 683565275, %v523
      %v527 = vshrl.u32 2475754826, %v524
      %v528 = vor.u32 %v526, %v527
      %v529 = vshll.u32 2475754826, %v523
      %v530 = vshrl.u32 2131351028, %v524
      %v531 = vor.u32 %v529, %v530
      %v532 = vshll.u32 2131351028, %v523
      %v533 = vshrl.u32 2102212464, %v524
      %v534 = vor.u32 %v532, %v533
      %v535 = vshll.u32 2102212464, %v523
      %v536 = vshrl.u32 920167782, %v524
      %v537 = vor.u32 %v535, %v536
      %v538 = vshll.u32 920167782, %v523
      %v539 = vshrl.u32 1326507024, %v524
      %v540 = vor.u32 %v538, %v539
      %vm541 = vcmp.lt.s32.totalorder %v522, 1
      %vm542 = vcmp.lt.s32.totalorder %v522, 2
      %vm543 = vcmp.lt.s32.totalorder %v522, 3
      %vm544 = vcmp.lt.s32.totalorder %v522, 4
      %v545 = vsel %vm541, %v525, %v528
      %v546 = vsel %vm544, %v534, 2102212464
      %v547 = vsel %vm543, %v531, %v546
      %v548 = vsel %vm542, %v545, %v547
      %v549 = vsel %vm541, %v528, %v531
      %v550 = vsel %vm544, %v537, 920167782
      %v551 = vsel %vm543, %v534, %v550
      %v552 = vsel %vm542, %v549, %v551
      %v553 = vsel %vm541, %v531, %v534
      %v554 = vsel %vm544, %v540, 1326507024
      %v555 = vsel %vm543, %v537, %v554
      %v556 = vsel %vm542, %v553, %v555
      %v557 = vshll.u32 %v517, 8
      %v558 = vmul.u32.u64.compose %v557, %v556
      %v559 = vextract.low.u32 %v558
      %v560 = vextract.high.u32 %v558
      %v561 = vmul.u32.u64.compose %v557, %v552
      %v562 = vextract.low.u32 %v561
      %v563 = vextract.high.u32 %v561
      %v564 = vmul.u32 %v557, %v548
      %v565 = vadd.s32 %v560, %v562
      %vm566 = vc.u32 %v560, %v562
      %v567 = vadd.s32 %v563, 1
      %v568 = vsel %vm566, %v567, %v563
      %v569 = vadd.s32 %v564, %v568
      %v570 = vadd.s32 %v569, 536870912
      %v571 = vshrl.u32 %v570, 30
      %v572 = vshll.u32 %v571, 30
      %v573 = vsub.s32 %v569, %v572
      %vm574 = vcmp.lt.s32.totalorder %v573, 0
      %v575 = vsub.s32 0, %v573
      %v576 = vsel %vm574, %v575, %v573
      %v577 = vclz %v576
      %v578 = vsub.s32 %v577, 2
      %vm579 = vcmp.gt.s32.totalorder 0, %v578
      %v580 = vsel %vm579, 0, %v578
      %v581 = vsub.s32 32, %v580
      %v582 = vshll.u32 %v573, %v580
      %v583 = vshrl.u32 %v565, %v581
      %v584 = vor.u32 %v582, %v583
      %v585 = vsub.s32 4294967266, %v580
      %v586 = vadd.s32 %v585, 127
      %v587 = vshll.u32 %v586, 23
      %v588 = vor.u32 4788187, %v587
      %v589 = vand.u32 2147483647, %v588
      %v591 = vcvt.s32.f32 %v584
      %v592 = vmul.f32 %v591, %v589
      %v593 = vxor.u32 %v592, 2147483648
      %v594 = vsel %vm511, %v593, %v592
      %v595 = vsub.s32 4, %v571
      %v596 = vsel %vm511, %v595, %v571
      %v597 = vsel %vm510, %v252, %v594
      %v598 = vsel %vm510, 0, %v596
      %v599 = vcosq.f32.pop %v597
      %v600 = vsinq.f32.pop %v597
      %vm601 = vweird.f32 %v252
      %v602 = vadd.s32 %v598, 3
      %v603 = vand.u32 %v602, 3
      %vm604 = vcmp.lt.s32.totalorder %v603, 2
      %vm605 = vcmp.eq.s32.totalorder %v603, 0
      %v606 = vxor.u32 %v600, 2147483648
      %v607 = vsel %vm605, %v599, %v606
      %vm608 = vcmp.eq.s32.totalorder %v603, 2
      %v609 = vxor.u32 %v599, 2147483648
      %v610 = vsel %vm608, %v609, %v600
      %v611 = vsel %vm604, %v607, %v610
      %v612 = vsel %vm601, nan, %v611
      %v613 = vand.u32 2147483647, %v254
      %vm614 = vcmp.le.f32.partialorder %v613, 0.7853982
      %vm615 = vcmp.lt.s32.totalorder %v254, 0
      %v616 = vand.u32 %v254, 2139095040
      %v617 = vshrl.u32 %v616, 23
      %v618 = vsub.s32 %v617, 127
      %v619 = vand.u32 2147483647, %v254
      %v620 = vand.u32 %v619, 8388607
      %v621 = vor.u32 %v620, 8388608
      %v622 = vsub.s32 0, %v621
      %v623 = vadd.s32 %v618, 1
      %vm624 = vcmp.gt.s32.totalorder %v623, 0
      %v625 = vsel %vm624, %v623, 0
      %v626 = vshrl.u32 %v625, 5
      %v627 = vand.u32 %v625, 31
      %v628 = vsub.s32 32, %v627
      %v629 = vshrl.u32 683565275, %v628
      %v630 = vshll.u32 683565275, %v627
      %v631 = vshrl.u32 2475754826, %v628
      %v632 = vor.u32 %v630, %v631
      %v633 = vshll.u32 2475754826, %v627
      %v634 = vshrl.u32 2131351028, %v628
      %v635 = vor.u32 %v633, %v634
      %v636 = vshll.u32 2131351028, %v627
      %v637 = vshrl.u32 2102212464, %v628
      %v638 = vor.u32 %v636, %v637
      %v639 = vshll.u32 2102212464, %v627
      %v640 = vshrl.u32 920167782, %v628
      %v641 = vor.u32 %v639, %v640
      %v642 = vshll.u32 920167782, %v627
      %v643 = vshrl.u32 1326507024, %v628
      %v644 = vor.u32 %v642, %v643
      %vm645 = vcmp.lt.s32.totalorder %v626, 1
      %vm646 = vcmp.lt.s32.totalorder %v626, 2
      %vm647 = vcmp.lt.s32.totalorder %v626, 3
      %vm648 = vcmp.lt.s32.totalorder %v626, 4
      %v649 = vsel %vm645, %v629, %v632
      %v650 = vsel %vm648, %v638, 2102212464
      %v651 = vsel %vm647, %v635, %v650
      %v652 = vsel %vm646, %v649, %v651
      %v653 = vsel %vm645, %v632, %v635
      %v654 = vsel %vm648, %v641, 920167782
      %v655 = vsel %vm647, %v638, %v654
      %v656 = vsel %vm646, %v653, %v655
      %v657 = vsel %vm645, %v635, %v638
      %v658 = vsel %vm648, %v644, 1326507024
      %v659 = vsel %vm647, %v641, %v658
      %v660 = vsel %vm646, %v657, %v659
      %v661 = vshll.u32 %v621, 8
      %v662 = vmul.u32.u64.compose %v661, %v660
      %v663 = vextract.low.u32 %v662
      %v664 = vextract.high.u32 %v662
      %v665 = vmul.u32.u64.compose %v661, %v656
      %v666 = vextract.low.u32 %v665
      %v667 = vextract.high.u32 %v665
      %v668 = vmul.u32 %v661, %v652
      %v669 = vadd.s32 %v664, %v666
      %vm670 = vc.u32 %v664, %v666
      %v671 = vadd.s32 %v667, 1
      %v672 = vsel %vm670, %v671, %v667
      %v673 = vadd.s32 %v668, %v672
      %v674 = vadd.s32 %v673, 536870912
      %v675 = vshrl.u32 %v674, 30
      %v676 = vshll.u32 %v675, 30
      %v677 = vsub.s32 %v673, %v676
      %vm678 = vcmp.lt.s32.totalorder %v677, 0
      %v679 = vsub.s32 0, %v677
      %v680 = vsel %vm678, %v679, %v677
      %v681 = vclz %v680
      %v682 = vsub.s32 %v681, 2
      %vm683 = vcmp.gt.s32.totalorder 0, %v682
      %v684 = vsel %vm683, 0, %v682
      %v685 = vsub.s32 32, %v684
      %v686 = vshll.u32 %v677, %v684
      %v687 = vshrl.u32 %v669, %v685
      %v688 = vor.u32 %v686, %v687
      %v689 = vsub.s32 4294967266, %v684
      %v690 = vadd.s32 %v689, 127
      %v691 = vshll.u32 %v690, 23
      %v692 = vor.u32 4788187, %v691
      %v693 = vand.u32 2147483647, %v692
      %v695 = vcvt.s32.f32 %v688
      %v696 = vmul.f32 %v695, %v693
      %v697 = vxor.u32 %v696, 2147483648
      %v698 = vsel %vm615, %v697, %v696
      %v699 = vsub.s32 4, %v675
      %v700 = vsel %vm615, %v699, %v675
      %v701 = vsel %vm614, %v254, %v698
      %v702 = vsel %vm614, 0, %v700
      %v703 = vcosq.f32.pop %v701
      %v704 = vsinq.f32.pop %v701
      %vm705 = vweird.f32 %v254
      %v706 = vadd.s32 %v702, 3
      %v707 = vand.u32 %v706, 3
      %vm708 = vcmp.lt.s32.totalorder %v707, 2
      %vm709 = vcmp.eq.s32.totalorder %v707, 0
      %v710 = vxor.u32 %v704, 2147483648
      %v711 = vsel %vm709, %v703, %v710
      %vm712 = vcmp.eq.s32.totalorder %v707, 2
      %v713 = vxor.u32 %v703, 2147483648
      %v714 = vsel %vm712, %v713, %v704
      %v715 = vsel %vm708, %v711, %v714
      %v716 = vsel %vm705, nan, %v715
      %v717 = vand.u32 2147483647, %v329
      %vm718 = vcmp.le.f32.partialorder %v717, 0.7853982
      %vm719 = vcmp.lt.s32.totalorder %v329, 0
      %v720 = vand.u32 %v329, 2139095040
      %v721 = vshrl.u32 %v720, 23
      %v722 = vsub.s32 %v721, 127
      %v723 = vand.u32 2147483647, %v329
      %v724 = vand.u32 %v723, 8388607
      %v725 = vor.u32 %v724, 8388608
      %v726 = vsub.s32 0, %v725
      %v727 = vadd.s32 %v722, 1
      %vm728 = vcmp.gt.s32.totalorder %v727, 0
      %v729 = vsel %vm728, %v727, 0
      %v730 = vshrl.u32 %v729, 5
      %v731 = vand.u32 %v729, 31
      %v732 = vsub.s32 32, %v731
      %v733 = vshrl.u32 683565275, %v732
      %v734 = vshll.u32 683565275, %v731
      %v735 = vshrl.u32 2475754826, %v732
      %v736 = vor.u32 %v734, %v735
      %v737 = vshll.u32 2475754826, %v731
      %v738 = vshrl.u32 2131351028, %v732
      %v739 = vor.u32 %v737, %v738
      %v740 = vshll.u32 2131351028, %v731
      %v741 = vshrl.u32 2102212464, %v732
      %v742 = vor.u32 %v740, %v741
      %v743 = vshll.u32 2102212464, %v731
      %v744 = vshrl.u32 920167782, %v732
      %v745 = vor.u32 %v743, %v744
      %v746 = vshll.u32 920167782, %v731
      %v747 = vshrl.u32 1326507024, %v732
      %v748 = vor.u32 %v746, %v747
      %vm749 = vcmp.lt.s32.totalorder %v730, 1
      %vm750 = vcmp.lt.s32.totalorder %v730, 2
      %vm751 = vcmp.lt.s32.totalorder %v730, 3
      %vm752 = vcmp.lt.s32.totalorder %v730, 4
      %v753 = vsel %vm749, %v733, %v736
      %v754 = vsel %vm752, %v742, 2102212464
      %v755 = vsel %vm751, %v739, %v754
      %v756 = vsel %vm750, %v753, %v755
      %v757 = vsel %vm749, %v736, %v739
      %v758 = vsel %vm752, %v745, 920167782
      %v759 = vsel %vm751, %v742, %v758
      %v760 = vsel %vm750, %v757, %v759
      %v761 = vsel %vm749, %v739, %v742
      %v762 = vsel %vm752, %v748, 1326507024
      %v763 = vsel %vm751, %v745, %v762
      %v764 = vsel %vm750, %v761, %v763
      %v765 = vshll.u32 %v725, 8
      %v766 = vmul.u32.u64.compose %v765, %v764
      %v767 = vextract.low.u32 %v766
      %v768 = vextract.high.u32 %v766
      %v769 = vmul.u32.u64.compose %v765, %v760
      %v770 = vextract.low.u32 %v769
      %v771 = vextract.high.u32 %v769
      %v772 = vmul.u32 %v765, %v756
      %v773 = vadd.s32 %v768, %v770
      %vm774 = vc.u32 %v768, %v770
      %v775 = vadd.s32 %v771, 1
      %v776 = vsel %vm774, %v775, %v771
      %v777 = vadd.s32 %v772, %v776
      %v778 = vadd.s32 %v777, 536870912
      %v779 = vshrl.u32 %v778, 30
      %v780 = vshll.u32 %v779, 30
      %v781 = vsub.s32 %v777, %v780
      %vm782 = vcmp.lt.s32.totalorder %v781, 0
      %v783 = vsub.s32 0, %v781
      %v784 = vsel %vm782, %v783, %v781
      %v785 = vclz %v784
      %v786 = vsub.s32 %v785, 2
      %vm787 = vcmp.gt.s32.totalorder 0, %v786
      %v788 = vsel %vm787, 0, %v786
      %v789 = vsub.s32 32, %v788
      %v790 = vshll.u32 %v781, %v788
      %v791 = vshrl.u32 %v773, %v789
      %v792 = vor.u32 %v790, %v791
      %v793 = vsub.s32 4294967266, %v788
      %v794 = vadd.s32 %v793, 127
      %v795 = vshll.u32 %v794, 23
      %v796 = vor.u32 4788187, %v795
      %v797 = vand.u32 2147483647, %v796
      %v799 = vcvt.s32.f32 %v792
      %v800 = vmul.f32 %v799, %v797
      %v801 = vxor.u32 %v800, 2147483648
      %v802 = vsel %vm719, %v801, %v800
      %v803 = vsub.s32 4, %v779
      %v804 = vsel %vm719, %v803, %v779
      %v805 = vsel %vm718, %v329, %v802
      %v806 = vsel %vm718, 0, %v804
      %v807 = vcosq.f32.pop %v805
      %v808 = vsinq.f32.pop %v805
      %vm809 = vweird.f32 %v329
      %v810 = vadd.s32 %v806, 3
      %v811 = vand.u32 %v810, 3
      %vm812 = vcmp.lt.s32.totalorder %v811, 2
      %vm813 = vcmp.eq.s32.totalorder %v811, 0
      %v814 = vxor.u32 %v808, 2147483648
      %v815 = vsel %vm813, %v807, %v814
      %vm816 = vcmp.eq.s32.totalorder %v811, 2
      %v817 = vxor.u32 %v807, 2147483648
      %v818 = vsel %vm816, %v817, %v808
      %v819 = vsel %vm812, %v815, %v818
      %v820 = vsel %vm809, nan, %v819
      %v821 = vand.u32 2147483647, %v331
      %vm822 = vcmp.le.f32.partialorder %v821, 0.7853982
      %vm823 = vcmp.lt.s32.totalorder %v331, 0
      %v824 = vand.u32 %v331, 2139095040
      %v825 = vshrl.u32 %v824, 23
      %v826 = vsub.s32 %v825, 127
      %v827 = vand.u32 2147483647, %v331
      %v828 = vand.u32 %v827, 8388607
      %v829 = vor.u32 %v828, 8388608
      %v830 = vsub.s32 0, %v829
      %v831 = vadd.s32 %v826, 1
      %vm832 = vcmp.gt.s32.totalorder %v831, 0
      %v833 = vsel %vm832, %v831, 0
      %v834 = vshrl.u32 %v833, 5
      %v835 = vand.u32 %v833, 31
      %v836 = vsub.s32 32, %v835
      %v837 = vshrl.u32 683565275, %v836
      %v838 = vshll.u32 683565275, %v835
      %v839 = vshrl.u32 2475754826, %v836
      %v840 = vor.u32 %v838, %v839
      %v841 = vshll.u32 2475754826, %v835
      %v842 = vshrl.u32 2131351028, %v836
      %v843 = vor.u32 %v841, %v842
      %v844 = vshll.u32 2131351028, %v835
      %v845 = vshrl.u32 2102212464, %v836
      %v846 = vor.u32 %v844, %v845
      %v847 = vshll.u32 2102212464, %v835
      %v848 = vshrl.u32 920167782, %v836
      %v849 = vor.u32 %v847, %v848
      %v850 = vshll.u32 920167782, %v835
      %v851 = vshrl.u32 1326507024, %v836
      %v852 = vor.u32 %v850, %v851
      %vm853 = vcmp.lt.s32.totalorder %v834, 1
      %vm854 = vcmp.lt.s32.totalorder %v834, 2
      %vm855 = vcmp.lt.s32.totalorder %v834, 3
      %vm856 = vcmp.lt.s32.totalorder %v834, 4
      %v857 = vsel %vm853, %v837, %v840
      %v858 = vsel %vm856, %v846, 2102212464
      %v859 = vsel %vm855, %v843, %v858
      %v860 = vsel %vm854, %v857, %v859
      %v861 = vsel %vm853, %v840, %v843
      %v862 = vsel %vm856, %v849, 920167782
      %v863 = vsel %vm855, %v846, %v862
      %v864 = vsel %vm854, %v861, %v863
      %v865 = vsel %vm853, %v843, %v846
      %v866 = vsel %vm856, %v852, 1326507024
      %v867 = vsel %vm855, %v849, %v866
      %v868 = vsel %vm854, %v865, %v867
      %v869 = vshll.u32 %v829, 8
      %v870 = vmul.u32.u64.compose %v869, %v868
      %v871 = vextract.low.u32 %v870
      %v872 = vextract.high.u32 %v870
      %v873 = vmul.u32.u64.compose %v869, %v864
      %v874 = vextract.low.u32 %v873
      %v875 = vextract.high.u32 %v873
      %v876 = vmul.u32 %v869, %v860
      %v877 = vadd.s32 %v872, %v874
      %vm878 = vc.u32 %v872, %v874
      %v879 = vadd.s32 %v875, 1
      %v880 = vsel %vm878, %v879, %v875
      %v881 = vadd.s32 %v876, %v880
      %v882 = vadd.s32 %v881, 536870912
      %v883 = vshrl.u32 %v882, 30
      %v884 = vshll.u32 %v883, 30
      %v885 = vsub.s32 %v881, %v884
      %vm886 = vcmp.lt.s32.totalorder %v885, 0
      %v887 = vsub.s32 0, %v885
      %v888 = vsel %vm886, %v887, %v885
      %v889 = vclz %v888
      %v890 = vsub.s32 %v889, 2
      %vm891 = vcmp.gt.s32.totalorder 0, %v890
      %v892 = vsel %vm891, 0, %v890
      %v893 = vsub.s32 32, %v892
      %v894 = vshll.u32 %v885, %v892
      %v895 = vshrl.u32 %v877, %v893
      %v896 = vor.u32 %v894, %v895
      %v897 = vsub.s32 4294967266, %v892
      %v898 = vadd.s32 %v897, 127
      %v899 = vshll.u32 %v898, 23
      %v900 = vor.u32 4788187, %v899
      %v901 = vand.u32 2147483647, %v900
      %v903 = vcvt.s32.f32 %v896
      %v904 = vmul.f32 %v903, %v901
      %v905 = vxor.u32 %v904, 2147483648
      %v906 = vsel %vm823, %v905, %v904
      %v907 = vsub.s32 4, %v883
      %v908 = vsel %vm823, %v907, %v883
      %v909 = vsel %vm822, %v331, %v906
      %v910 = vsel %vm822, 0, %v908
      %v911 = vcosq.f32.pop %v909
      %v912 = vsinq.f32.pop %v909
      %vm913 = vweird.f32 %v331
      %v914 = vadd.s32 %v910, 3
      %v915 = vand.u32 %v914, 3
      %vm916 = vcmp.lt.s32.totalorder %v915, 2
      %vm917 = vcmp.eq.s32.totalorder %v915, 0
      %v918 = vxor.u32 %v912, 2147483648
      %v919 = vsel %vm917, %v911, %v918
      %vm920 = vcmp.eq.s32.totalorder %v915, 2
      %v921 = vxor.u32 %v911, 2147483648
      %v922 = vsel %vm920, %v921, %v912
      %v923 = vsel %vm916, %v919, %v922
      %v924 = vsel %vm913, nan, %v923
      %v925 = vand.u32 2147483647, %v406
      %vm926 = vcmp.le.f32.partialorder %v925, 0.7853982
      %vm927 = vcmp.lt.s32.totalorder %v406, 0
      %v928 = vand.u32 %v406, 2139095040
      %v929 = vshrl.u32 %v928, 23
      %v930 = vsub.s32 %v929, 127
      %v931 = vand.u32 2147483647, %v406
      %v932 = vand.u32 %v931, 8388607
      %v933 = vor.u32 %v932, 8388608
      %v934 = vsub.s32 0, %v933
      %v935 = vadd.s32 %v930, 1
      %vm936 = vcmp.gt.s32.totalorder %v935, 0
      %v937 = vsel %vm936, %v935, 0
      %v938 = vshrl.u32 %v937, 5
      %v939 = vand.u32 %v937, 31
      %v940 = vsub.s32 32, %v939
      %v941 = vshrl.u32 683565275, %v940
      %v942 = vshll.u32 683565275, %v939
      %v943 = vshrl.u32 2475754826, %v940
      %v944 = vor.u32 %v942, %v943
      %v945 = vshll.u32 2475754826, %v939
      %v946 = vshrl.u32 2131351028, %v940
      %v947 = vor.u32 %v945, %v946
      %v948 = vshll.u32 2131351028, %v939
      %v949 = vshrl.u32 2102212464, %v940
      %v950 = vor.u32 %v948, %v949
      %v951 = vshll.u32 2102212464, %v939
      %v952 = vshrl.u32 920167782, %v940
      %v953 = vor.u32 %v951, %v952
      %v954 = vshll.u32 920167782, %v939
      %v955 = vshrl.u32 1326507024, %v940
      %v956 = vor.u32 %v954, %v955
      %vm957 = vcmp.lt.s32.totalorder %v938, 1
      %vm958 = vcmp.lt.s32.totalorder %v938, 2
      %vm959 = vcmp.lt.s32.totalorder %v938, 3
      %vm960 = vcmp.lt.s32.totalorder %v938, 4
      %v961 = vsel %vm957, %v941, %v944
      %v962 = vsel %vm960, %v950, 2102212464
      %v963 = vsel %vm959, %v947, %v962
      %v964 = vsel %vm958, %v961, %v963
      %v965 = vsel %vm957, %v944, %v947
      %v966 = vsel %vm960, %v953, 920167782
      %v967 = vsel %vm959, %v950, %v966
      %v968 = vsel %vm958, %v965, %v967
      %v969 = vsel %vm957, %v947, %v950
      %v970 = vsel %vm960, %v956, 1326507024
      %v971 = vsel %vm959, %v953, %v970
      %v972 = vsel %vm958, %v969, %v971
      %v973 = vshll.u32 %v933, 8
      %v974 = vmul.u32.u64.compose %v973, %v972
      %v975 = vextract.low.u32 %v974
      %v976 = vextract.high.u32 %v974
      %v977 = vmul.u32.u64.compose %v973, %v968
      %v978 = vextract.low.u32 %v977
      %v979 = vextract.high.u32 %v977
      %v980 = vmul.u32 %v973, %v964
      %v981 = vadd.s32 %v976, %v978
      %vm982 = vc.u32 %v976, %v978
      %v983 = vadd.s32 %v979, 1
      %v984 = vsel %vm982, %v983, %v979
      %v985 = vadd.s32 %v980, %v984
      %v986 = vadd.s32 %v985, 536870912
      %v987 = vshrl.u32 %v986, 30
      %v988 = vshll.u32 %v987, 30
      %v989 = vsub.s32 %v985, %v988
      %vm990 = vcmp.lt.s32.totalorder %v989, 0
      %v991 = vsub.s32 0, %v989
      %v992 = vsel %vm990, %v991, %v989
      %v993 = vclz %v992
      %v994 = vsub.s32 %v993, 2
      %vm995 = vcmp.gt.s32.totalorder 0, %v994
      %v996 = vsel %vm995, 0, %v994
      %v997 = vsub.s32 32, %v996
      %v998 = vshll.u32 %v989, %v996
      %v999 = vshrl.u32 %v981, %v997
      %v1000 = vor.u32 %v998, %v999
      %v1001 = vsub.s32 4294967266, %v996
      %v1002 = vadd.s32 %v1001, 127
      %v1003 = vshll.u32 %v1002, 23
      %v1004 = vor.u32 4788187, %v1003
      %v1005 = vand.u32 2147483647, %v1004
      %v1007 = vcvt.s32.f32 %v1000
      %v1008 = vmul.f32 %v1007, %v1005
      %v1009 = vxor.u32 %v1008, 2147483648
      %v1010 = vsel %vm927, %v1009, %v1008
      %v1011 = vsub.s32 4, %v987
      %v1012 = vsel %vm927, %v1011, %v987
      %v1013 = vsel %vm926, %v406, %v1010
      %v1014 = vsel %vm926, 0, %v1012
      %v1015 = vcosq.f32.pop %v1013
      %v1016 = vsinq.f32.pop %v1013
      %vm1017 = vweird.f32 %v406
      %v1018 = vadd.s32 %v1014, 3
      %v1019 = vand.u32 %v1018, 3
      %vm1020 = vcmp.lt.s32.totalorder %v1019, 2
      %vm1021 = vcmp.eq.s32.totalorder %v1019, 0
      %v1022 = vxor.u32 %v1016, 2147483648
      %v1023 = vsel %vm1021, %v1015, %v1022
      %vm1024 = vcmp.eq.s32.totalorder %v1019, 2
      %v1025 = vxor.u32 %v1015, 2147483648
      %v1026 = vsel %vm1024, %v1025, %v1016
      %v1027 = vsel %vm1020, %v1023, %v1026
      %v1028 = vsel %vm1017, nan, %v1027
      %v1029 = vand.u32 2147483647, %v408
      %vm1030 = vcmp.le.f32.partialorder %v1029, 0.7853982
      %vm1031 = vcmp.lt.s32.totalorder %v408, 0
      %v1032 = vand.u32 %v408, 2139095040
      %v1033 = vshrl.u32 %v1032, 23
      %v1034 = vsub.s32 %v1033, 127
      %v1035 = vand.u32 2147483647, %v408
      %v1036 = vand.u32 %v1035, 8388607
      %v1037 = vor.u32 %v1036, 8388608
      %v1038 = vsub.s32 0, %v1037
      %v1039 = vadd.s32 %v1034, 1
      %vm1040 = vcmp.gt.s32.totalorder %v1039, 0
      %v1041 = vsel %vm1040, %v1039, 0
      %v1042 = vshrl.u32 %v1041, 5
      %v1043 = vand.u32 %v1041, 31
      %v1044 = vsub.s32 32, %v1043
      %v1045 = vshrl.u32 683565275, %v1044
      %v1046 = vshll.u32 683565275, %v1043
      %v1047 = vshrl.u32 2475754826, %v1044
      %v1048 = vor.u32 %v1046, %v1047
      %v1049 = vshll.u32 2475754826, %v1043
      %v1050 = vshrl.u32 2131351028, %v1044
      %v1051 = vor.u32 %v1049, %v1050
      %v1052 = vshll.u32 2131351028, %v1043
      %v1053 = vshrl.u32 2102212464, %v1044
      %v1054 = vor.u32 %v1052, %v1053
      %v1055 = vshll.u32 2102212464, %v1043
      %v1056 = vshrl.u32 920167782, %v1044
      %v1057 = vor.u32 %v1055, %v1056
      %v1058 = vshll.u32 920167782, %v1043
      %v1059 = vshrl.u32 1326507024, %v1044
      %v1060 = vor.u32 %v1058, %v1059
      %vm1061 = vcmp.lt.s32.totalorder %v1042, 1
      %vm1062 = vcmp.lt.s32.totalorder %v1042, 2
      %vm1063 = vcmp.lt.s32.totalorder %v1042, 3
      %vm1064 = vcmp.lt.s32.totalorder %v1042, 4
      %v1065 = vsel %vm1061, %v1045, %v1048
      %v1066 = vsel %vm1064, %v1054, 2102212464
      %v1067 = vsel %vm1063, %v1051, %v1066
      %v1068 = vsel %vm1062, %v1065, %v1067
      %v1069 = vsel %vm1061, %v1048, %v1051
      %v1070 = vsel %vm1064, %v1057, 920167782
      %v1071 = vsel %vm1063, %v1054, %v1070
      %v1072 = vsel %vm1062, %v1069, %v1071
      %v1073 = vsel %vm1061, %v1051, %v1054
      %v1074 = vsel %vm1064, %v1060, 1326507024
      %v1075 = vsel %vm1063, %v1057, %v1074
      %v1076 = vsel %vm1062, %v1073, %v1075
      %v1077 = vshll.u32 %v1037, 8
      %v1078 = vmul.u32.u64.compose %v1077, %v1076
      %v1079 = vextract.low.u32 %v1078
      %v1080 = vextract.high.u32 %v1078
      %v1081 = vmul.u32.u64.compose %v1077, %v1072
      %v1082 = vextract.low.u32 %v1081
      %v1083 = vextract.high.u32 %v1081
      %v1084 = vmul.u32 %v1077, %v1068
      %v1085 = vadd.s32 %v1080, %v1082
      %vm1086 = vc.u32 %v1080, %v1082
      %v1087 = vadd.s32 %v1083, 1
      %v1088 = vsel %vm1086, %v1087, %v1083
      %v1089 = vadd.s32 %v1084, %v1088
      %v1090 = vadd.s32 %v1089, 536870912
      %v1091 = vshrl.u32 %v1090, 30
      %v1092 = vshll.u32 %v1091, 30
      %v1093 = vsub.s32 %v1089, %v1092
      %vm1094 = vcmp.lt.s32.totalorder %v1093, 0
      %v1095 = vsub.s32 0, %v1093
      %v1096 = vsel %vm1094, %v1095, %v1093
      %v1097 = vclz %v1096
      %v1098 = vsub.s32 %v1097, 2
      %vm1099 = vcmp.gt.s32.totalorder 0, %v1098
      %v1100 = vsel %vm1099, 0, %v1098
      %v1101 = vsub.s32 32, %v1100
      %v1102 = vshll.u32 %v1093, %v1100
      %v1103 = vshrl.u32 %v1085, %v1101
      %v1104 = vor.u32 %v1102, %v1103
      %v1105 = vsub.s32 4294967266, %v1100
      %v1106 = vadd.s32 %v1105, 127
      %v1107 = vshll.u32 %v1106, 23
      %v1108 = vor.u32 4788187, %v1107
      %v1109 = vand.u32 2147483647, %v1108
      %v1111 = vcvt.s32.f32 %v1104
      %v1112 = vmul.f32 %v1111, %v1109
      %v1113 = vxor.u32 %v1112, 2147483648
      %v1114 = vsel %vm1031, %v1113, %v1112
      %v1115 = vsub.s32 4, %v1091
      %v1116 = vsel %vm1031, %v1115, %v1091
      %v1117 = vsel %vm1030, %v408, %v1114
      %v1118 = vsel %vm1030, 0, %v1116
      %v1119 = vcosq.f32.pop %v1117
      %v1120 = vsinq.f32.pop %v1117
      %vm1121 = vweird.f32 %v408
      %v1122 = vadd.s32 %v1118, 3
      %v1123 = vand.u32 %v1122, 3
      %vm1124 = vcmp.lt.s32.totalorder %v1123, 2
      %vm1125 = vcmp.eq.s32.totalorder %v1123, 0
      %v1126 = vxor.u32 %v1120, 2147483648
      %v1127 = vsel %vm1125, %v1119, %v1126
      %vm1128 = vcmp.eq.s32.totalorder %v1123, 2
      %v1129 = vxor.u32 %v1119, 2147483648
      %v1130 = vsel %vm1128, %v1129, %v1120
      %v1131 = vsel %vm1124, %v1127, %v1130
      %v1132 = vsel %vm1121, nan, %v1131
      %v1133 = vand.u32 2147483647, %v483
      %vm1134 = vcmp.le.f32.partialorder %v1133, 0.7853982
      %vm1135 = vcmp.lt.s32.totalorder %v483, 0
      %v1136 = vand.u32 %v483, 2139095040
      %v1137 = vshrl.u32 %v1136, 23
      %v1138 = vsub.s32 %v1137, 127
      %v1139 = vand.u32 2147483647, %v483
      %v1140 = vand.u32 %v1139, 8388607
      %v1141 = vor.u32 %v1140, 8388608
      %v1142 = vsub.s32 0, %v1141
      %v1143 = vadd.s32 %v1138, 1
      %vm1144 = vcmp.gt.s32.totalorder %v1143, 0
      %v1145 = vsel %vm1144, %v1143, 0
      %v1146 = vshrl.u32 %v1145, 5
      %v1147 = vand.u32 %v1145, 31
      %v1148 = vsub.s32 32, %v1147
      %v1149 = vshrl.u32 683565275, %v1148
      %v1150 = vshll.u32 683565275, %v1147
      %v1151 = vshrl.u32 2475754826, %v1148
      %v1152 = vor.u32 %v1150, %v1151
      %v1153 = vshll.u32 2475754826, %v1147
      %v1154 = vshrl.u32 2131351028, %v1148
      %v1155 = vor.u32 %v1153, %v1154
      %v1156 = vshll.u32 2131351028, %v1147
      %v1157 = vshrl.u32 2102212464, %v1148
      %v1158 = vor.u32 %v1156, %v1157
      %v1159 = vshll.u32 2102212464, %v1147
      %v1160 = vshrl.u32 920167782, %v1148
      %v1161 = vor.u32 %v1159, %v1160
      %v1162 = vshll.u32 920167782, %v1147
      %v1163 = vshrl.u32 1326507024, %v1148
      %v1164 = vor.u32 %v1162, %v1163
      %vm1165 = vcmp.lt.s32.totalorder %v1146, 1
      %vm1166 = vcmp.lt.s32.totalorder %v1146, 2
      %vm1167 = vcmp.lt.s32.totalorder %v1146, 3
      %vm1168 = vcmp.lt.s32.totalorder %v1146, 4
      %v1169 = vsel %vm1165, %v1149, %v1152
      %v1170 = vsel %vm1168, %v1158, 2102212464
      %v1171 = vsel %vm1167, %v1155, %v1170
      %v1172 = vsel %vm1166, %v1169, %v1171
      %v1173 = vsel %vm1165, %v1152, %v1155
      %v1174 = vsel %vm1168, %v1161, 920167782
      %v1175 = vsel %vm1167, %v1158, %v1174
      %v1176 = vsel %vm1166, %v1173, %v1175
      %v1177 = vsel %vm1165, %v1155, %v1158
      %v1178 = vsel %vm1168, %v1164, 1326507024
      %v1179 = vsel %vm1167, %v1161, %v1178
      %v1180 = vsel %vm1166, %v1177, %v1179
      %v1181 = vshll.u32 %v1141, 8
      %v1182 = vmul.u32.u64.compose %v1181, %v1180
      %v1183 = vextract.low.u32 %v1182
      %v1184 = vextract.high.u32 %v1182
      %v1185 = vmul.u32.u64.compose %v1181, %v1176
      %v1186 = vextract.low.u32 %v1185
      %v1187 = vextract.high.u32 %v1185
      %v1188 = vmul.u32 %v1181, %v1172
      %v1189 = vadd.s32 %v1184, %v1186
      %vm1190 = vc.u32 %v1184, %v1186
      %v1191 = vadd.s32 %v1187, 1
      %v1192 = vsel %vm1190, %v1191, %v1187
      %v1193 = vadd.s32 %v1188, %v1192
      %v1194 = vadd.s32 %v1193, 536870912
      %v1195 = vshrl.u32 %v1194, 30
      %v1196 = vshll.u32 %v1195, 30
      %v1197 = vsub.s32 %v1193, %v1196
      %vm1198 = vcmp.lt.s32.totalorder %v1197, 0
      %v1199 = vsub.s32 0, %v1197
      %v1200 = vsel %vm1198, %v1199, %v1197
      %v1201 = vclz %v1200
      %v1202 = vsub.s32 %v1201, 2
      %vm1203 = vcmp.gt.s32.totalorder 0, %v1202
      %v1204 = vsel %vm1203, 0, %v1202
      %v1205 = vsub.s32 32, %v1204
      %v1206 = vshll.u32 %v1197, %v1204
      %v1207 = vshrl.u32 %v1189, %v1205
      %v1208 = vor.u32 %v1206, %v1207
      %v1209 = vsub.s32 4294967266, %v1204
      %v1210 = vadd.s32 %v1209, 127
      %v1211 = vshll.u32 %v1210, 23
      %v1212 = vor.u32 4788187, %v1211
      %v1213 = vand.u32 2147483647, %v1212
      %v1215 = vcvt.s32.f32 %v1208
      %v1216 = vmul.f32 %v1215, %v1213
      %v1217 = vxor.u32 %v1216, 2147483648
      %v1218 = vsel %vm1135, %v1217, %v1216
      %v1219 = vsub.s32 4, %v1195
      %v1220 = vsel %vm1135, %v1219, %v1195
      %v1221 = vsel %vm1134, %v483, %v1218
      %v1222 = vsel %vm1134, 0, %v1220
      %v1223 = vcosq.f32.pop %v1221
      %v1224 = vsinq.f32.pop %v1221
      %vm1225 = vweird.f32 %v483
      %v1226 = vadd.s32 %v1222, 3
      %v1227 = vand.u32 %v1226, 3
      %vm1228 = vcmp.lt.s32.totalorder %v1227, 2
      %vm1229 = vcmp.eq.s32.totalorder %v1227, 0
      %v1230 = vxor.u32 %v1224, 2147483648
      %v1231 = vsel %vm1229, %v1223, %v1230
      %vm1232 = vcmp.eq.s32.totalorder %v1227, 2
      %v1233 = vxor.u32 %v1223, 2147483648
      %v1234 = vsel %vm1232, %v1233, %v1224
      %v1235 = vsel %vm1228, %v1231, %v1234
      %v1236 = vsel %vm1225, nan, %v1235
      %v1237 = vand.u32 2147483647, %v485
      %vm1238 = vcmp.le.f32.partialorder %v1237, 0.7853982
      %vm1239 = vcmp.lt.s32.totalorder %v485, 0
      %v1240 = vand.u32 %v485, 2139095040
      %v1241 = vshrl.u32 %v1240, 23
      %v1242 = vsub.s32 %v1241, 127
      %v1243 = vand.u32 2147483647, %v485
      %v1244 = vand.u32 %v1243, 8388607
      %v1245 = vor.u32 %v1244, 8388608
      %v1246 = vsub.s32 0, %v1245
      %v1247 = vadd.s32 %v1242, 1
      %vm1248 = vcmp.gt.s32.totalorder %v1247, 0
      %v1249 = vsel %vm1248, %v1247, 0
      %v1250 = vshrl.u32 %v1249, 5
      %v1251 = vand.u32 %v1249, 31
      %v1252 = vsub.s32 32, %v1251
      %v1253 = vshrl.u32 683565275, %v1252
      %v1254 = vshll.u32 683565275, %v1251
      %v1255 = vshrl.u32 2475754826, %v1252
      %v1256 = vor.u32 %v1254, %v1255
      %v1257 = vshll.u32 2475754826, %v1251
      %v1258 = vshrl.u32 2131351028, %v1252
      %v1259 = vor.u32 %v1257, %v1258
      %v1260 = vshll.u32 2131351028, %v1251
      %v1261 = vshrl.u32 2102212464, %v1252
      %v1262 = vor.u32 %v1260, %v1261
      %v1263 = vshll.u32 2102212464, %v1251
      %v1264 = vshrl.u32 920167782, %v1252
      %v1265 = vor.u32 %v1263, %v1264
      %v1266 = vshll.u32 920167782, %v1251
      %v1267 = vshrl.u32 1326507024, %v1252
      %v1268 = vor.u32 %v1266, %v1267
      %vm1269 = vcmp.lt.s32.totalorder %v1250, 1
      %vm1270 = vcmp.lt.s32.totalorder %v1250, 2
      %vm1271 = vcmp.lt.s32.totalorder %v1250, 3
      %vm1272 = vcmp.lt.s32.totalorder %v1250, 4
      %v1273 = vsel %vm1269, %v1253, %v1256
      %v1274 = vsel %vm1272, %v1262, 2102212464
      %v1275 = vsel %vm1271, %v1259, %v1274
      %v1276 = vsel %vm1270, %v1273, %v1275
      %v1277 = vsel %vm1269, %v1256, %v1259
      %v1278 = vsel %vm1272, %v1265, 920167782
      %v1279 = vsel %vm1271, %v1262, %v1278
      %v1280 = vsel %vm1270, %v1277, %v1279
      %v1281 = vsel %vm1269, %v1259, %v1262
      %v1282 = vsel %vm1272, %v1268, 1326507024
      %v1283 = vsel %vm1271, %v1265, %v1282
      %v1284 = vsel %vm1270, %v1281, %v1283
      %v1285 = vshll.u32 %v1245, 8
      %v1286 = vmul.u32.u64.compose %v1285, %v1284
      %v1287 = vextract.low.u32 %v1286
      %v1288 = vextract.high.u32 %v1286
      %v1289 = vmul.u32.u64.compose %v1285, %v1280
      %v1290 = vextract.low.u32 %v1289
      %v1291 = vextract.high.u32 %v1289
      %v1292 = vmul.u32 %v1285, %v1276
      %v1293 = vadd.s32 %v1288, %v1290
      %vm1294 = vc.u32 %v1288, %v1290
      %v1295 = vadd.s32 %v1291, 1
      %v1296 = vsel %vm1294, %v1295, %v1291
      %v1297 = vadd.s32 %v1292, %v1296
      %v1298 = vadd.s32 %v1297, 536870912
      %v1299 = vshrl.u32 %v1298, 30
      %v1300 = vshll.u32 %v1299, 30
      %v1301 = vsub.s32 %v1297, %v1300
      %vm1302 = vcmp.lt.s32.totalorder %v1301, 0
      %v1303 = vsub.s32 0, %v1301
      %v1304 = vsel %vm1302, %v1303, %v1301
      %v1305 = vclz %v1304
      %v1306 = vsub.s32 %v1305, 2
      %vm1307 = vcmp.gt.s32.totalorder 0, %v1306
      %v1308 = vsel %vm1307, 0, %v1306
      %v1309 = vsub.s32 32, %v1308
      %v1310 = vshll.u32 %v1301, %v1308
      %v1311 = vshrl.u32 %v1293, %v1309
      %v1312 = vor.u32 %v1310, %v1311
      %v1313 = vsub.s32 4294967266, %v1308
      %v1314 = vadd.s32 %v1313, 127
      %v1315 = vshll.u32 %v1314, 23
      %v1316 = vor.u32 4788187, %v1315
      %v1317 = vand.u32 2147483647, %v1316
      %v1319 = vcvt.s32.f32 %v1312
      %v1320 = vmul.f32 %v1319, %v1317
      %v1321 = vxor.u32 %v1320, 2147483648
      %v1322 = vsel %vm1239, %v1321, %v1320
      %v1323 = vsub.s32 4, %v1299
      %v1324 = vsel %vm1239, %v1323, %v1299
      %v1325 = vsel %vm1238, %v485, %v1322
      %v1326 = vsel %vm1238, 0, %v1324
      %v1327 = vcosq.f32.pop %v1325
      %v1328 = vsinq.f32.pop %v1325
      %vm1329 = vweird.f32 %v485
      %v1330 = vadd.s32 %v1326, 3
      %v1331 = vand.u32 %v1330, 3
      %vm1332 = vcmp.lt.s32.totalorder %v1331, 2
      %vm1333 = vcmp.eq.s32.totalorder %v1331, 0
      %v1334 = vxor.u32 %v1328, 2147483648
      %v1335 = vsel %vm1333, %v1327, %v1334
      %vm1336 = vcmp.eq.s32.totalorder %v1331, 2
      %v1337 = vxor.u32 %v1327, 2147483648
      %v1338 = vsel %vm1336, %v1337, %v1328
      %v1339 = vsel %vm1332, %v1335, %v1338
      %v1340 = vsel %vm1329, nan, %v1339
      %v1341 = vand.u32 2147483647, %v258
      %vm1342 = vcmp.le.f32.partialorder %v1341, 0.7853982
      %vm1343 = vcmp.lt.s32.totalorder %v258, 0
      %v1344 = vand.u32 %v258, 2139095040
      %v1345 = vshrl.u32 %v1344, 23
      %v1346 = vsub.s32 %v1345, 127
      %v1347 = vand.u32 2147483647, %v258
      %v1348 = vand.u32 %v1347, 8388607
      %v1349 = vor.u32 %v1348, 8388608
      %v1350 = vsub.s32 0, %v1349
      %v1351 = vadd.s32 %v1346, 1
      %vm1352 = vcmp.gt.s32.totalorder %v1351, 0
      %v1353 = vsel %vm1352, %v1351, 0
      %v1354 = vshrl.u32 %v1353, 5
      %v1355 = vand.u32 %v1353, 31
      %v1356 = vsub.s32 32, %v1355
      %v1357 = vshrl.u32 683565275, %v1356
      %v1358 = vshll.u32 683565275, %v1355
      %v1359 = vshrl.u32 2475754826, %v1356
      %v1360 = vor.u32 %v1358, %v1359
      %v1361 = vshll.u32 2475754826, %v1355
      %v1362 = vshrl.u32 2131351028, %v1356
      %v1363 = vor.u32 %v1361, %v1362
      %v1364 = vshll.u32 2131351028, %v1355
      %v1365 = vshrl.u32 2102212464, %v1356
      %v1366 = vor.u32 %v1364, %v1365
      %v1367 = vshll.u32 2102212464, %v1355
      %v1368 = vshrl.u32 920167782, %v1356
      %v1369 = vor.u32 %v1367, %v1368
      %v1370 = vshll.u32 920167782, %v1355
      %v1371 = vshrl.u32 1326507024, %v1356
      %v1372 = vor.u32 %v1370, %v1371
      %vm1373 = vcmp.lt.s32.totalorder %v1354, 1
      %vm1374 = vcmp.lt.s32.totalorder %v1354, 2
      %vm1375 = vcmp.lt.s32.totalorder %v1354, 3
      %vm1376 = vcmp.lt.s32.totalorder %v1354, 4
      %v1377 = vsel %vm1373, %v1357, %v1360
      %v1378 = vsel %vm1376, %v1366, 2102212464
      %v1379 = vsel %vm1375, %v1363, %v1378
      %v1380 = vsel %vm1374, %v1377, %v1379
      %v1381 = vsel %vm1373, %v1360, %v1363
      %v1382 = vsel %vm1376, %v1369, 920167782
      %v1383 = vsel %vm1375, %v1366, %v1382
      %v1384 = vsel %vm1374, %v1381, %v1383
      %v1385 = vsel %vm1373, %v1363, %v1366
      %v1386 = vsel %vm1376, %v1372, 1326507024
      %v1387 = vsel %vm1375, %v1369, %v1386
      %v1388 = vsel %vm1374, %v1385, %v1387
      %v1389 = vshll.u32 %v1349, 8
      %v1390 = vmul.u32.u64.compose %v1389, %v1388
      %v1391 = vextract.low.u32 %v1390
      %v1392 = vextract.high.u32 %v1390
      %v1393 = vmul.u32.u64.compose %v1389, %v1384
      %v1394 = vextract.low.u32 %v1393
      %v1395 = vextract.high.u32 %v1393
      %v1396 = vmul.u32 %v1389, %v1380
      %v1397 = vadd.s32 %v1392, %v1394
      %vm1398 = vc.u32 %v1392, %v1394
      %v1399 = vadd.s32 %v1395, 1
      %v1400 = vsel %vm1398, %v1399, %v1395
      %v1401 = vadd.s32 %v1396, %v1400
      %v1402 = vadd.s32 %v1401, 536870912
      %v1403 = vshrl.u32 %v1402, 30
      %v1404 = vshll.u32 %v1403, 30
      %v1405 = vsub.s32 %v1401, %v1404
      %vm1406 = vcmp.lt.s32.totalorder %v1405, 0
      %v1407 = vsub.s32 0, %v1405
      %v1408 = vsel %vm1406, %v1407, %v1405
      %v1409 = vclz %v1408
      %v1410 = vsub.s32 %v1409, 2
      %vm1411 = vcmp.gt.s32.totalorder 0, %v1410
      %v1412 = vsel %vm1411, 0, %v1410
      %v1413 = vsub.s32 32, %v1412
      %v1414 = vshll.u32 %v1405, %v1412
      %v1415 = vshrl.u32 %v1397, %v1413
      %v1416 = vor.u32 %v1414, %v1415
      %v1417 = vsub.s32 4294967266, %v1412
      %v1418 = vadd.s32 %v1417, 127
      %v1419 = vshll.u32 %v1418, 23
      %v1420 = vor.u32 4788187, %v1419
      %v1421 = vand.u32 2147483647, %v1420
      %v1423 = vcvt.s32.f32 %v1416
      %v1424 = vmul.f32 %v1423, %v1421
      %v1425 = vxor.u32 %v1424, 2147483648
      %v1426 = vsel %vm1343, %v1425, %v1424
      %v1427 = vsub.s32 4, %v1403
      %v1428 = vsel %vm1343, %v1427, %v1403
      %v1429 = vsel %vm1342, %v258, %v1426
      %v1430 = vsel %vm1342, 0, %v1428
      %v1431 = vcosq.f32.pop %v1429
      %v1432 = vsinq.f32.pop %v1429
      %vm1433 = vweird.f32 %v258
      %v1434 = vadd.s32 %v1430, 3
      %v1435 = vand.u32 %v1434, 3
      %vm1436 = vcmp.lt.s32.totalorder %v1435, 2
      %vm1437 = vcmp.eq.s32.totalorder %v1435, 0
      %v1438 = vxor.u32 %v1432, 2147483648
      %v1439 = vsel %vm1437, %v1431, %v1438
      %vm1440 = vcmp.eq.s32.totalorder %v1435, 2
      %v1441 = vxor.u32 %v1431, 2147483648
      %v1442 = vsel %vm1440, %v1441, %v1432
      %v1443 = vsel %vm1436, %v1439, %v1442
      %v1444 = vsel %vm1433, nan, %v1443
      %v1445 = vand.u32 2147483647, %v260
      %vm1446 = vcmp.le.f32.partialorder %v1445, 0.7853982
      %vm1447 = vcmp.lt.s32.totalorder %v260, 0
      %v1448 = vand.u32 %v260, 2139095040
      %v1449 = vshrl.u32 %v1448, 23
      %v1450 = vsub.s32 %v1449, 127
      %v1451 = vand.u32 2147483647, %v260
      %v1452 = vand.u32 %v1451, 8388607
      %v1453 = vor.u32 %v1452, 8388608
      %v1454 = vsub.s32 0, %v1453
      %v1455 = vadd.s32 %v1450, 1
      %vm1456 = vcmp.gt.s32.totalorder %v1455, 0
      %v1457 = vsel %vm1456, %v1455, 0
      %v1458 = vshrl.u32 %v1457, 5
      %v1459 = vand.u32 %v1457, 31
      %v1460 = vsub.s32 32, %v1459
      %v1461 = vshrl.u32 683565275, %v1460
      %v1462 = vshll.u32 683565275, %v1459
      %v1463 = vshrl.u32 2475754826, %v1460
      %v1464 = vor.u32 %v1462, %v1463
      %v1465 = vshll.u32 2475754826, %v1459
      %v1466 = vshrl.u32 2131351028, %v1460
      %v1467 = vor.u32 %v1465, %v1466
      %v1468 = vshll.u32 2131351028, %v1459
      %v1469 = vshrl.u32 2102212464, %v1460
      %v1470 = vor.u32 %v1468, %v1469
      %v1471 = vshll.u32 2102212464, %v1459
      %v1472 = vshrl.u32 920167782, %v1460
      %v1473 = vor.u32 %v1471, %v1472
      %v1474 = vshll.u32 920167782, %v1459
      %v1475 = vshrl.u32 1326507024, %v1460
      %v1476 = vor.u32 %v1474, %v1475
      %vm1477 = vcmp.lt.s32.totalorder %v1458, 1
      %vm1478 = vcmp.lt.s32.totalorder %v1458, 2
      %vm1479 = vcmp.lt.s32.totalorder %v1458, 3
      %vm1480 = vcmp.lt.s32.totalorder %v1458, 4
      %v1481 = vsel %vm1477, %v1461, %v1464
      %v1482 = vsel %vm1480, %v1470, 2102212464
      %v1483 = vsel %vm1479, %v1467, %v1482
      %v1484 = vsel %vm1478, %v1481, %v1483
      %v1485 = vsel %vm1477, %v1464, %v1467
      %v1486 = vsel %vm1480, %v1473, 920167782
      %v1487 = vsel %vm1479, %v1470, %v1486
      %v1488 = vsel %vm1478, %v1485, %v1487
      %v1489 = vsel %vm1477, %v1467, %v1470
      %v1490 = vsel %vm1480, %v1476, 1326507024
      %v1491 = vsel %vm1479, %v1473, %v1490
      %v1492 = vsel %vm1478, %v1489, %v1491
      %v1493 = vshll.u32 %v1453, 8
      %v1494 = vmul.u32.u64.compose %v1493, %v1492
      %v1495 = vextract.low.u32 %v1494
      %v1496 = vextract.high.u32 %v1494
      %v1497 = vmul.u32.u64.compose %v1493, %v1488
      %v1498 = vextract.low.u32 %v1497
      %v1499 = vextract.high.u32 %v1497
      %v1500 = vmul.u32 %v1493, %v1484
      %v1501 = vadd.s32 %v1496, %v1498
      %vm1502 = vc.u32 %v1496, %v1498
      %v1503 = vadd.s32 %v1499, 1
      %v1504 = vsel %vm1502, %v1503, %v1499
      %v1505 = vadd.s32 %v1500, %v1504
      %v1506 = vadd.s32 %v1505, 536870912
      %v1507 = vshrl.u32 %v1506, 30
      %v1508 = vshll.u32 %v1507, 30
      %v1509 = vsub.s32 %v1505, %v1508
      %vm1510 = vcmp.lt.s32.totalorder %v1509, 0
      %v1511 = vsub.s32 0, %v1509
      %v1512 = vsel %vm1510, %v1511, %v1509
      %v1513 = vclz %v1512
      %v1514 = vsub.s32 %v1513, 2
      %vm1515 = vcmp.gt.s32.totalorder 0, %v1514
      %v1516 = vsel %vm1515, 0, %v1514
      %v1517 = vsub.s32 32, %v1516
      %v1518 = vshll.u32 %v1509, %v1516
      %v1519 = vshrl.u32 %v1501, %v1517
      %v1520 = vor.u32 %v1518, %v1519
      %v1521 = vsub.s32 4294967266, %v1516
      %v1522 = vadd.s32 %v1521, 127
      %v1523 = vshll.u32 %v1522, 23
      %v1524 = vor.u32 4788187, %v1523
      %v1525 = vand.u32 2147483647, %v1524
      %v1527 = vcvt.s32.f32 %v1520
      %v1528 = vmul.f32 %v1527, %v1525
      %v1529 = vxor.u32 %v1528, 2147483648
      %v1530 = vsel %vm1447, %v1529, %v1528
      %v1531 = vsub.s32 4, %v1507
      %v1532 = vsel %vm1447, %v1531, %v1507
      %v1533 = vsel %vm1446, %v260, %v1530
      %v1534 = vsel %vm1446, 0, %v1532
      %v1535 = vcosq.f32.pop %v1533
      %v1536 = vsinq.f32.pop %v1533
      %vm1537 = vweird.f32 %v260
      %v1538 = vadd.s32 %v1534, 3
      %v1539 = vand.u32 %v1538, 3
      %vm1540 = vcmp.lt.s32.totalorder %v1539, 2
      %vm1541 = vcmp.eq.s32.totalorder %v1539, 0
      %v1542 = vxor.u32 %v1536, 2147483648
      %v1543 = vsel %vm1541, %v1535, %v1542
      %vm1544 = vcmp.eq.s32.totalorder %v1539, 2
      %v1545 = vxor.u32 %v1535, 2147483648
      %v1546 = vsel %vm1544, %v1545, %v1536
      %v1547 = vsel %vm1540, %v1543, %v1546
      %v1548 = vsel %vm1537, nan, %v1547
      %v1549 = vand.u32 2147483647, %v335
      %vm1550 = vcmp.le.f32.partialorder %v1549, 0.7853982
      %vm1551 = vcmp.lt.s32.totalorder %v335, 0
      %v1552 = vand.u32 %v335, 2139095040
      %v1553 = vshrl.u32 %v1552, 23
      %v1554 = vsub.s32 %v1553, 127
      %v1555 = vand.u32 2147483647, %v335
      %v1556 = vand.u32 %v1555, 8388607
      %v1557 = vor.u32 %v1556, 8388608
      %v1558 = vsub.s32 0, %v1557
      %v1559 = vadd.s32 %v1554, 1
      %vm1560 = vcmp.gt.s32.totalorder %v1559, 0
      %v1561 = vsel %vm1560, %v1559, 0
      %v1562 = vshrl.u32 %v1561, 5
      %v1563 = vand.u32 %v1561, 31
      %v1564 = vsub.s32 32, %v1563
      %v1565 = vshrl.u32 683565275, %v1564
      %v1566 = vshll.u32 683565275, %v1563
      %v1567 = vshrl.u32 2475754826, %v1564
      %v1568 = vor.u32 %v1566, %v1567
      %v1569 = vshll.u32 2475754826, %v1563
      %v1570 = vshrl.u32 2131351028, %v1564
      %v1571 = vor.u32 %v1569, %v1570
      %v1572 = vshll.u32 2131351028, %v1563
      %v1573 = vshrl.u32 2102212464, %v1564
      %v1574 = vor.u32 %v1572, %v1573
      %v1575 = vshll.u32 2102212464, %v1563
      %v1576 = vshrl.u32 920167782, %v1564
      %v1577 = vor.u32 %v1575, %v1576
      %v1578 = vshll.u32 920167782, %v1563
      %v1579 = vshrl.u32 1326507024, %v1564
      %v1580 = vor.u32 %v1578, %v1579
      %vm1581 = vcmp.lt.s32.totalorder %v1562, 1
      %vm1582 = vcmp.lt.s32.totalorder %v1562, 2
      %vm1583 = vcmp.lt.s32.totalorder %v1562, 3
      %vm1584 = vcmp.lt.s32.totalorder %v1562, 4
      %v1585 = vsel %vm1581, %v1565, %v1568
      %v1586 = vsel %vm1584, %v1574, 2102212464
      %v1587 = vsel %vm1583, %v1571, %v1586
      %v1588 = vsel %vm1582, %v1585, %v1587
      %v1589 = vsel %vm1581, %v1568, %v1571
      %v1590 = vsel %vm1584, %v1577, 920167782
      %v1591 = vsel %vm1583, %v1574, %v1590
      %v1592 = vsel %vm1582, %v1589, %v1591
      %v1593 = vsel %vm1581, %v1571, %v1574
      %v1594 = vsel %vm1584, %v1580, 1326507024
      %v1595 = vsel %vm1583, %v1577, %v1594
      %v1596 = vsel %vm1582, %v1593, %v1595
      %v1597 = vshll.u32 %v1557, 8
      %v1598 = vmul.u32.u64.compose %v1597, %v1596
      %v1599 = vextract.low.u32 %v1598
      %v1600 = vextract.high.u32 %v1598
      %v1601 = vmul.u32.u64.compose %v1597, %v1592
      %v1602 = vextract.low.u32 %v1601
      %v1603 = vextract.high.u32 %v1601
      %v1604 = vmul.u32 %v1597, %v1588
      %v1605 = vadd.s32 %v1600, %v1602
      %vm1606 = vc.u32 %v1600, %v1602
      %v1607 = vadd.s32 %v1603, 1
      %v1608 = vsel %vm1606, %v1607, %v1603
      %v1609 = vadd.s32 %v1604, %v1608
      %v1610 = vadd.s32 %v1609, 536870912
      %v1611 = vshrl.u32 %v1610, 30
      %v1612 = vshll.u32 %v1611, 30
      %v1613 = vsub.s32 %v1609, %v1612
      %vm1614 = vcmp.lt.s32.totalorder %v1613, 0
      %v1615 = vsub.s32 0, %v1613
      %v1616 = vsel %vm1614, %v1615, %v1613
      %v1617 = vclz %v1616
      %v1618 = vsub.s32 %v1617, 2
      %vm1619 = vcmp.gt.s32.totalorder 0, %v1618
      %v1620 = vsel %vm1619, 0, %v1618
      %v1621 = vsub.s32 32, %v1620
      %v1622 = vshll.u32 %v1613, %v1620
      %v1623 = vshrl.u32 %v1605, %v1621
      %v1624 = vor.u32 %v1622, %v1623
      %v1625 = vsub.s32 4294967266, %v1620
      %v1626 = vadd.s32 %v1625, 127
      %v1627 = vshll.u32 %v1626, 23
      %v1628 = vor.u32 4788187, %v1627
      %v1629 = vand.u32 2147483647, %v1628
      %v1631 = vcvt.s32.f32 %v1624
      %v1632 = vmul.f32 %v1631, %v1629
      %v1633 = vxor.u32 %v1632, 2147483648
      %v1634 = vsel %vm1551, %v1633, %v1632
      %v1635 = vsub.s32 4, %v1611
      %v1636 = vsel %vm1551, %v1635, %v1611
      %v1637 = vsel %vm1550, %v335, %v1634
      %v1638 = vsel %vm1550, 0, %v1636
      %v1639 = vcosq.f32.pop %v1637
      %v1640 = vsinq.f32.pop %v1637
      %vm1641 = vweird.f32 %v335
      %v1642 = vadd.s32 %v1638, 3
      %v1643 = vand.u32 %v1642, 3
      %vm1644 = vcmp.lt.s32.totalorder %v1643, 2
      %vm1645 = vcmp.eq.s32.totalorder %v1643, 0
      %v1646 = vxor.u32 %v1640, 2147483648
      %v1647 = vsel %vm1645, %v1639, %v1646
      %vm1648 = vcmp.eq.s32.totalorder %v1643, 2
      %v1649 = vxor.u32 %v1639, 2147483648
      %v1650 = vsel %vm1648, %v1649, %v1640
      %v1651 = vsel %vm1644, %v1647, %v1650
      %v1652 = vsel %vm1641, nan, %v1651
      %v1653 = vand.u32 2147483647, %v337
      %vm1654 = vcmp.le.f32.partialorder %v1653, 0.7853982
      %vm1655 = vcmp.lt.s32.totalorder %v337, 0
      %v1656 = vand.u32 %v337, 2139095040
      %v1657 = vshrl.u32 %v1656, 23
      %v1658 = vsub.s32 %v1657, 127
      %v1659 = vand.u32 2147483647, %v337
      %v1660 = vand.u32 %v1659, 8388607
      %v1661 = vor.u32 %v1660, 8388608
      %v1662 = vsub.s32 0, %v1661
      %v1663 = vadd.s32 %v1658, 1
      %vm1664 = vcmp.gt.s32.totalorder %v1663, 0
      %v1665 = vsel %vm1664, %v1663, 0
      %v1666 = vshrl.u32 %v1665, 5
      %v1667 = vand.u32 %v1665, 31
      %v1668 = vsub.s32 32, %v1667
      %v1669 = vshrl.u32 683565275, %v1668
      %v1670 = vshll.u32 683565275, %v1667
      %v1671 = vshrl.u32 2475754826, %v1668
      %v1672 = vor.u32 %v1670, %v1671
      %v1673 = vshll.u32 2475754826, %v1667
      %v1674 = vshrl.u32 2131351028, %v1668
      %v1675 = vor.u32 %v1673, %v1674
      %v1676 = vshll.u32 2131351028, %v1667
      %v1677 = vshrl.u32 2102212464, %v1668
      %v1678 = vor.u32 %v1676, %v1677
      %v1679 = vshll.u32 2102212464, %v1667
      %v1680 = vshrl.u32 920167782, %v1668
      %v1681 = vor.u32 %v1679, %v1680
      %v1682 = vshll.u32 920167782, %v1667
      %v1683 = vshrl.u32 1326507024, %v1668
      %v1684 = vor.u32 %v1682, %v1683
      %vm1685 = vcmp.lt.s32.totalorder %v1666, 1
      %vm1686 = vcmp.lt.s32.totalorder %v1666, 2
      %vm1687 = vcmp.lt.s32.totalorder %v1666, 3
      %vm1688 = vcmp.lt.s32.totalorder %v1666, 4
      %v1689 = vsel %vm1685, %v1669, %v1672
      %v1690 = vsel %vm1688, %v1678, 2102212464
      %v1691 = vsel %vm1687, %v1675, %v1690
      %v1692 = vsel %vm1686, %v1689, %v1691
      %v1693 = vsel %vm1685, %v1672, %v1675
      %v1694 = vsel %vm1688, %v1681, 920167782
      %v1695 = vsel %vm1687, %v1678, %v1694
      %v1696 = vsel %vm1686, %v1693, %v1695
      %v1697 = vsel %vm1685, %v1675, %v1678
      %v1698 = vsel %vm1688, %v1684, 1326507024
      %v1699 = vsel %vm1687, %v1681, %v1698
      %v1700 = vsel %vm1686, %v1697, %v1699
      %v1701 = vshll.u32 %v1661, 8
      %v1702 = vmul.u32.u64.compose %v1701, %v1700
      %v1703 = vextract.low.u32 %v1702
      %v1704 = vextract.high.u32 %v1702
      %v1705 = vmul.u32.u64.compose %v1701, %v1696
      %v1706 = vextract.low.u32 %v1705
      %v1707 = vextract.high.u32 %v1705
      %v1708 = vmul.u32 %v1701, %v1692
      %v1709 = vadd.s32 %v1704, %v1706
      %vm1710 = vc.u32 %v1704, %v1706
      %v1711 = vadd.s32 %v1707, 1
      %v1712 = vsel %vm1710, %v1711, %v1707
      %v1713 = vadd.s32 %v1708, %v1712
      %v1714 = vadd.s32 %v1713, 536870912
      %v1715 = vshrl.u32 %v1714, 30
      %v1716 = vshll.u32 %v1715, 30
      %v1717 = vsub.s32 %v1713, %v1716
      %vm1718 = vcmp.lt.s32.totalorder %v1717, 0
      %v1719 = vsub.s32 0, %v1717
      %v1720 = vsel %vm1718, %v1719, %v1717
      %v1721 = vclz %v1720
      %v1722 = vsub.s32 %v1721, 2
      %vm1723 = vcmp.gt.s32.totalorder 0, %v1722
      %v1724 = vsel %vm1723, 0, %v1722
      %v1725 = vsub.s32 32, %v1724
      %v1726 = vshll.u32 %v1717, %v1724
      %v1727 = vshrl.u32 %v1709, %v1725
      %v1728 = vor.u32 %v1726, %v1727
      %v1729 = vsub.s32 4294967266, %v1724
      %v1730 = vadd.s32 %v1729, 127
      %v1731 = vshll.u32 %v1730, 23
      %v1732 = vor.u32 4788187, %v1731
      %v1733 = vand.u32 2147483647, %v1732
      %v1735 = vcvt.s32.f32 %v1728
      %v1736 = vmul.f32 %v1735, %v1733
      %v1737 = vxor.u32 %v1736, 2147483648
      %v1738 = vsel %vm1655, %v1737, %v1736
      %v1739 = vsub.s32 4, %v1715
      %v1740 = vsel %vm1655, %v1739, %v1715
      %v1741 = vsel %vm1654, %v337, %v1738
      %v1742 = vsel %vm1654, 0, %v1740
      %v1743 = vcosq.f32.pop %v1741
      %v1744 = vsinq.f32.pop %v1741
      %vm1745 = vweird.f32 %v337
      %v1746 = vadd.s32 %v1742, 3
      %v1747 = vand.u32 %v1746, 3
      %vm1748 = vcmp.lt.s32.totalorder %v1747, 2
      %vm1749 = vcmp.eq.s32.totalorder %v1747, 0
      %v1750 = vxor.u32 %v1744, 2147483648
      %v1751 = vsel %vm1749, %v1743, %v1750
      %vm1752 = vcmp.eq.s32.totalorder %v1747, 2
      %v1753 = vxor.u32 %v1743, 2147483648
      %v1754 = vsel %vm1752, %v1753, %v1744
      %v1755 = vsel %vm1748, %v1751, %v1754
      %v1756 = vsel %vm1745, nan, %v1755
      %v1757 = vand.u32 2147483647, %v412
      %vm1758 = vcmp.le.f32.partialorder %v1757, 0.7853982
      %vm1759 = vcmp.lt.s32.totalorder %v412, 0
      %v1760 = vand.u32 %v412, 2139095040
      %v1761 = vshrl.u32 %v1760, 23
      %v1762 = vsub.s32 %v1761, 127
      %v1763 = vand.u32 2147483647, %v412
      %v1764 = vand.u32 %v1763, 8388607
      %v1765 = vor.u32 %v1764, 8388608
      %v1766 = vsub.s32 0, %v1765
      %v1767 = vadd.s32 %v1762, 1
      %vm1768 = vcmp.gt.s32.totalorder %v1767, 0
      %v1769 = vsel %vm1768, %v1767, 0
      %v1770 = vshrl.u32 %v1769, 5
      %v1771 = vand.u32 %v1769, 31
      %v1772 = vsub.s32 32, %v1771
      %v1773 = vshrl.u32 683565275, %v1772
      %v1774 = vshll.u32 683565275, %v1771
      %v1775 = vshrl.u32 2475754826, %v1772
      %v1776 = vor.u32 %v1774, %v1775
      %v1777 = vshll.u32 2475754826, %v1771
      %v1778 = vshrl.u32 2131351028, %v1772
      %v1779 = vor.u32 %v1777, %v1778
      %v1780 = vshll.u32 2131351028, %v1771
      %v1781 = vshrl.u32 2102212464, %v1772
      %v1782 = vor.u32 %v1780, %v1781
      %v1783 = vshll.u32 2102212464, %v1771
      %v1784 = vshrl.u32 920167782, %v1772
      %v1785 = vor.u32 %v1783, %v1784
      %v1786 = vshll.u32 920167782, %v1771
      %v1787 = vshrl.u32 1326507024, %v1772
      %v1788 = vor.u32 %v1786, %v1787
      %vm1789 = vcmp.lt.s32.totalorder %v1770, 1
      %vm1790 = vcmp.lt.s32.totalorder %v1770, 2
      %vm1791 = vcmp.lt.s32.totalorder %v1770, 3
      %vm1792 = vcmp.lt.s32.totalorder %v1770, 4
      %v1793 = vsel %vm1789, %v1773, %v1776
      %v1794 = vsel %vm1792, %v1782, 2102212464
      %v1795 = vsel %vm1791, %v1779, %v1794
      %v1796 = vsel %vm1790, %v1793, %v1795
      %v1797 = vsel %vm1789, %v1776, %v1779
      %v1798 = vsel %vm1792, %v1785, 920167782
      %v1799 = vsel %vm1791, %v1782, %v1798
      %v1800 = vsel %vm1790, %v1797, %v1799
      %v1801 = vsel %vm1789, %v1779, %v1782
      %v1802 = vsel %vm1792, %v1788, 1326507024
      %v1803 = vsel %vm1791, %v1785, %v1802
      %v1804 = vsel %vm1790, %v1801, %v1803
      %v1805 = vshll.u32 %v1765, 8
      %v1806 = vmul.u32.u64.compose %v1805, %v1804
      %v1807 = vextract.low.u32 %v1806
      %v1808 = vextract.high.u32 %v1806
      %v1809 = vmul.u32.u64.compose %v1805, %v1800
      %v1810 = vextract.low.u32 %v1809
      %v1811 = vextract.high.u32 %v1809
      %v1812 = vmul.u32 %v1805, %v1796
      %v1813 = vadd.s32 %v1808, %v1810
      %vm1814 = vc.u32 %v1808, %v1810
      %v1815 = vadd.s32 %v1811, 1
      %v1816 = vsel %vm1814, %v1815, %v1811
      %v1817 = vadd.s32 %v1812, %v1816
      %v1818 = vadd.s32 %v1817, 536870912
      %v1819 = vshrl.u32 %v1818, 30
      %v1820 = vshll.u32 %v1819, 30
      %v1821 = vsub.s32 %v1817, %v1820
      %vm1822 = vcmp.lt.s32.totalorder %v1821, 0
      %v1823 = vsub.s32 0, %v1821
      %v1824 = vsel %vm1822, %v1823, %v1821
      %v1825 = vclz %v1824
      %v1826 = vsub.s32 %v1825, 2
      %vm1827 = vcmp.gt.s32.totalorder 0, %v1826
      %v1828 = vsel %vm1827, 0, %v1826
      %v1829 = vsub.s32 32, %v1828
      %v1830 = vshll.u32 %v1821, %v1828
      %v1831 = vshrl.u32 %v1813, %v1829
      %v1832 = vor.u32 %v1830, %v1831
      %v1833 = vsub.s32 4294967266, %v1828
      %v1834 = vadd.s32 %v1833, 127
      %v1835 = vshll.u32 %v1834, 23
      %v1836 = vor.u32 4788187, %v1835
      %v1837 = vand.u32 2147483647, %v1836
      %v1839 = vcvt.s32.f32 %v1832
      %v1840 = vmul.f32 %v1839, %v1837
      %v1841 = vxor.u32 %v1840, 2147483648
      %v1842 = vsel %vm1759, %v1841, %v1840
      %v1843 = vsub.s32 4, %v1819
      %v1844 = vsel %vm1759, %v1843, %v1819
      %v1845 = vsel %vm1758, %v412, %v1842
      %v1846 = vsel %vm1758, 0, %v1844
      %v1847 = vcosq.f32.pop %v1845
      %v1848 = vsinq.f32.pop %v1845
      %vm1849 = vweird.f32 %v412
      %v1850 = vadd.s32 %v1846, 3
      %v1851 = vand.u32 %v1850, 3
      %vm1852 = vcmp.lt.s32.totalorder %v1851, 2
      %vm1853 = vcmp.eq.s32.totalorder %v1851, 0
      %v1854 = vxor.u32 %v1848, 2147483648
      %v1855 = vsel %vm1853, %v1847, %v1854
      %vm1856 = vcmp.eq.s32.totalorder %v1851, 2
      %v1857 = vxor.u32 %v1847, 2147483648
      %v1858 = vsel %vm1856, %v1857, %v1848
      %v1859 = vsel %vm1852, %v1855, %v1858
      %v1860 = vsel %vm1849, nan, %v1859
      %v1861 = vand.u32 2147483647, %v414
      %vm1862 = vcmp.le.f32.partialorder %v1861, 0.7853982
      %vm1863 = vcmp.lt.s32.totalorder %v414, 0
      %v1864 = vand.u32 %v414, 2139095040
      %v1865 = vshrl.u32 %v1864, 23
      %v1866 = vsub.s32 %v1865, 127
      %v1867 = vand.u32 2147483647, %v414
      %v1868 = vand.u32 %v1867, 8388607
      %v1869 = vor.u32 %v1868, 8388608
      %v1870 = vsub.s32 0, %v1869
      %v1871 = vadd.s32 %v1866, 1
      %vm1872 = vcmp.gt.s32.totalorder %v1871, 0
      %v1873 = vsel %vm1872, %v1871, 0
      %v1874 = vshrl.u32 %v1873, 5
      %v1875 = vand.u32 %v1873, 31
      %v1876 = vsub.s32 32, %v1875
      %v1877 = vshrl.u32 683565275, %v1876
      %v1878 = vshll.u32 683565275, %v1875
      %v1879 = vshrl.u32 2475754826, %v1876
      %v1880 = vor.u32 %v1878, %v1879
      %v1881 = vshll.u32 2475754826, %v1875
      %v1882 = vshrl.u32 2131351028, %v1876
      %v1883 = vor.u32 %v1881, %v1882
      %v1884 = vshll.u32 2131351028, %v1875
      %v1885 = vshrl.u32 2102212464, %v1876
      %v1886 = vor.u32 %v1884, %v1885
      %v1887 = vshll.u32 2102212464, %v1875
      %v1888 = vshrl.u32 920167782, %v1876
      %v1889 = vor.u32 %v1887, %v1888
      %v1890 = vshll.u32 920167782, %v1875
      %v1891 = vshrl.u32 1326507024, %v1876
      %v1892 = vor.u32 %v1890, %v1891
      %vm1893 = vcmp.lt.s32.totalorder %v1874, 1
      %vm1894 = vcmp.lt.s32.totalorder %v1874, 2
      %vm1895 = vcmp.lt.s32.totalorder %v1874, 3
      %vm1896 = vcmp.lt.s32.totalorder %v1874, 4
      %v1897 = vsel %vm1893, %v1877, %v1880
      %v1898 = vsel %vm1896, %v1886, 2102212464
      %v1899 = vsel %vm1895, %v1883, %v1898
      %v1900 = vsel %vm1894, %v1897, %v1899
      %v1901 = vsel %vm1893, %v1880, %v1883
      %v1902 = vsel %vm1896, %v1889, 920167782
      %v1903 = vsel %vm1895, %v1886, %v1902
      %v1904 = vsel %vm1894, %v1901, %v1903
      %v1905 = vsel %vm1893, %v1883, %v1886
      %v1906 = vsel %vm1896, %v1892, 1326507024
      %v1907 = vsel %vm1895, %v1889, %v1906
      %v1908 = vsel %vm1894, %v1905, %v1907
      %v1909 = vshll.u32 %v1869, 8
      %v1910 = vmul.u32.u64.compose %v1909, %v1908
      %v1911 = vextract.low.u32 %v1910
      %v1912 = vextract.high.u32 %v1910
      %v1913 = vmul.u32.u64.compose %v1909, %v1904
      %v1914 = vextract.low.u32 %v1913
      %v1915 = vextract.high.u32 %v1913
      %v1916 = vmul.u32 %v1909, %v1900
      %v1917 = vadd.s32 %v1912, %v1914
      %vm1918 = vc.u32 %v1912, %v1914
      %v1919 = vadd.s32 %v1915, 1
      %v1920 = vsel %vm1918, %v1919, %v1915
      %v1921 = vadd.s32 %v1916, %v1920
      %v1922 = vadd.s32 %v1921, 536870912
      %v1923 = vshrl.u32 %v1922, 30
      %v1924 = vshll.u32 %v1923, 30
      %v1925 = vsub.s32 %v1921, %v1924
      %vm1926 = vcmp.lt.s32.totalorder %v1925, 0
      %v1927 = vsub.s32 0, %v1925
      %v1928 = vsel %vm1926, %v1927, %v1925
      %v1929 = vclz %v1928
      %v1930 = vsub.s32 %v1929, 2
      %vm1931 = vcmp.gt.s32.totalorder 0, %v1930
      %v1932 = vsel %vm1931, 0, %v1930
      %v1933 = vsub.s32 32, %v1932
      %v1934 = vshll.u32 %v1925, %v1932
      %v1935 = vshrl.u32 %v1917, %v1933
      %v1936 = vor.u32 %v1934, %v1935
      %v1937 = vsub.s32 4294967266, %v1932
      %v1938 = vadd.s32 %v1937, 127
      %v1939 = vshll.u32 %v1938, 23
      %v1940 = vor.u32 4788187, %v1939
      %v1941 = vand.u32 2147483647, %v1940
      %v1943 = vcvt.s32.f32 %v1936
      %v1944 = vmul.f32 %v1943, %v1941
      %v1945 = vxor.u32 %v1944, 2147483648
      %v1946 = vsel %vm1863, %v1945, %v1944
      %v1947 = vsub.s32 4, %v1923
      %v1948 = vsel %vm1863, %v1947, %v1923
      %v1949 = vsel %vm1862, %v414, %v1946
      %v1950 = vsel %vm1862, 0, %v1948
      %v1951 = vcosq.f32.pop %v1949
      %v1952 = vsinq.f32.pop %v1949
      %vm1953 = vweird.f32 %v414
      %v1954 = vadd.s32 %v1950, 3
      %v1955 = vand.u32 %v1954, 3
      %vm1956 = vcmp.lt.s32.totalorder %v1955, 2
      %vm1957 = vcmp.eq.s32.totalorder %v1955, 0
      %v1958 = vxor.u32 %v1952, 2147483648
      %v1959 = vsel %vm1957, %v1951, %v1958
      %vm1960 = vcmp.eq.s32.totalorder %v1955, 2
      %v1961 = vxor.u32 %v1951, 2147483648
      %v1962 = vsel %vm1960, %v1961, %v1952
      %v1963 = vsel %vm1956, %v1959, %v1962
      %v1964 = vsel %vm1953, nan, %v1963
      %v1965 = vand.u32 2147483647, %v489
      %vm1966 = vcmp.le.f32.partialorder %v1965, 0.7853982
      %vm1967 = vcmp.lt.s32.totalorder %v489, 0
      %v1968 = vand.u32 %v489, 2139095040
      %v1969 = vshrl.u32 %v1968, 23
      %v1970 = vsub.s32 %v1969, 127
      %v1971 = vand.u32 2147483647, %v489
      %v1972 = vand.u32 %v1971, 8388607
      %v1973 = vor.u32 %v1972, 8388608
      %v1974 = vsub.s32 0, %v1973
      %v1975 = vadd.s32 %v1970, 1
      %vm1976 = vcmp.gt.s32.totalorder %v1975, 0
      %v1977 = vsel %vm1976, %v1975, 0
      %v1978 = vshrl.u32 %v1977, 5
      %v1979 = vand.u32 %v1977, 31
      %v1980 = vsub.s32 32, %v1979
      %v1981 = vshrl.u32 683565275, %v1980
      %v1982 = vshll.u32 683565275, %v1979
      %v1983 = vshrl.u32 2475754826, %v1980
      %v1984 = vor.u32 %v1982, %v1983
      %v1985 = vshll.u32 2475754826, %v1979
      %v1986 = vshrl.u32 2131351028, %v1980
      %v1987 = vor.u32 %v1985, %v1986
      %v1988 = vshll.u32 2131351028, %v1979
      %v1989 = vshrl.u32 2102212464, %v1980
      %v1990 = vor.u32 %v1988, %v1989
      %v1991 = vshll.u32 2102212464, %v1979
      %v1992 = vshrl.u32 920167782, %v1980
      %v1993 = vor.u32 %v1991, %v1992
      %v1994 = vshll.u32 920167782, %v1979
      %v1995 = vshrl.u32 1326507024, %v1980
      %v1996 = vor.u32 %v1994, %v1995
      %vm1997 = vcmp.lt.s32.totalorder %v1978, 1
      %vm1998 = vcmp.lt.s32.totalorder %v1978, 2
      %vm1999 = vcmp.lt.s32.totalorder %v1978, 3
      %vm2000 = vcmp.lt.s32.totalorder %v1978, 4
      %v2001 = vsel %vm1997, %v1981, %v1984
      %v2002 = vsel %vm2000, %v1990, 2102212464
      %v2003 = vsel %vm1999, %v1987, %v2002
      %v2004 = vsel %vm1998, %v2001, %v2003
      %v2005 = vsel %vm1997, %v1984, %v1987
      %v2006 = vsel %vm2000, %v1993, 920167782
      %v2007 = vsel %vm1999, %v1990, %v2006
      %v2008 = vsel %vm1998, %v2005, %v2007
      %v2009 = vsel %vm1997, %v1987, %v1990
      %v2010 = vsel %vm2000, %v1996, 1326507024
      %v2011 = vsel %vm1999, %v1993, %v2010
      %v2012 = vsel %vm1998, %v2009, %v2011
      %v2013 = vshll.u32 %v1973, 8
      %v2014 = vmul.u32.u64.compose %v2013, %v2012
      %v2015 = vextract.low.u32 %v2014
      %v2016 = vextract.high.u32 %v2014
      %v2017 = vmul.u32.u64.compose %v2013, %v2008
      %v2018 = vextract.low.u32 %v2017
      %v2019 = vextract.high.u32 %v2017
      %v2020 = vmul.u32 %v2013, %v2004
      %v2021 = vadd.s32 %v2016, %v2018
      %vm2022 = vc.u32 %v2016, %v2018
      %v2023 = vadd.s32 %v2019, 1
      %v2024 = vsel %vm2022, %v2023, %v2019
      %v2025 = vadd.s32 %v2020, %v2024
      %v2026 = vadd.s32 %v2025, 536870912
      %v2027 = vshrl.u32 %v2026, 30
      %v2028 = vshll.u32 %v2027, 30
      %v2029 = vsub.s32 %v2025, %v2028
      %vm2030 = vcmp.lt.s32.totalorder %v2029, 0
      %v2031 = vsub.s32 0, %v2029
      %v2032 = vsel %vm2030, %v2031, %v2029
      %v2033 = vclz %v2032
      %v2034 = vsub.s32 %v2033, 2
      %vm2035 = vcmp.gt.s32.totalorder 0, %v2034
      %v2036 = vsel %vm2035, 0, %v2034
      %v2037 = vsub.s32 32, %v2036
      %v2038 = vshll.u32 %v2029, %v2036
      %v2039 = vshrl.u32 %v2021, %v2037
      %v2040 = vor.u32 %v2038, %v2039
      %v2041 = vsub.s32 4294967266, %v2036
      %v2042 = vadd.s32 %v2041, 127
      %v2043 = vshll.u32 %v2042, 23
      %v2044 = vor.u32 4788187, %v2043
      %v2045 = vand.u32 2147483647, %v2044
      %v2047 = vcvt.s32.f32 %v2040
      %v2048 = vmul.f32 %v2047, %v2045
      %v2049 = vxor.u32 %v2048, 2147483648
      %v2050 = vsel %vm1967, %v2049, %v2048
      %v2051 = vsub.s32 4, %v2027
      %v2052 = vsel %vm1967, %v2051, %v2027
      %v2053 = vsel %vm1966, %v489, %v2050
      %v2054 = vsel %vm1966, 0, %v2052
      %v2055 = vcosq.f32.pop %v2053
      %v2056 = vsinq.f32.pop %v2053
      %vm2057 = vweird.f32 %v489
      %v2058 = vadd.s32 %v2054, 3
      %v2059 = vand.u32 %v2058, 3
      %vm2060 = vcmp.lt.s32.totalorder %v2059, 2
      %vm2061 = vcmp.eq.s32.totalorder %v2059, 0
      %v2062 = vxor.u32 %v2056, 2147483648
      %v2063 = vsel %vm2061, %v2055, %v2062
      %vm2064 = vcmp.eq.s32.totalorder %v2059, 2
      %v2065 = vxor.u32 %v2055, 2147483648
      %v2066 = vsel %vm2064, %v2065, %v2056
      %v2067 = vsel %vm2060, %v2063, %v2066
      %v2068 = vsel %vm2057, nan, %v2067
      %v2069 = vand.u32 2147483647, %v491
      %vm2070 = vcmp.le.f32.partialorder %v2069, 0.7853982
      %vm2071 = vcmp.lt.s32.totalorder %v491, 0
      %v2072 = vand.u32 %v491, 2139095040
      %v2073 = vshrl.u32 %v2072, 23
      %v2074 = vsub.s32 %v2073, 127
      %v2075 = vand.u32 2147483647, %v491
      %v2076 = vand.u32 %v2075, 8388607
      %v2077 = vor.u32 %v2076, 8388608
      %v2078 = vsub.s32 0, %v2077
      %v2079 = vadd.s32 %v2074, 1
      %vm2080 = vcmp.gt.s32.totalorder %v2079, 0
      %v2081 = vsel %vm2080, %v2079, 0
      %v2082 = vshrl.u32 %v2081, 5
      %v2083 = vand.u32 %v2081, 31
      %v2084 = vsub.s32 32, %v2083
      %v2085 = vshrl.u32 683565275, %v2084
      %v2086 = vshll.u32 683565275, %v2083
      %v2087 = vshrl.u32 2475754826, %v2084
      %v2088 = vor.u32 %v2086, %v2087
      %v2089 = vshll.u32 2475754826, %v2083
      %v2090 = vshrl.u32 2131351028, %v2084
      %v2091 = vor.u32 %v2089, %v2090
      %v2092 = vshll.u32 2131351028, %v2083
      %v2093 = vshrl.u32 2102212464, %v2084
      %v2094 = vor.u32 %v2092, %v2093
      %v2095 = vshll.u32 2102212464, %v2083
      %v2096 = vshrl.u32 920167782, %v2084
      %v2097 = vor.u32 %v2095, %v2096
      %v2098 = vshll.u32 920167782, %v2083
      %v2099 = vshrl.u32 1326507024, %v2084
      %v2100 = vor.u32 %v2098, %v2099
      %vm2101 = vcmp.lt.s32.totalorder %v2082, 1
      %vm2102 = vcmp.lt.s32.totalorder %v2082, 2
      %vm2103 = vcmp.lt.s32.totalorder %v2082, 3
      %vm2104 = vcmp.lt.s32.totalorder %v2082, 4
      %v2105 = vsel %vm2101, %v2085, %v2088
      %v2106 = vsel %vm2104, %v2094, 2102212464
      %v2107 = vsel %vm2103, %v2091, %v2106
      %v2108 = vsel %vm2102, %v2105, %v2107
      %v2109 = vsel %vm2101, %v2088, %v2091
      %v2110 = vsel %vm2104, %v2097, 920167782
      %v2111 = vsel %vm2103, %v2094, %v2110
      %v2112 = vsel %vm2102, %v2109, %v2111
      %v2113 = vsel %vm2101, %v2091, %v2094
      %v2114 = vsel %vm2104, %v2100, 1326507024
      %v2115 = vsel %vm2103, %v2097, %v2114
      %v2116 = vsel %vm2102, %v2113, %v2115
      %v2117 = vshll.u32 %v2077, 8
      %v2118 = vmul.u32.u64.compose %v2117, %v2116
      %v2119 = vextract.low.u32 %v2118
      %v2120 = vextract.high.u32 %v2118
      %v2121 = vmul.u32.u64.compose %v2117, %v2112
      %v2122 = vextract.low.u32 %v2121
      %v2123 = vextract.high.u32 %v2121
      %v2124 = vmul.u32 %v2117, %v2108
      %v2125 = vadd.s32 %v2120, %v2122
      %vm2126 = vc.u32 %v2120, %v2122
      %v2127 = vadd.s32 %v2123, 1
      %v2128 = vsel %vm2126, %v2127, %v2123
      %v2129 = vadd.s32 %v2124, %v2128
      %v2130 = vadd.s32 %v2129, 536870912
      %v2131 = vshrl.u32 %v2130, 30
      %v2132 = vshll.u32 %v2131, 30
      %v2133 = vsub.s32 %v2129, %v2132
      %vm2134 = vcmp.lt.s32.totalorder %v2133, 0
      %v2135 = vsub.s32 0, %v2133
      %v2136 = vsel %vm2134, %v2135, %v2133
      %v2137 = vclz %v2136
      %v2138 = vsub.s32 %v2137, 2
      %vm2139 = vcmp.gt.s32.totalorder 0, %v2138
      %v2140 = vsel %vm2139, 0, %v2138
      %v2141 = vsub.s32 32, %v2140
      %v2142 = vshll.u32 %v2133, %v2140
      %v2143 = vshrl.u32 %v2125, %v2141
      %v2144 = vor.u32 %v2142, %v2143
      %v2145 = vsub.s32 4294967266, %v2140
      %v2146 = vadd.s32 %v2145, 127
      %v2147 = vshll.u32 %v2146, 23
      %v2148 = vor.u32 4788187, %v2147
      %v2149 = vand.u32 2147483647, %v2148
      %v2151 = vcvt.s32.f32 %v2144
      %v2152 = vmul.f32 %v2151, %v2149
      %v2153 = vxor.u32 %v2152, 2147483648
      %v2154 = vsel %vm2071, %v2153, %v2152
      %v2155 = vsub.s32 4, %v2131
      %v2156 = vsel %vm2071, %v2155, %v2131
      %v2157 = vsel %vm2070, %v491, %v2154
      %v2158 = vsel %vm2070, 0, %v2156
      %v2159 = vcosq.f32.pop %v2157
      %v2160 = vsinq.f32.pop %v2157
      %vm2161 = vweird.f32 %v491
      %v2162 = vadd.s32 %v2158, 3
      %v2163 = vand.u32 %v2162, 3
      %vm2164 = vcmp.lt.s32.totalorder %v2163, 2
      %vm2165 = vcmp.eq.s32.totalorder %v2163, 0
      %v2166 = vxor.u32 %v2160, 2147483648
      %v2167 = vsel %vm2165, %v2159, %v2166
      %vm2168 = vcmp.eq.s32.totalorder %v2163, 2
      %v2169 = vxor.u32 %v2159, 2147483648
      %v2170 = vsel %vm2168, %v2169, %v2160
      %v2171 = vsel %vm2164, %v2167, %v2170
      %v2172 = vsel %vm2161, nan, %v2171
      %v2173 = vand.u32 2147483647, %v493
      %vm2174 = vcmp.le.f32.partialorder %v2173, 0.7853982
      %vm2175 = vcmp.lt.s32.totalorder %v493, 0
      %v2176 = vand.u32 %v493, 2139095040
      %v2177 = vshrl.u32 %v2176, 23
      %v2178 = vsub.s32 %v2177, 127
      %v2179 = vand.u32 2147483647, %v493
      %v2180 = vand.u32 %v2179, 8388607
      %v2181 = vor.u32 %v2180, 8388608
      %v2182 = vsub.s32 0, %v2181
      %v2183 = vadd.s32 %v2178, 1
      %vm2184 = vcmp.gt.s32.totalorder %v2183, 0
      %v2185 = vsel %vm2184, %v2183, 0
      %v2186 = vshrl.u32 %v2185, 5
      %v2187 = vand.u32 %v2185, 31
      %v2188 = vsub.s32 32, %v2187
      %v2189 = vshrl.u32 683565275, %v2188
      %v2190 = vshll.u32 683565275, %v2187
      %v2191 = vshrl.u32 2475754826, %v2188
      %v2192 = vor.u32 %v2190, %v2191
      %v2193 = vshll.u32 2475754826, %v2187
      %v2194 = vshrl.u32 2131351028, %v2188
      %v2195 = vor.u32 %v2193, %v2194
      %v2196 = vshll.u32 2131351028, %v2187
      %v2197 = vshrl.u32 2102212464, %v2188
      %v2198 = vor.u32 %v2196, %v2197
      %v2199 = vshll.u32 2102212464, %v2187
      %v2200 = vshrl.u32 920167782, %v2188
      %v2201 = vor.u32 %v2199, %v2200
      %v2202 = vshll.u32 920167782, %v2187
      %v2203 = vshrl.u32 1326507024, %v2188
      %v2204 = vor.u32 %v2202, %v2203
      %vm2205 = vcmp.lt.s32.totalorder %v2186, 1
      %vm2206 = vcmp.lt.s32.totalorder %v2186, 2
      %vm2207 = vcmp.lt.s32.totalorder %v2186, 3
      %vm2208 = vcmp.lt.s32.totalorder %v2186, 4
      %v2209 = vsel %vm2205, %v2189, %v2192
      %v2210 = vsel %vm2208, %v2198, 2102212464
      %v2211 = vsel %vm2207, %v2195, %v2210
      %v2212 = vsel %vm2206, %v2209, %v2211
      %v2213 = vsel %vm2205, %v2192, %v2195
      %v2214 = vsel %vm2208, %v2201, 920167782
      %v2215 = vsel %vm2207, %v2198, %v2214
      %v2216 = vsel %vm2206, %v2213, %v2215
      %v2217 = vsel %vm2205, %v2195, %v2198
      %v2218 = vsel %vm2208, %v2204, 1326507024
      %v2219 = vsel %vm2207, %v2201, %v2218
      %v2220 = vsel %vm2206, %v2217, %v2219
      %v2221 = vshll.u32 %v2181, 8
      %v2222 = vmul.u32.u64.compose %v2221, %v2220
      %v2223 = vextract.low.u32 %v2222
      %v2224 = vextract.high.u32 %v2222
      %v2225 = vmul.u32.u64.compose %v2221, %v2216
      %v2226 = vextract.low.u32 %v2225
      %v2227 = vextract.high.u32 %v2225
      %v2228 = vmul.u32 %v2221, %v2212
      %v2229 = vadd.s32 %v2224, %v2226
      %vm2230 = vc.u32 %v2224, %v2226
      %v2231 = vadd.s32 %v2227, 1
      %v2232 = vsel %vm2230, %v2231, %v2227
      %v2233 = vadd.s32 %v2228, %v2232
      %v2234 = vadd.s32 %v2233, 536870912
      %v2235 = vshrl.u32 %v2234, 30
      %v2236 = vshll.u32 %v2235, 30
      %v2237 = vsub.s32 %v2233, %v2236
      %vm2238 = vcmp.lt.s32.totalorder %v2237, 0
      %v2239 = vsub.s32 0, %v2237
      %v2240 = vsel %vm2238, %v2239, %v2237
      %v2241 = vclz %v2240
      %v2242 = vsub.s32 %v2241, 2
      %vm2243 = vcmp.gt.s32.totalorder 0, %v2242
      %v2244 = vsel %vm2243, 0, %v2242
      %v2245 = vsub.s32 32, %v2244
      %v2246 = vshll.u32 %v2237, %v2244
      %v2247 = vshrl.u32 %v2229, %v2245
      %v2248 = vor.u32 %v2246, %v2247
      %v2249 = vsub.s32 4294967266, %v2244
      %v2250 = vadd.s32 %v2249, 127
      %v2251 = vshll.u32 %v2250, 23
      %v2252 = vor.u32 4788187, %v2251
      %v2253 = vand.u32 2147483647, %v2252
      %v2255 = vcvt.s32.f32 %v2248
      %v2256 = vmul.f32 %v2255, %v2253
      %v2257 = vxor.u32 %v2256, 2147483648
      %v2258 = vsel %vm2175, %v2257, %v2256
      %v2259 = vsub.s32 4, %v2235
      %v2260 = vsel %vm2175, %v2259, %v2235
      %v2261 = vsel %vm2174, %v493, %v2258
      %v2262 = vsel %vm2174, 0, %v2260
      %v2263 = vcosq.f32.pop %v2261
      %v2264 = vsinq.f32.pop %v2261
      %vm2265 = vweird.f32 %v493
      %v2266 = vadd.s32 %v2262, 3
      %v2267 = vand.u32 %v2266, 3
      %vm2268 = vcmp.lt.s32.totalorder %v2267, 2
      %vm2269 = vcmp.eq.s32.totalorder %v2267, 0
      %v2270 = vxor.u32 %v2264, 2147483648
      %v2271 = vsel %vm2269, %v2263, %v2270
      %vm2272 = vcmp.eq.s32.totalorder %v2267, 2
      %v2273 = vxor.u32 %v2263, 2147483648
      %v2274 = vsel %vm2272, %v2273, %v2264
      %v2275 = vsel %vm2268, %v2271, %v2274
      %v2276 = vsel %vm2265, nan, %v2275
      %v2277 = vand.u32 2147483647, %v494
      %vm2278 = vcmp.le.f32.partialorder %v2277, 0.7853982
      %vm2279 = vcmp.lt.s32.totalorder %v494, 0
      %v2280 = vand.u32 %v494, 2139095040
      %v2281 = vshrl.u32 %v2280, 23
      %v2282 = vsub.s32 %v2281, 127
      %v2283 = vand.u32 2147483647, %v494
      %v2284 = vand.u32 %v2283, 8388607
      %v2285 = vor.u32 %v2284, 8388608
      %v2286 = vsub.s32 0, %v2285
      %v2287 = vadd.s32 %v2282, 1
      %vm2288 = vcmp.gt.s32.totalorder %v2287, 0
      %v2289 = vsel %vm2288, %v2287, 0
      %v2290 = vshrl.u32 %v2289, 5
      %v2291 = vand.u32 %v2289, 31
      %v2292 = vsub.s32 32, %v2291
      %v2293 = vshrl.u32 683565275, %v2292
      %v2294 = vshll.u32 683565275, %v2291
      %v2295 = vshrl.u32 2475754826, %v2292
      %v2296 = vor.u32 %v2294, %v2295
      %v2297 = vshll.u32 2475754826, %v2291
      %v2298 = vshrl.u32 2131351028, %v2292
      %v2299 = vor.u32 %v2297, %v2298
      %v2300 = vshll.u32 2131351028, %v2291
      %v2301 = vshrl.u32 2102212464, %v2292
      %v2302 = vor.u32 %v2300, %v2301
      %v2303 = vshll.u32 2102212464, %v2291
      %v2304 = vshrl.u32 920167782, %v2292
      %v2305 = vor.u32 %v2303, %v2304
      %v2306 = vshll.u32 920167782, %v2291
      %v2307 = vshrl.u32 1326507024, %v2292
      %v2308 = vor.u32 %v2306, %v2307
      %vm2309 = vcmp.lt.s32.totalorder %v2290, 1
      %vm2310 = vcmp.lt.s32.totalorder %v2290, 2
      %vm2311 = vcmp.lt.s32.totalorder %v2290, 3
      %vm2312 = vcmp.lt.s32.totalorder %v2290, 4
      %v2313 = vsel %vm2309, %v2293, %v2296
      %v2314 = vsel %vm2312, %v2302, 2102212464
      %v2315 = vsel %vm2311, %v2299, %v2314
      %v2316 = vsel %vm2310, %v2313, %v2315
      %v2317 = vsel %vm2309, %v2296, %v2299
      %v2318 = vsel %vm2312, %v2305, 920167782
      %v2319 = vsel %vm2311, %v2302, %v2318
      %v2320 = vsel %vm2310, %v2317, %v2319
      %v2321 = vsel %vm2309, %v2299, %v2302
      %v2322 = vsel %vm2312, %v2308, 1326507024
      %v2323 = vsel %vm2311, %v2305, %v2322
      %v2324 = vsel %vm2310, %v2321, %v2323
      %v2325 = vshll.u32 %v2285, 8
      %v2326 = vmul.u32.u64.compose %v2325, %v2324
      %v2327 = vextract.low.u32 %v2326
      %v2328 = vextract.high.u32 %v2326
      %v2329 = vmul.u32.u64.compose %v2325, %v2320
      %v2330 = vextract.low.u32 %v2329
      %v2331 = vextract.high.u32 %v2329
      %v2332 = vmul.u32 %v2325, %v2316
      %v2333 = vadd.s32 %v2328, %v2330
      %vm2334 = vc.u32 %v2328, %v2330
      %v2335 = vadd.s32 %v2331, 1
      %v2336 = vsel %vm2334, %v2335, %v2331
      %v2337 = vadd.s32 %v2332, %v2336
      %v2338 = vadd.s32 %v2337, 536870912
      %v2339 = vshrl.u32 %v2338, 30
      %v2340 = vshll.u32 %v2339, 30
      %v2341 = vsub.s32 %v2337, %v2340
      %vm2342 = vcmp.lt.s32.totalorder %v2341, 0
      %v2343 = vsub.s32 0, %v2341
      %v2344 = vsel %vm2342, %v2343, %v2341
      %v2345 = vclz %v2344
      %v2346 = vsub.s32 %v2345, 2
      %vm2347 = vcmp.gt.s32.totalorder 0, %v2346
      %v2348 = vsel %vm2347, 0, %v2346
      %v2349 = vsub.s32 32, %v2348
      %v2350 = vshll.u32 %v2341, %v2348
      %v2351 = vshrl.u32 %v2333, %v2349
      %v2352 = vor.u32 %v2350, %v2351
      %v2353 = vsub.s32 4294967266, %v2348
      %v2354 = vadd.s32 %v2353, 127
      %v2355 = vshll.u32 %v2354, 23
      %v2356 = vor.u32 4788187, %v2355
      %v2357 = vand.u32 2147483647, %v2356
      %v2359 = vcvt.s32.f32 %v2352
      %v2360 = vmul.f32 %v2359, %v2357
      %v2361 = vxor.u32 %v2360, 2147483648
      %v2362 = vsel %vm2279, %v2361, %v2360
      %v2363 = vsub.s32 4, %v2339
      %v2364 = vsel %vm2279, %v2363, %v2339
      %v2365 = vsel %vm2278, %v494, %v2362
      %v2366 = vsel %vm2278, 0, %v2364
      %v2367 = vcosq.f32.pop %v2365
      %v2368 = vsinq.f32.pop %v2365
      %vm2369 = vweird.f32 %v494
      %v2370 = vadd.s32 %v2366, 3
      %v2371 = vand.u32 %v2370, 3
      %vm2372 = vcmp.lt.s32.totalorder %v2371, 2
      %vm2373 = vcmp.eq.s32.totalorder %v2371, 0
      %v2374 = vxor.u32 %v2368, 2147483648
      %v2375 = vsel %vm2373, %v2367, %v2374
      %vm2376 = vcmp.eq.s32.totalorder %v2371, 2
      %v2377 = vxor.u32 %v2367, 2147483648
      %v2378 = vsel %vm2376, %v2377, %v2368
      %v2379 = vsel %vm2372, %v2375, %v2378
      %v2380 = vsel %vm2369, nan, %v2379
      %v2381 = vand.u32 2147483647, %v495
      %vm2382 = vcmp.le.f32.partialorder %v2381, 0.7853982
      %vm2383 = vcmp.lt.s32.totalorder %v495, 0
      %v2384 = vand.u32 %v495, 2139095040
      %v2385 = vshrl.u32 %v2384, 23
      %v2386 = vsub.s32 %v2385, 127
      %v2387 = vand.u32 2147483647, %v495
      %v2388 = vand.u32 %v2387, 8388607
      %v2389 = vor.u32 %v2388, 8388608
      %v2390 = vsub.s32 0, %v2389
      %v2391 = vadd.s32 %v2386, 1
      %vm2392 = vcmp.gt.s32.totalorder %v2391, 0
      %v2393 = vsel %vm2392, %v2391, 0
      %v2394 = vshrl.u32 %v2393, 5
      %v2395 = vand.u32 %v2393, 31
      %v2396 = vsub.s32 32, %v2395
      %v2397 = vshrl.u32 683565275, %v2396
      %v2398 = vshll.u32 683565275, %v2395
      %v2399 = vshrl.u32 2475754826, %v2396
      %v2400 = vor.u32 %v2398, %v2399
      %v2401 = vshll.u32 2475754826, %v2395
      %v2402 = vshrl.u32 2131351028, %v2396
      %v2403 = vor.u32 %v2401, %v2402
      %v2404 = vshll.u32 2131351028, %v2395
      %v2405 = vshrl.u32 2102212464, %v2396
      %v2406 = vor.u32 %v2404, %v2405
      %v2407 = vshll.u32 2102212464, %v2395
      %v2408 = vshrl.u32 920167782, %v2396
      %v2409 = vor.u32 %v2407, %v2408
      %v2410 = vshll.u32 920167782, %v2395
      %v2411 = vshrl.u32 1326507024, %v2396
      %v2412 = vor.u32 %v2410, %v2411
      %vm2413 = vcmp.lt.s32.totalorder %v2394, 1
      %vm2414 = vcmp.lt.s32.totalorder %v2394, 2
      %vm2415 = vcmp.lt.s32.totalorder %v2394, 3
      %vm2416 = vcmp.lt.s32.totalorder %v2394, 4
      %v2417 = vsel %vm2413, %v2397, %v2400
      %v2418 = vsel %vm2416, %v2406, 2102212464
      %v2419 = vsel %vm2415, %v2403, %v2418
      %v2420 = vsel %vm2414, %v2417, %v2419
      %v2421 = vsel %vm2413, %v2400, %v2403
      %v2422 = vsel %vm2416, %v2409, 920167782
      %v2423 = vsel %vm2415, %v2406, %v2422
      %v2424 = vsel %vm2414, %v2421, %v2423
      %v2425 = vsel %vm2413, %v2403, %v2406
      %v2426 = vsel %vm2416, %v2412, 1326507024
      %v2427 = vsel %vm2415, %v2409, %v2426
      %v2428 = vsel %vm2414, %v2425, %v2427
      %v2429 = vshll.u32 %v2389, 8
      %v2430 = vmul.u32.u64.compose %v2429, %v2428
      %v2431 = vextract.low.u32 %v2430
      %v2432 = vextract.high.u32 %v2430
      %v2433 = vmul.u32.u64.compose %v2429, %v2424
      %v2434 = vextract.low.u32 %v2433
      %v2435 = vextract.high.u32 %v2433
      %v2436 = vmul.u32 %v2429, %v2420
      %v2437 = vadd.s32 %v2432, %v2434
      %vm2438 = vc.u32 %v2432, %v2434
      %v2439 = vadd.s32 %v2435, 1
      %v2440 = vsel %vm2438, %v2439, %v2435
      %v2441 = vadd.s32 %v2436, %v2440
      %v2442 = vadd.s32 %v2441, 536870912
      %v2443 = vshrl.u32 %v2442, 30
      %v2444 = vshll.u32 %v2443, 30
      %v2445 = vsub.s32 %v2441, %v2444
      %vm2446 = vcmp.lt.s32.totalorder %v2445, 0
      %v2447 = vsub.s32 0, %v2445
      %v2448 = vsel %vm2446, %v2447, %v2445
      %v2449 = vclz %v2448
      %v2450 = vsub.s32 %v2449, 2
      %vm2451 = vcmp.gt.s32.totalorder 0, %v2450
      %v2452 = vsel %vm2451, 0, %v2450
      %v2453 = vsub.s32 32, %v2452
      %v2454 = vshll.u32 %v2445, %v2452
      %v2455 = vshrl.u32 %v2437, %v2453
      %v2456 = vor.u32 %v2454, %v2455
      %v2457 = vsub.s32 4294967266, %v2452
      %v2458 = vadd.s32 %v2457, 127
      %v2459 = vshll.u32 %v2458, 23
      %v2460 = vor.u32 4788187, %v2459
      %v2461 = vand.u32 2147483647, %v2460
      %v2463 = vcvt.s32.f32 %v2456
      %v2464 = vmul.f32 %v2463, %v2461
      %v2465 = vxor.u32 %v2464, 2147483648
      %v2466 = vsel %vm2383, %v2465, %v2464
      %v2467 = vsub.s32 4, %v2443
      %v2468 = vsel %vm2383, %v2467, %v2443
      %v2469 = vsel %vm2382, %v495, %v2466
      %v2470 = vsel %vm2382, 0, %v2468
      %v2471 = vcosq.f32.pop %v2469
      %v2472 = vsinq.f32.pop %v2469
      %vm2473 = vweird.f32 %v495
      %v2474 = vadd.s32 %v2470, 3
      %v2475 = vand.u32 %v2474, 3
      %vm2476 = vcmp.lt.s32.totalorder %v2475, 2
      %vm2477 = vcmp.eq.s32.totalorder %v2475, 0
      %v2478 = vxor.u32 %v2472, 2147483648
      %v2479 = vsel %vm2477, %v2471, %v2478
      %vm2480 = vcmp.eq.s32.totalorder %v2475, 2
      %v2481 = vxor.u32 %v2471, 2147483648
      %v2482 = vsel %vm2480, %v2481, %v2472
      %v2483 = vsel %vm2476, %v2479, %v2482
      %v2484 = vsel %vm2473, nan, %v2483
      %v2485 = vand.u32 2147483647, %v496
      %vm2486 = vcmp.le.f32.partialorder %v2485, 0.7853982
      %vm2487 = vcmp.lt.s32.totalorder %v496, 0
      %v2488 = vand.u32 %v496, 2139095040
      %v2489 = vshrl.u32 %v2488, 23
      %v2490 = vsub.s32 %v2489, 127
      %v2491 = vand.u32 2147483647, %v496
      %v2492 = vand.u32 %v2491, 8388607
      %v2493 = vor.u32 %v2492, 8388608
      %v2494 = vsub.s32 0, %v2493
      %v2495 = vadd.s32 %v2490, 1
      %vm2496 = vcmp.gt.s32.totalorder %v2495, 0
      %v2497 = vsel %vm2496, %v2495, 0
      %v2498 = vshrl.u32 %v2497, 5
      %v2499 = vand.u32 %v2497, 31
      %v2500 = vsub.s32 32, %v2499
      %v2501 = vshrl.u32 683565275, %v2500
      %v2502 = vshll.u32 683565275, %v2499
      %v2503 = vshrl.u32 2475754826, %v2500
      %v2504 = vor.u32 %v2502, %v2503
      %v2505 = vshll.u32 2475754826, %v2499
      %v2506 = vshrl.u32 2131351028, %v2500
      %v2507 = vor.u32 %v2505, %v2506
      %v2508 = vshll.u32 2131351028, %v2499
      %v2509 = vshrl.u32 2102212464, %v2500
      %v2510 = vor.u32 %v2508, %v2509
      %v2511 = vshll.u32 2102212464, %v2499
      %v2512 = vshrl.u32 920167782, %v2500
      %v2513 = vor.u32 %v2511, %v2512
      %v2514 = vshll.u32 920167782, %v2499
      %v2515 = vshrl.u32 1326507024, %v2500
      %v2516 = vor.u32 %v2514, %v2515
      %vm2517 = vcmp.lt.s32.totalorder %v2498, 1
      %vm2518 = vcmp.lt.s32.totalorder %v2498, 2
      %vm2519 = vcmp.lt.s32.totalorder %v2498, 3
      %vm2520 = vcmp.lt.s32.totalorder %v2498, 4
      %v2521 = vsel %vm2517, %v2501, %v2504
      %v2522 = vsel %vm2520, %v2510, 2102212464
      %v2523 = vsel %vm2519, %v2507, %v2522
      %v2524 = vsel %vm2518, %v2521, %v2523
      %v2525 = vsel %vm2517, %v2504, %v2507
      %v2526 = vsel %vm2520, %v2513, 920167782
      %v2527 = vsel %vm2519, %v2510, %v2526
      %v2528 = vsel %vm2518, %v2525, %v2527
      %v2529 = vsel %vm2517, %v2507, %v2510
      %v2530 = vsel %vm2520, %v2516, 1326507024
      %v2531 = vsel %vm2519, %v2513, %v2530
      %v2532 = vsel %vm2518, %v2529, %v2531
      %v2533 = vshll.u32 %v2493, 8
      %v2534 = vmul.u32.u64.compose %v2533, %v2532
      %v2535 = vextract.low.u32 %v2534
      %v2536 = vextract.high.u32 %v2534
      %v2537 = vmul.u32.u64.compose %v2533, %v2528
      %v2538 = vextract.low.u32 %v2537
      %v2539 = vextract.high.u32 %v2537
      %v2540 = vmul.u32 %v2533, %v2524
      %v2541 = vadd.s32 %v2536, %v2538
      %vm2542 = vc.u32 %v2536, %v2538
      %v2543 = vadd.s32 %v2539, 1
      %v2544 = vsel %vm2542, %v2543, %v2539
      %v2545 = vadd.s32 %v2540, %v2544
      %v2546 = vadd.s32 %v2545, 536870912
      %v2547 = vshrl.u32 %v2546, 30
      %v2548 = vshll.u32 %v2547, 30
      %v2549 = vsub.s32 %v2545, %v2548
      %vm2550 = vcmp.lt.s32.totalorder %v2549, 0
      %v2551 = vsub.s32 0, %v2549
      %v2552 = vsel %vm2550, %v2551, %v2549
      %v2553 = vclz %v2552
      %v2554 = vsub.s32 %v2553, 2
      %vm2555 = vcmp.gt.s32.totalorder 0, %v2554
      %v2556 = vsel %vm2555, 0, %v2554
      %v2557 = vsub.s32 32, %v2556
      %v2558 = vshll.u32 %v2549, %v2556
      %v2559 = vshrl.u32 %v2541, %v2557
      %v2560 = vor.u32 %v2558, %v2559
      %v2561 = vsub.s32 4294967266, %v2556
      %v2562 = vadd.s32 %v2561, 127
      %v2563 = vshll.u32 %v2562, 23
      %v2564 = vor.u32 4788187, %v2563
      %v2565 = vand.u32 2147483647, %v2564
      %v2567 = vcvt.s32.f32 %v2560
      %v2568 = vmul.f32 %v2567, %v2565
      %v2569 = vxor.u32 %v2568, 2147483648
      %v2570 = vsel %vm2487, %v2569, %v2568
      %v2571 = vsub.s32 4, %v2547
      %v2572 = vsel %vm2487, %v2571, %v2547
      %v2573 = vsel %vm2486, %v496, %v2570
      %v2574 = vsel %vm2486, 0, %v2572
      %v2575 = vcosq.f32.pop %v2573
      %v2576 = vsinq.f32.pop %v2573
      %vm2577 = vweird.f32 %v496
      %v2578 = vadd.s32 %v2574, 3
      %v2579 = vand.u32 %v2578, 3
      %vm2580 = vcmp.lt.s32.totalorder %v2579, 2
      %vm2581 = vcmp.eq.s32.totalorder %v2579, 0
      %v2582 = vxor.u32 %v2576, 2147483648
      %v2583 = vsel %vm2581, %v2575, %v2582
      %vm2584 = vcmp.eq.s32.totalorder %v2579, 2
      %v2585 = vxor.u32 %v2575, 2147483648
      %v2586 = vsel %vm2584, %v2585, %v2576
      %v2587 = vsel %vm2580, %v2583, %v2586
      %v2588 = vsel %vm2577, nan, %v2587
      %v2589 = vand.u32 2147483647, %v497
      %vm2590 = vcmp.le.f32.partialorder %v2589, 0.7853982
      %vm2591 = vcmp.lt.s32.totalorder %v497, 0
      %v2592 = vand.u32 %v497, 2139095040
      %v2593 = vshrl.u32 %v2592, 23
      %v2594 = vsub.s32 %v2593, 127
      %v2595 = vand.u32 2147483647, %v497
      %v2596 = vand.u32 %v2595, 8388607
      %v2597 = vor.u32 %v2596, 8388608
      %v2598 = vsub.s32 0, %v2597
      %v2599 = vadd.s32 %v2594, 1
      %vm2600 = vcmp.gt.s32.totalorder %v2599, 0
      %v2601 = vsel %vm2600, %v2599, 0
      %v2602 = vshrl.u32 %v2601, 5
      %v2603 = vand.u32 %v2601, 31
      %v2604 = vsub.s32 32, %v2603
      %v2605 = vshrl.u32 683565275, %v2604
      %v2606 = vshll.u32 683565275, %v2603
      %v2607 = vshrl.u32 2475754826, %v2604
      %v2608 = vor.u32 %v2606, %v2607
      %v2609 = vshll.u32 2475754826, %v2603
      %v2610 = vshrl.u32 2131351028, %v2604
      %v2611 = vor.u32 %v2609, %v2610
      %v2612 = vshll.u32 2131351028, %v2603
      %v2613 = vshrl.u32 2102212464, %v2604
      %v2614 = vor.u32 %v2612, %v2613
      %v2615 = vshll.u32 2102212464, %v2603
      %v2616 = vshrl.u32 920167782, %v2604
      %v2617 = vor.u32 %v2615, %v2616
      %v2618 = vshll.u32 920167782, %v2603
      %v2619 = vshrl.u32 1326507024, %v2604
      %v2620 = vor.u32 %v2618, %v2619
      %vm2621 = vcmp.lt.s32.totalorder %v2602, 1
      %vm2622 = vcmp.lt.s32.totalorder %v2602, 2
      %vm2623 = vcmp.lt.s32.totalorder %v2602, 3
      %vm2624 = vcmp.lt.s32.totalorder %v2602, 4
      %v2625 = vsel %vm2621, %v2605, %v2608
      %v2626 = vsel %vm2624, %v2614, 2102212464
      %v2627 = vsel %vm2623, %v2611, %v2626
      %v2628 = vsel %vm2622, %v2625, %v2627
      %v2629 = vsel %vm2621, %v2608, %v2611
      %v2630 = vsel %vm2624, %v2617, 920167782
      %v2631 = vsel %vm2623, %v2614, %v2630
      %v2632 = vsel %vm2622, %v2629, %v2631
      %v2633 = vsel %vm2621, %v2611, %v2614
      %v2634 = vsel %vm2624, %v2620, 1326507024
      %v2635 = vsel %vm2623, %v2617, %v2634
      %v2636 = vsel %vm2622, %v2633, %v2635
      %v2637 = vshll.u32 %v2597, 8
      %v2638 = vmul.u32.u64.compose %v2637, %v2636
      %v2639 = vextract.low.u32 %v2638
      %v2640 = vextract.high.u32 %v2638
      %v2641 = vmul.u32.u64.compose %v2637, %v2632
      %v2642 = vextract.low.u32 %v2641
      %v2643 = vextract.high.u32 %v2641
      %v2644 = vmul.u32 %v2637, %v2628
      %v2645 = vadd.s32 %v2640, %v2642
      %vm2646 = vc.u32 %v2640, %v2642
      %v2647 = vadd.s32 %v2643, 1
      %v2648 = vsel %vm2646, %v2647, %v2643
      %v2649 = vadd.s32 %v2644, %v2648
      %v2650 = vadd.s32 %v2649, 536870912
      %v2651 = vshrl.u32 %v2650, 30
      %v2652 = vshll.u32 %v2651, 30
      %v2653 = vsub.s32 %v2649, %v2652
      %vm2654 = vcmp.lt.s32.totalorder %v2653, 0
      %v2655 = vsub.s32 0, %v2653
      %v2656 = vsel %vm2654, %v2655, %v2653
      %v2657 = vclz %v2656
      %v2658 = vsub.s32 %v2657, 2
      %vm2659 = vcmp.gt.s32.totalorder 0, %v2658
      %v2660 = vsel %vm2659, 0, %v2658
      %v2661 = vsub.s32 32, %v2660
      %v2662 = vshll.u32 %v2653, %v2660
      %v2663 = vshrl.u32 %v2645, %v2661
      %v2664 = vor.u32 %v2662, %v2663
      %v2665 = vsub.s32 4294967266, %v2660
      %v2666 = vadd.s32 %v2665, 127
      %v2667 = vshll.u32 %v2666, 23
      %v2668 = vor.u32 4788187, %v2667
      %v2669 = vand.u32 2147483647, %v2668
      %v2671 = vcvt.s32.f32 %v2664
      %v2672 = vmul.f32 %v2671, %v2669
      %v2673 = vxor.u32 %v2672, 2147483648
      %v2674 = vsel %vm2591, %v2673, %v2672
      %v2675 = vsub.s32 4, %v2651
      %v2676 = vsel %vm2591, %v2675, %v2651
      %v2677 = vsel %vm2590, %v497, %v2674
      %v2678 = vsel %vm2590, 0, %v2676
      %v2679 = vcosq.f32.pop %v2677
      %v2680 = vsinq.f32.pop %v2677
      %vm2681 = vweird.f32 %v497
      %v2682 = vadd.s32 %v2678, 3
      %v2683 = vand.u32 %v2682, 3
      %vm2684 = vcmp.lt.s32.totalorder %v2683, 2
      %vm2685 = vcmp.eq.s32.totalorder %v2683, 0
      %v2686 = vxor.u32 %v2680, 2147483648
      %v2687 = vsel %vm2685, %v2679, %v2686
      %vm2688 = vcmp.eq.s32.totalorder %v2683, 2
      %v2689 = vxor.u32 %v2679, 2147483648
      %v2690 = vsel %vm2688, %v2689, %v2680
      %v2691 = vsel %vm2684, %v2687, %v2690
      %v2692 = vsel %vm2681, nan, %v2691
      %v2693 = vand.u32 2147483647, %v498
      %vm2694 = vcmp.le.f32.partialorder %v2693, 0.7853982
      %vm2695 = vcmp.lt.s32.totalorder %v498, 0
      %v2696 = vand.u32 %v498, 2139095040
      %v2697 = vshrl.u32 %v2696, 23
      %v2698 = vsub.s32 %v2697, 127
      %v2699 = vand.u32 2147483647, %v498
      %v2700 = vand.u32 %v2699, 8388607
      %v2701 = vor.u32 %v2700, 8388608
      %v2702 = vsub.s32 0, %v2701
      %v2703 = vadd.s32 %v2698, 1
      %vm2704 = vcmp.gt.s32.totalorder %v2703, 0
      %v2705 = vsel %vm2704, %v2703, 0
      %v2706 = vshrl.u32 %v2705, 5
      %v2707 = vand.u32 %v2705, 31
      %v2708 = vsub.s32 32, %v2707
      %v2709 = vshrl.u32 683565275, %v2708
      %v2710 = vshll.u32 683565275, %v2707
      %v2711 = vshrl.u32 2475754826, %v2708
      %v2712 = vor.u32 %v2710, %v2711
      %v2713 = vshll.u32 2475754826, %v2707
      %v2714 = vshrl.u32 2131351028, %v2708
      %v2715 = vor.u32 %v2713, %v2714
      %v2716 = vshll.u32 2131351028, %v2707
      %v2717 = vshrl.u32 2102212464, %v2708
      %v2718 = vor.u32 %v2716, %v2717
      %v2719 = vshll.u32 2102212464, %v2707
      %v2720 = vshrl.u32 920167782, %v2708
      %v2721 = vor.u32 %v2719, %v2720
      %v2722 = vshll.u32 920167782, %v2707
      %v2723 = vshrl.u32 1326507024, %v2708
      %v2724 = vor.u32 %v2722, %v2723
      %vm2725 = vcmp.lt.s32.totalorder %v2706, 1
      %vm2726 = vcmp.lt.s32.totalorder %v2706, 2
      %vm2727 = vcmp.lt.s32.totalorder %v2706, 3
      %vm2728 = vcmp.lt.s32.totalorder %v2706, 4
      %v2729 = vsel %vm2725, %v2709, %v2712
      %v2730 = vsel %vm2728, %v2718, 2102212464
      %v2731 = vsel %vm2727, %v2715, %v2730
      %v2732 = vsel %vm2726, %v2729, %v2731
      %v2733 = vsel %vm2725, %v2712, %v2715
      %v2734 = vsel %vm2728, %v2721, 920167782
      %v2735 = vsel %vm2727, %v2718, %v2734
      %v2736 = vsel %vm2726, %v2733, %v2735
      %v2737 = vsel %vm2725, %v2715, %v2718
      %v2738 = vsel %vm2728, %v2724, 1326507024
      %v2739 = vsel %vm2727, %v2721, %v2738
      %v2740 = vsel %vm2726, %v2737, %v2739
      %v2741 = vshll.u32 %v2701, 8
      %v2742 = vmul.u32.u64.compose %v2741, %v2740
      %v2743 = vextract.low.u32 %v2742
      %v2744 = vextract.high.u32 %v2742
      %v2745 = vmul.u32.u64.compose %v2741, %v2736
      %v2746 = vextract.low.u32 %v2745
      %v2747 = vextract.high.u32 %v2745
      %v2748 = vmul.u32 %v2741, %v2732
      %v2749 = vadd.s32 %v2744, %v2746
      %vm2750 = vc.u32 %v2744, %v2746
      %v2751 = vadd.s32 %v2747, 1
      %v2752 = vsel %vm2750, %v2751, %v2747
      %v2753 = vadd.s32 %v2748, %v2752
      %v2754 = vadd.s32 %v2753, 536870912
      %v2755 = vshrl.u32 %v2754, 30
      %v2756 = vshll.u32 %v2755, 30
      %v2757 = vsub.s32 %v2753, %v2756
      %vm2758 = vcmp.lt.s32.totalorder %v2757, 0
      %v2759 = vsub.s32 0, %v2757
      %v2760 = vsel %vm2758, %v2759, %v2757
      %v2761 = vclz %v2760
      %v2762 = vsub.s32 %v2761, 2
      %vm2763 = vcmp.gt.s32.totalorder 0, %v2762
      %v2764 = vsel %vm2763, 0, %v2762
      %v2765 = vsub.s32 32, %v2764
      %v2766 = vshll.u32 %v2757, %v2764
      %v2767 = vshrl.u32 %v2749, %v2765
      %v2768 = vor.u32 %v2766, %v2767
      %v2769 = vsub.s32 4294967266, %v2764
      %v2770 = vadd.s32 %v2769, 127
      %v2771 = vshll.u32 %v2770, 23
      %v2772 = vor.u32 4788187, %v2771
      %v2773 = vand.u32 2147483647, %v2772
      %v2775 = vcvt.s32.f32 %v2768
      %v2776 = vmul.f32 %v2775, %v2773
      %v2777 = vxor.u32 %v2776, 2147483648
      %v2778 = vsel %vm2695, %v2777, %v2776
      %v2779 = vsub.s32 4, %v2755
      %v2780 = vsel %vm2695, %v2779, %v2755
      %v2781 = vsel %vm2694, %v498, %v2778
      %v2782 = vsel %vm2694, 0, %v2780
      %v2783 = vcosq.f32.pop %v2781
      %v2784 = vsinq.f32.pop %v2781
      %vm2785 = vweird.f32 %v498
      %v2786 = vadd.s32 %v2782, 3
      %v2787 = vand.u32 %v2786, 3
      %vm2788 = vcmp.lt.s32.totalorder %v2787, 2
      %vm2789 = vcmp.eq.s32.totalorder %v2787, 0
      %v2790 = vxor.u32 %v2784, 2147483648
      %v2791 = vsel %vm2789, %v2783, %v2790
      %vm2792 = vcmp.eq.s32.totalorder %v2787, 2
      %v2793 = vxor.u32 %v2783, 2147483648
      %v2794 = vsel %vm2792, %v2793, %v2784
      %v2795 = vsel %vm2788, %v2791, %v2794
      %v2796 = vsel %vm2785, nan, %v2795
      %v2797 = vand.u32 2147483647, %v499
      %vm2798 = vcmp.le.f32.partialorder %v2797, 0.7853982
      %vm2799 = vcmp.lt.s32.totalorder %v499, 0
      %v2800 = vand.u32 %v499, 2139095040
      %v2801 = vshrl.u32 %v2800, 23
      %v2802 = vsub.s32 %v2801, 127
      %v2803 = vand.u32 2147483647, %v499
      %v2804 = vand.u32 %v2803, 8388607
      %v2805 = vor.u32 %v2804, 8388608
      %v2806 = vsub.s32 0, %v2805
      %v2807 = vadd.s32 %v2802, 1
      %vm2808 = vcmp.gt.s32.totalorder %v2807, 0
      %v2809 = vsel %vm2808, %v2807, 0
      %v2810 = vshrl.u32 %v2809, 5
      %v2811 = vand.u32 %v2809, 31
      %v2812 = vsub.s32 32, %v2811
      %v2813 = vshrl.u32 683565275, %v2812
      %v2814 = vshll.u32 683565275, %v2811
      %v2815 = vshrl.u32 2475754826, %v2812
      %v2816 = vor.u32 %v2814, %v2815
      %v2817 = vshll.u32 2475754826, %v2811
      %v2818 = vshrl.u32 2131351028, %v2812
      %v2819 = vor.u32 %v2817, %v2818
      %v2820 = vshll.u32 2131351028, %v2811
      %v2821 = vshrl.u32 2102212464, %v2812
      %v2822 = vor.u32 %v2820, %v2821
      %v2823 = vshll.u32 2102212464, %v2811
      %v2824 = vshrl.u32 920167782, %v2812
      %v2825 = vor.u32 %v2823, %v2824
      %v2826 = vshll.u32 920167782, %v2811
      %v2827 = vshrl.u32 1326507024, %v2812
      %v2828 = vor.u32 %v2826, %v2827
      %vm2829 = vcmp.lt.s32.totalorder %v2810, 1
      %vm2830 = vcmp.lt.s32.totalorder %v2810, 2
      %vm2831 = vcmp.lt.s32.totalorder %v2810, 3
      %vm2832 = vcmp.lt.s32.totalorder %v2810, 4
      %v2833 = vsel %vm2829, %v2813, %v2816
      %v2834 = vsel %vm2832, %v2822, 2102212464
      %v2835 = vsel %vm2831, %v2819, %v2834
      %v2836 = vsel %vm2830, %v2833, %v2835
      %v2837 = vsel %vm2829, %v2816, %v2819
      %v2838 = vsel %vm2832, %v2825, 920167782
      %v2839 = vsel %vm2831, %v2822, %v2838
      %v2840 = vsel %vm2830, %v2837, %v2839
      %v2841 = vsel %vm2829, %v2819, %v2822
      %v2842 = vsel %vm2832, %v2828, 1326507024
      %v2843 = vsel %vm2831, %v2825, %v2842
      %v2844 = vsel %vm2830, %v2841, %v2843
      %v2845 = vshll.u32 %v2805, 8
      %v2846 = vmul.u32.u64.compose %v2845, %v2844
      %v2847 = vextract.low.u32 %v2846
      %v2848 = vextract.high.u32 %v2846
      %v2849 = vmul.u32.u64.compose %v2845, %v2840
      %v2850 = vextract.low.u32 %v2849
      %v2851 = vextract.high.u32 %v2849
      %v2852 = vmul.u32 %v2845, %v2836
      %v2853 = vadd.s32 %v2848, %v2850
      %vm2854 = vc.u32 %v2848, %v2850
      %v2855 = vadd.s32 %v2851, 1
      %v2856 = vsel %vm2854, %v2855, %v2851
      %v2857 = vadd.s32 %v2852, %v2856
      %v2858 = vadd.s32 %v2857, 536870912
      %v2859 = vshrl.u32 %v2858, 30
      %v2860 = vshll.u32 %v2859, 30
      %v2861 = vsub.s32 %v2857, %v2860
      %vm2862 = vcmp.lt.s32.totalorder %v2861, 0
      %v2863 = vsub.s32 0, %v2861
      %v2864 = vsel %vm2862, %v2863, %v2861
      %v2865 = vclz %v2864
      %v2866 = vsub.s32 %v2865, 2
      %vm2867 = vcmp.gt.s32.totalorder 0, %v2866
      %v2868 = vsel %vm2867, 0, %v2866
      %v2869 = vsub.s32 32, %v2868
      %v2870 = vshll.u32 %v2861, %v2868
      %v2871 = vshrl.u32 %v2853, %v2869
      %v2872 = vor.u32 %v2870, %v2871
      %v2873 = vsub.s32 4294967266, %v2868
      %v2874 = vadd.s32 %v2873, 127
      %v2875 = vshll.u32 %v2874, 23
      %v2876 = vor.u32 4788187, %v2875
      %v2877 = vand.u32 2147483647, %v2876
      %v2879 = vcvt.s32.f32 %v2872
      %v2880 = vmul.f32 %v2879, %v2877
      %v2881 = vxor.u32 %v2880, 2147483648
      %v2882 = vsel %vm2799, %v2881, %v2880
      %v2883 = vsub.s32 4, %v2859
      %v2884 = vsel %vm2799, %v2883, %v2859
      %v2885 = vsel %vm2798, %v499, %v2882
      %v2886 = vsel %vm2798, 0, %v2884
      %v2887 = vcosq.f32.pop %v2885
      %v2888 = vsinq.f32.pop %v2885
      %vm2889 = vweird.f32 %v499
      %v2890 = vadd.s32 %v2886, 3
      %v2891 = vand.u32 %v2890, 3
      %vm2892 = vcmp.lt.s32.totalorder %v2891, 2
      %vm2893 = vcmp.eq.s32.totalorder %v2891, 0
      %v2894 = vxor.u32 %v2888, 2147483648
      %v2895 = vsel %vm2893, %v2887, %v2894
      %vm2896 = vcmp.eq.s32.totalorder %v2891, 2
      %v2897 = vxor.u32 %v2887, 2147483648
      %v2898 = vsel %vm2896, %v2897, %v2888
      %v2899 = vsel %vm2892, %v2895, %v2898
      %v2900 = vsel %vm2889, nan, %v2899
      %v2901 = vand.u32 2147483647, %v500
      %vm2902 = vcmp.le.f32.partialorder %v2901, 0.7853982
      %vm2903 = vcmp.lt.s32.totalorder %v500, 0
      %v2904 = vand.u32 %v500, 2139095040
      %v2905 = vshrl.u32 %v2904, 23
      %v2906 = vsub.s32 %v2905, 127
      %v2907 = vand.u32 2147483647, %v500
      %v2908 = vand.u32 %v2907, 8388607
      %v2909 = vor.u32 %v2908, 8388608
      %v2910 = vsub.s32 0, %v2909
      %v2911 = vadd.s32 %v2906, 1
      %vm2912 = vcmp.gt.s32.totalorder %v2911, 0
      %v2913 = vsel %vm2912, %v2911, 0
      %v2914 = vshrl.u32 %v2913, 5
      %v2915 = vand.u32 %v2913, 31
      %v2916 = vsub.s32 32, %v2915
      %v2917 = vshrl.u32 683565275, %v2916
      %v2918 = vshll.u32 683565275, %v2915
      %v2919 = vshrl.u32 2475754826, %v2916
      %v2920 = vor.u32 %v2918, %v2919
      %v2921 = vshll.u32 2475754826, %v2915
      %v2922 = vshrl.u32 2131351028, %v2916
      %v2923 = vor.u32 %v2921, %v2922
      %v2924 = vshll.u32 2131351028, %v2915
      %v2925 = vshrl.u32 2102212464, %v2916
      %v2926 = vor.u32 %v2924, %v2925
      %v2927 = vshll.u32 2102212464, %v2915
      %v2928 = vshrl.u32 920167782, %v2916
      %v2929 = vor.u32 %v2927, %v2928
      %v2930 = vshll.u32 920167782, %v2915
      %v2931 = vshrl.u32 1326507024, %v2916
      %v2932 = vor.u32 %v2930, %v2931
      %vm2933 = vcmp.lt.s32.totalorder %v2914, 1
      %vm2934 = vcmp.lt.s32.totalorder %v2914, 2
      %vm2935 = vcmp.lt.s32.totalorder %v2914, 3
      %vm2936 = vcmp.lt.s32.totalorder %v2914, 4
      %v2937 = vsel %vm2933, %v2917, %v2920
      %v2938 = vsel %vm2936, %v2926, 2102212464
      %v2939 = vsel %vm2935, %v2923, %v2938
      %v2940 = vsel %vm2934, %v2937, %v2939
      %v2941 = vsel %vm2933, %v2920, %v2923
      %v2942 = vsel %vm2936, %v2929, 920167782
      %v2943 = vsel %vm2935, %v2926, %v2942
      %v2944 = vsel %vm2934, %v2941, %v2943
      %v2945 = vsel %vm2933, %v2923, %v2926
      %v2946 = vsel %vm2936, %v2932, 1326507024
      %v2947 = vsel %vm2935, %v2929, %v2946
      %v2948 = vsel %vm2934, %v2945, %v2947
      %v2949 = vshll.u32 %v2909, 8
      %v2950 = vmul.u32.u64.compose %v2949, %v2948
      %v2951 = vextract.low.u32 %v2950
      %v2952 = vextract.high.u32 %v2950
      %v2953 = vmul.u32.u64.compose %v2949, %v2944
      %v2954 = vextract.low.u32 %v2953
      %v2955 = vextract.high.u32 %v2953
      %v2956 = vmul.u32 %v2949, %v2940
      %v2957 = vadd.s32 %v2952, %v2954
      %vm2958 = vc.u32 %v2952, %v2954
      %v2959 = vadd.s32 %v2955, 1
      %v2960 = vsel %vm2958, %v2959, %v2955
      %v2961 = vadd.s32 %v2956, %v2960
      %v2962 = vadd.s32 %v2961, 536870912
      %v2963 = vshrl.u32 %v2962, 30
      %v2964 = vshll.u32 %v2963, 30
      %v2965 = vsub.s32 %v2961, %v2964
      %vm2966 = vcmp.lt.s32.totalorder %v2965, 0
      %v2967 = vsub.s32 0, %v2965
      %v2968 = vsel %vm2966, %v2967, %v2965
      %v2969 = vclz %v2968
      %v2970 = vsub.s32 %v2969, 2
      %vm2971 = vcmp.gt.s32.totalorder 0, %v2970
      %v2972 = vsel %vm2971, 0, %v2970
      %v2973 = vsub.s32 32, %v2972
      %v2974 = vshll.u32 %v2965, %v2972
      %v2975 = vshrl.u32 %v2957, %v2973
      %v2976 = vor.u32 %v2974, %v2975
      %v2977 = vsub.s32 4294967266, %v2972
      %v2978 = vadd.s32 %v2977, 127
      %v2979 = vshll.u32 %v2978, 23
      %v2980 = vor.u32 4788187, %v2979
      %v2981 = vand.u32 2147483647, %v2980
      %v2983 = vcvt.s32.f32 %v2976
      %v2984 = vmul.f32 %v2983, %v2981
      %v2985 = vxor.u32 %v2984, 2147483648
      %v2986 = vsel %vm2903, %v2985, %v2984
      %v2987 = vsub.s32 4, %v2963
      %v2988 = vsel %vm2903, %v2987, %v2963
      %v2989 = vsel %vm2902, %v500, %v2986
      %v2990 = vsel %vm2902, 0, %v2988
      %v2991 = vcosq.f32.pop %v2989
      %v2992 = vsinq.f32.pop %v2989
      %vm2993 = vweird.f32 %v500
      %v2994 = vadd.s32 %v2990, 3
      %v2995 = vand.u32 %v2994, 3
      %vm2996 = vcmp.lt.s32.totalorder %v2995, 2
      %vm2997 = vcmp.eq.s32.totalorder %v2995, 0
      %v2998 = vxor.u32 %v2992, 2147483648
      %v2999 = vsel %vm2997, %v2991, %v2998
      %vm3000 = vcmp.eq.s32.totalorder %v2995, 2
      %v3001 = vxor.u32 %v2991, 2147483648
      %v3002 = vsel %vm3000, %v3001, %v2992
      %v3003 = vsel %vm2996, %v2999, %v3002
      %v3004 = vsel %vm2993, nan, %v3003
      %v3005 = vand.u32 2147483647, %v501
      %vm3006 = vcmp.le.f32.partialorder %v3005, 0.7853982
      %vm3007 = vcmp.lt.s32.totalorder %v501, 0
      %v3008 = vand.u32 %v501, 2139095040
      %v3009 = vshrl.u32 %v3008, 23
      %v3010 = vsub.s32 %v3009, 127
      %v3011 = vand.u32 2147483647, %v501
      %v3012 = vand.u32 %v3011, 8388607
      %v3013 = vor.u32 %v3012, 8388608
      %v3014 = vsub.s32 0, %v3013
      %v3015 = vadd.s32 %v3010, 1
      %vm3016 = vcmp.gt.s32.totalorder %v3015, 0
      %v3017 = vsel %vm3016, %v3015, 0
      %v3018 = vshrl.u32 %v3017, 5
      %v3019 = vand.u32 %v3017, 31
      %v3020 = vsub.s32 32, %v3019
      %v3021 = vshrl.u32 683565275, %v3020
      %v3022 = vshll.u32 683565275, %v3019
      %v3023 = vshrl.u32 2475754826, %v3020
      %v3024 = vor.u32 %v3022, %v3023
      %v3025 = vshll.u32 2475754826, %v3019
      %v3026 = vshrl.u32 2131351028, %v3020
      %v3027 = vor.u32 %v3025, %v3026
      %v3028 = vshll.u32 2131351028, %v3019
      %v3029 = vshrl.u32 2102212464, %v3020
      %v3030 = vor.u32 %v3028, %v3029
      %v3031 = vshll.u32 2102212464, %v3019
      %v3032 = vshrl.u32 920167782, %v3020
      %v3033 = vor.u32 %v3031, %v3032
      %v3034 = vshll.u32 920167782, %v3019
      %v3035 = vshrl.u32 1326507024, %v3020
      %v3036 = vor.u32 %v3034, %v3035
      %vm3037 = vcmp.lt.s32.totalorder %v3018, 1
      %vm3038 = vcmp.lt.s32.totalorder %v3018, 2
      %vm3039 = vcmp.lt.s32.totalorder %v3018, 3
      %vm3040 = vcmp.lt.s32.totalorder %v3018, 4
      %v3041 = vsel %vm3037, %v3021, %v3024
      %v3042 = vsel %vm3040, %v3030, 2102212464
      %v3043 = vsel %vm3039, %v3027, %v3042
      %v3044 = vsel %vm3038, %v3041, %v3043
      %v3045 = vsel %vm3037, %v3024, %v3027
      %v3046 = vsel %vm3040, %v3033, 920167782
      %v3047 = vsel %vm3039, %v3030, %v3046
      %v3048 = vsel %vm3038, %v3045, %v3047
      %v3049 = vsel %vm3037, %v3027, %v3030
      %v3050 = vsel %vm3040, %v3036, 1326507024
      %v3051 = vsel %vm3039, %v3033, %v3050
      %v3052 = vsel %vm3038, %v3049, %v3051
      %v3053 = vshll.u32 %v3013, 8
      %v3054 = vmul.u32.u64.compose %v3053, %v3052
      %v3055 = vextract.low.u32 %v3054
      %v3056 = vextract.high.u32 %v3054
      %v3057 = vmul.u32.u64.compose %v3053, %v3048
      %v3058 = vextract.low.u32 %v3057
      %v3059 = vextract.high.u32 %v3057
      %v3060 = vmul.u32 %v3053, %v3044
      %v3061 = vadd.s32 %v3056, %v3058
      %vm3062 = vc.u32 %v3056, %v3058
      %v3063 = vadd.s32 %v3059, 1
      %v3064 = vsel %vm3062, %v3063, %v3059
      %v3065 = vadd.s32 %v3060, %v3064
      %v3066 = vadd.s32 %v3065, 536870912
      %v3067 = vshrl.u32 %v3066, 30
      %v3068 = vshll.u32 %v3067, 30
      %v3069 = vsub.s32 %v3065, %v3068
      %vm3070 = vcmp.lt.s32.totalorder %v3069, 0
      %v3071 = vsub.s32 0, %v3069
      %v3072 = vsel %vm3070, %v3071, %v3069
      %v3073 = vclz %v3072
      %v3074 = vsub.s32 %v3073, 2
      %vm3075 = vcmp.gt.s32.totalorder 0, %v3074
      %v3076 = vsel %vm3075, 0, %v3074
      %v3077 = vsub.s32 32, %v3076
      %v3078 = vshll.u32 %v3069, %v3076
      %v3079 = vshrl.u32 %v3061, %v3077
      %v3080 = vor.u32 %v3078, %v3079
      %v3081 = vsub.s32 4294967266, %v3076
      %v3082 = vadd.s32 %v3081, 127
      %v3083 = vshll.u32 %v3082, 23
      %v3084 = vor.u32 4788187, %v3083
      %v3085 = vand.u32 2147483647, %v3084
      %v3087 = vcvt.s32.f32 %v3080
      %v3088 = vmul.f32 %v3087, %v3085
      %v3089 = vxor.u32 %v3088, 2147483648
      %v3090 = vsel %vm3007, %v3089, %v3088
      %v3091 = vsub.s32 4, %v3067
      %v3092 = vsel %vm3007, %v3091, %v3067
      %v3093 = vsel %vm3006, %v501, %v3090
      %v3094 = vsel %vm3006, 0, %v3092
      %v3095 = vcosq.f32.pop %v3093
      %v3096 = vsinq.f32.pop %v3093
      %vm3097 = vweird.f32 %v501
      %v3098 = vadd.s32 %v3094, 3
      %v3099 = vand.u32 %v3098, 3
      %vm3100 = vcmp.lt.s32.totalorder %v3099, 2
      %vm3101 = vcmp.eq.s32.totalorder %v3099, 0
      %v3102 = vxor.u32 %v3096, 2147483648
      %v3103 = vsel %vm3101, %v3095, %v3102
      %vm3104 = vcmp.eq.s32.totalorder %v3099, 2
      %v3105 = vxor.u32 %v3095, 2147483648
      %v3106 = vsel %vm3104, %v3105, %v3096
      %v3107 = vsel %vm3100, %v3103, %v3106
      %v3108 = vsel %vm3097, nan, %v3107
      %v3109 = vand.u32 2147483647, %v502
      %vm3110 = vcmp.le.f32.partialorder %v3109, 0.7853982
      %vm3111 = vcmp.lt.s32.totalorder %v502, 0
      %v3112 = vand.u32 %v502, 2139095040
      %v3113 = vshrl.u32 %v3112, 23
      %v3114 = vsub.s32 %v3113, 127
      %v3115 = vand.u32 2147483647, %v502
      %v3116 = vand.u32 %v3115, 8388607
      %v3117 = vor.u32 %v3116, 8388608
      %v3118 = vsub.s32 0, %v3117
      %v3119 = vadd.s32 %v3114, 1
      %vm3120 = vcmp.gt.s32.totalorder %v3119, 0
      %v3121 = vsel %vm3120, %v3119, 0
      %v3122 = vshrl.u32 %v3121, 5
      %v3123 = vand.u32 %v3121, 31
      %v3124 = vsub.s32 32, %v3123
      %v3125 = vshrl.u32 683565275, %v3124
      %v3126 = vshll.u32 683565275, %v3123
      %v3127 = vshrl.u32 2475754826, %v3124
      %v3128 = vor.u32 %v3126, %v3127
      %v3129 = vshll.u32 2475754826, %v3123
      %v3130 = vshrl.u32 2131351028, %v3124
      %v3131 = vor.u32 %v3129, %v3130
      %v3132 = vshll.u32 2131351028, %v3123
      %v3133 = vshrl.u32 2102212464, %v3124
      %v3134 = vor.u32 %v3132, %v3133
      %v3135 = vshll.u32 2102212464, %v3123
      %v3136 = vshrl.u32 920167782, %v3124
      %v3137 = vor.u32 %v3135, %v3136
      %v3138 = vshll.u32 920167782, %v3123
      %v3139 = vshrl.u32 1326507024, %v3124
      %v3140 = vor.u32 %v3138, %v3139
      %vm3141 = vcmp.lt.s32.totalorder %v3122, 1
      %vm3142 = vcmp.lt.s32.totalorder %v3122, 2
      %vm3143 = vcmp.lt.s32.totalorder %v3122, 3
      %vm3144 = vcmp.lt.s32.totalorder %v3122, 4
      %v3145 = vsel %vm3141, %v3125, %v3128
      %v3146 = vsel %vm3144, %v3134, 2102212464
      %v3147 = vsel %vm3143, %v3131, %v3146
      %v3148 = vsel %vm3142, %v3145, %v3147
      %v3149 = vsel %vm3141, %v3128, %v3131
      %v3150 = vsel %vm3144, %v3137, 920167782
      %v3151 = vsel %vm3143, %v3134, %v3150
      %v3152 = vsel %vm3142, %v3149, %v3151
      %v3153 = vsel %vm3141, %v3131, %v3134
      %v3154 = vsel %vm3144, %v3140, 1326507024
      %v3155 = vsel %vm3143, %v3137, %v3154
      %v3156 = vsel %vm3142, %v3153, %v3155
      %v3157 = vshll.u32 %v3117, 8
      %v3158 = vmul.u32.u64.compose %v3157, %v3156
      %v3159 = vextract.low.u32 %v3158
      %v3160 = vextract.high.u32 %v3158
      %v3161 = vmul.u32.u64.compose %v3157, %v3152
      %v3162 = vextract.low.u32 %v3161
      %v3163 = vextract.high.u32 %v3161
      %v3164 = vmul.u32 %v3157, %v3148
      %v3165 = vadd.s32 %v3160, %v3162
      %vm3166 = vc.u32 %v3160, %v3162
      %v3167 = vadd.s32 %v3163, 1
      %v3168 = vsel %vm3166, %v3167, %v3163
      %v3169 = vadd.s32 %v3164, %v3168
      %v3170 = vadd.s32 %v3169, 536870912
      %v3171 = vshrl.u32 %v3170, 30
      %v3172 = vshll.u32 %v3171, 30
      %v3173 = vsub.s32 %v3169, %v3172
      %vm3174 = vcmp.lt.s32.totalorder %v3173, 0
      %v3175 = vsub.s32 0, %v3173
      %v3176 = vsel %vm3174, %v3175, %v3173
      %v3177 = vclz %v3176
      %v3178 = vsub.s32 %v3177, 2
      %vm3179 = vcmp.gt.s32.totalorder 0, %v3178
      %v3180 = vsel %vm3179, 0, %v3178
      %v3181 = vsub.s32 32, %v3180
      %v3182 = vshll.u32 %v3173, %v3180
      %v3183 = vshrl.u32 %v3165, %v3181
      %v3184 = vor.u32 %v3182, %v3183
      %v3185 = vsub.s32 4294967266, %v3180
      %v3186 = vadd.s32 %v3185, 127
      %v3187 = vshll.u32 %v3186, 23
      %v3188 = vor.u32 4788187, %v3187
      %v3189 = vand.u32 2147483647, %v3188
      %v3191 = vcvt.s32.f32 %v3184
      %v3192 = vmul.f32 %v3191, %v3189
      %v3193 = vxor.u32 %v3192, 2147483648
      %v3194 = vsel %vm3111, %v3193, %v3192
      %v3195 = vsub.s32 4, %v3171
      %v3196 = vsel %vm3111, %v3195, %v3171
      %v3197 = vsel %vm3110, %v502, %v3194
      %v3198 = vsel %vm3110, 0, %v3196
      %v3199 = vcosq.f32.pop %v3197
      %v3200 = vsinq.f32.pop %v3197
      %vm3201 = vweird.f32 %v502
      %v3202 = vadd.s32 %v3198, 3
      %v3203 = vand.u32 %v3202, 3
      %vm3204 = vcmp.lt.s32.totalorder %v3203, 2
      %vm3205 = vcmp.eq.s32.totalorder %v3203, 0
      %v3206 = vxor.u32 %v3200, 2147483648
      %v3207 = vsel %vm3205, %v3199, %v3206
      %vm3208 = vcmp.eq.s32.totalorder %v3203, 2
      %v3209 = vxor.u32 %v3199, 2147483648
      %v3210 = vsel %vm3208, %v3209, %v3200
      %v3211 = vsel %vm3204, %v3207, %v3210
      %v3212 = vsel %vm3201, nan, %v3211
      %v3213 = vand.u32 2147483647, %v503
      %vm3214 = vcmp.le.f32.partialorder %v3213, 0.7853982
      %vm3215 = vcmp.lt.s32.totalorder %v503, 0
      %v3216 = vand.u32 %v503, 2139095040
      %v3217 = vshrl.u32 %v3216, 23
      %v3218 = vsub.s32 %v3217, 127
      %v3219 = vand.u32 2147483647, %v503
      %v3220 = vand.u32 %v3219, 8388607
      %v3221 = vor.u32 %v3220, 8388608
      %v3222 = vsub.s32 0, %v3221
      %v3223 = vadd.s32 %v3218, 1
      %vm3224 = vcmp.gt.s32.totalorder %v3223, 0
      %v3225 = vsel %vm3224, %v3223, 0
      %v3226 = vshrl.u32 %v3225, 5
      %v3227 = vand.u32 %v3225, 31
      %v3228 = vsub.s32 32, %v3227
      %v3229 = vshrl.u32 683565275, %v3228
      %v3230 = vshll.u32 683565275, %v3227
      %v3231 = vshrl.u32 2475754826, %v3228
      %v3232 = vor.u32 %v3230, %v3231
      %v3233 = vshll.u32 2475754826, %v3227
      %v3234 = vshrl.u32 2131351028, %v3228
      %v3235 = vor.u32 %v3233, %v3234
      %v3236 = vshll.u32 2131351028, %v3227
      %v3237 = vshrl.u32 2102212464, %v3228
      %v3238 = vor.u32 %v3236, %v3237
      %v3239 = vshll.u32 2102212464, %v3227
      %v3240 = vshrl.u32 920167782, %v3228
      %v3241 = vor.u32 %v3239, %v3240
      %v3242 = vshll.u32 920167782, %v3227
      %v3243 = vshrl.u32 1326507024, %v3228
      %v3244 = vor.u32 %v3242, %v3243
      %vm3245 = vcmp.lt.s32.totalorder %v3226, 1
      %vm3246 = vcmp.lt.s32.totalorder %v3226, 2
      %vm3247 = vcmp.lt.s32.totalorder %v3226, 3
      %vm3248 = vcmp.lt.s32.totalorder %v3226, 4
      %v3249 = vsel %vm3245, %v3229, %v3232
      %v3250 = vsel %vm3248, %v3238, 2102212464
      %v3251 = vsel %vm3247, %v3235, %v3250
      %v3252 = vsel %vm3246, %v3249, %v3251
      %v3253 = vsel %vm3245, %v3232, %v3235
      %v3254 = vsel %vm3248, %v3241, 920167782
      %v3255 = vsel %vm3247, %v3238, %v3254
      %v3256 = vsel %vm3246, %v3253, %v3255
      %v3257 = vsel %vm3245, %v3235, %v3238
      %v3258 = vsel %vm3248, %v3244, 1326507024
      %v3259 = vsel %vm3247, %v3241, %v3258
      %v3260 = vsel %vm3246, %v3257, %v3259
      %v3261 = vshll.u32 %v3221, 8
      %v3262 = vmul.u32.u64.compose %v3261, %v3260
      %v3263 = vextract.low.u32 %v3262
      %v3264 = vextract.high.u32 %v3262
      %v3265 = vmul.u32.u64.compose %v3261, %v3256
      %v3266 = vextract.low.u32 %v3265
      %v3267 = vextract.high.u32 %v3265
      %v3268 = vmul.u32 %v3261, %v3252
      %v3269 = vadd.s32 %v3264, %v3266
      %vm3270 = vc.u32 %v3264, %v3266
      %v3271 = vadd.s32 %v3267, 1
      %v3272 = vsel %vm3270, %v3271, %v3267
      %v3273 = vadd.s32 %v3268, %v3272
      %v3274 = vadd.s32 %v3273, 536870912
      %v3275 = vshrl.u32 %v3274, 30
      %v3276 = vshll.u32 %v3275, 30
      %v3277 = vsub.s32 %v3273, %v3276
      %vm3278 = vcmp.lt.s32.totalorder %v3277, 0
      %v3279 = vsub.s32 0, %v3277
      %v3280 = vsel %vm3278, %v3279, %v3277
      %v3281 = vclz %v3280
      %v3282 = vsub.s32 %v3281, 2
      %vm3283 = vcmp.gt.s32.totalorder 0, %v3282
      %v3284 = vsel %vm3283, 0, %v3282
      %v3285 = vsub.s32 32, %v3284
      %v3286 = vshll.u32 %v3277, %v3284
      %v3287 = vshrl.u32 %v3269, %v3285
      %v3288 = vor.u32 %v3286, %v3287
      %v3289 = vsub.s32 4294967266, %v3284
      %v3290 = vadd.s32 %v3289, 127
      %v3291 = vshll.u32 %v3290, 23
      %v3292 = vor.u32 4788187, %v3291
      %v3293 = vand.u32 2147483647, %v3292
      %v3295 = vcvt.s32.f32 %v3288
      %v3296 = vmul.f32 %v3295, %v3293
      %v3297 = vxor.u32 %v3296, 2147483648
      %v3298 = vsel %vm3215, %v3297, %v3296
      %v3299 = vsub.s32 4, %v3275
      %v3300 = vsel %vm3215, %v3299, %v3275
      %v3301 = vsel %vm3214, %v503, %v3298
      %v3302 = vsel %vm3214, 0, %v3300
      %v3303 = vcosq.f32.pop %v3301
      %v3304 = vsinq.f32.pop %v3301
      %vm3305 = vweird.f32 %v503
      %v3306 = vadd.s32 %v3302, 3
      %v3307 = vand.u32 %v3306, 3
      %vm3308 = vcmp.lt.s32.totalorder %v3307, 2
      %vm3309 = vcmp.eq.s32.totalorder %v3307, 0
      %v3310 = vxor.u32 %v3304, 2147483648
      %v3311 = vsel %vm3309, %v3303, %v3310
      %vm3312 = vcmp.eq.s32.totalorder %v3307, 2
      %v3313 = vxor.u32 %v3303, 2147483648
      %v3314 = vsel %vm3312, %v3313, %v3304
      %v3315 = vsel %vm3308, %v3311, %v3314
      %v3316 = vsel %vm3305, nan, %v3315
      %v3317 = vand.u32 2147483647, %v504
      %vm3318 = vcmp.le.f32.partialorder %v3317, 0.7853982
      %vm3319 = vcmp.lt.s32.totalorder %v504, 0
      %v3320 = vand.u32 %v504, 2139095040
      %v3321 = vshrl.u32 %v3320, 23
      %v3322 = vsub.s32 %v3321, 127
      %v3323 = vand.u32 2147483647, %v504
      %v3324 = vand.u32 %v3323, 8388607
      %v3325 = vor.u32 %v3324, 8388608
      %v3326 = vsub.s32 0, %v3325
      %v3327 = vadd.s32 %v3322, 1
      %vm3328 = vcmp.gt.s32.totalorder %v3327, 0
      %v3329 = vsel %vm3328, %v3327, 0
      %v3330 = vshrl.u32 %v3329, 5
      %v3331 = vand.u32 %v3329, 31
      %v3332 = vsub.s32 32, %v3331
      %v3333 = vshrl.u32 683565275, %v3332
      %v3334 = vshll.u32 683565275, %v3331
      %v3335 = vshrl.u32 2475754826, %v3332
      %v3336 = vor.u32 %v3334, %v3335
      %v3337 = vshll.u32 2475754826, %v3331
      %v3338 = vshrl.u32 2131351028, %v3332
      %v3339 = vor.u32 %v3337, %v3338
      %v3340 = vshll.u32 2131351028, %v3331
      %v3341 = vshrl.u32 2102212464, %v3332
      %v3342 = vor.u32 %v3340, %v3341
      %v3343 = vshll.u32 2102212464, %v3331
      %v3344 = vshrl.u32 920167782, %v3332
      %v3345 = vor.u32 %v3343, %v3344
      %v3346 = vshll.u32 920167782, %v3331
      %v3347 = vshrl.u32 1326507024, %v3332
      %v3348 = vor.u32 %v3346, %v3347
      %vm3349 = vcmp.lt.s32.totalorder %v3330, 1
      %vm3350 = vcmp.lt.s32.totalorder %v3330, 2
      %vm3351 = vcmp.lt.s32.totalorder %v3330, 3
      %vm3352 = vcmp.lt.s32.totalorder %v3330, 4
      %v3353 = vsel %vm3349, %v3333, %v3336
      %v3354 = vsel %vm3352, %v3342, 2102212464
      %v3355 = vsel %vm3351, %v3339, %v3354
      %v3356 = vsel %vm3350, %v3353, %v3355
      %v3357 = vsel %vm3349, %v3336, %v3339
      %v3358 = vsel %vm3352, %v3345, 920167782
      %v3359 = vsel %vm3351, %v3342, %v3358
      %v3360 = vsel %vm3350, %v3357, %v3359
      %v3361 = vsel %vm3349, %v3339, %v3342
      %v3362 = vsel %vm3352, %v3348, 1326507024
      %v3363 = vsel %vm3351, %v3345, %v3362
      %v3364 = vsel %vm3350, %v3361, %v3363
      %v3365 = vshll.u32 %v3325, 8
      %v3366 = vmul.u32.u64.compose %v3365, %v3364
      %v3367 = vextract.low.u32 %v3366
      %v3368 = vextract.high.u32 %v3366
      %v3369 = vmul.u32.u64.compose %v3365, %v3360
      %v3370 = vextract.low.u32 %v3369
      %v3371 = vextract.high.u32 %v3369
      %v3372 = vmul.u32 %v3365, %v3356
      %v3373 = vadd.s32 %v3368, %v3370
      %vm3374 = vc.u32 %v3368, %v3370
      %v3375 = vadd.s32 %v3371, 1
      %v3376 = vsel %vm3374, %v3375, %v3371
      %v3377 = vadd.s32 %v3372, %v3376
      %v3378 = vadd.s32 %v3377, 536870912
      %v3379 = vshrl.u32 %v3378, 30
      %v3380 = vshll.u32 %v3379, 30
      %v3381 = vsub.s32 %v3377, %v3380
      %vm3382 = vcmp.lt.s32.totalorder %v3381, 0
      %v3383 = vsub.s32 0, %v3381
      %v3384 = vsel %vm3382, %v3383, %v3381
      %v3385 = vclz %v3384
      %v3386 = vsub.s32 %v3385, 2
      %vm3387 = vcmp.gt.s32.totalorder 0, %v3386
      %v3388 = vsel %vm3387, 0, %v3386
      %v3389 = vsub.s32 32, %v3388
      %v3390 = vshll.u32 %v3381, %v3388
      %v3391 = vshrl.u32 %v3373, %v3389
      %v3392 = vor.u32 %v3390, %v3391
      %v3393 = vsub.s32 4294967266, %v3388
      %v3394 = vadd.s32 %v3393, 127
      %v3395 = vshll.u32 %v3394, 23
      %v3396 = vor.u32 4788187, %v3395
      %v3397 = vand.u32 2147483647, %v3396
      %v3399 = vcvt.s32.f32 %v3392
      %v3400 = vmul.f32 %v3399, %v3397
      %v3401 = vxor.u32 %v3400, 2147483648
      %v3402 = vsel %vm3319, %v3401, %v3400
      %v3403 = vsub.s32 4, %v3379
      %v3404 = vsel %vm3319, %v3403, %v3379
      %v3405 = vsel %vm3318, %v504, %v3402
      %v3406 = vsel %vm3318, 0, %v3404
      %v3407 = vcosq.f32.pop %v3405
      %v3408 = vsinq.f32.pop %v3405
      %vm3409 = vweird.f32 %v504
      %v3410 = vadd.s32 %v3406, 3
      %v3411 = vand.u32 %v3410, 3
      %vm3412 = vcmp.lt.s32.totalorder %v3411, 2
      %vm3413 = vcmp.eq.s32.totalorder %v3411, 0
      %v3414 = vxor.u32 %v3408, 2147483648
      %v3415 = vsel %vm3413, %v3407, %v3414
      %vm3416 = vcmp.eq.s32.totalorder %v3411, 2
      %v3417 = vxor.u32 %v3407, 2147483648
      %v3418 = vsel %vm3416, %v3417, %v3408
      %v3419 = vsel %vm3412, %v3415, %v3418
      %v3420 = vsel %vm3409, nan, %v3419
      %v3421 = vand.u32 2147483647, %v505
      %vm3422 = vcmp.le.f32.partialorder %v3421, 0.7853982
      %vm3423 = vcmp.lt.s32.totalorder %v505, 0
      %v3424 = vand.u32 %v505, 2139095040
      %v3425 = vshrl.u32 %v3424, 23
      %v3426 = vsub.s32 %v3425, 127
      %v3427 = vand.u32 2147483647, %v505
      %v3428 = vand.u32 %v3427, 8388607
      %v3429 = vor.u32 %v3428, 8388608
      %v3430 = vsub.s32 0, %v3429
      %v3431 = vadd.s32 %v3426, 1
      %vm3432 = vcmp.gt.s32.totalorder %v3431, 0
      %v3433 = vsel %vm3432, %v3431, 0
      %v3434 = vshrl.u32 %v3433, 5
      %v3435 = vand.u32 %v3433, 31
      %v3436 = vsub.s32 32, %v3435
      %v3437 = vshrl.u32 683565275, %v3436
      %v3438 = vshll.u32 683565275, %v3435
      %v3439 = vshrl.u32 2475754826, %v3436
      %v3440 = vor.u32 %v3438, %v3439
      %v3441 = vshll.u32 2475754826, %v3435
      %v3442 = vshrl.u32 2131351028, %v3436
      %v3443 = vor.u32 %v3441, %v3442
      %v3444 = vshll.u32 2131351028, %v3435
      %v3445 = vshrl.u32 2102212464, %v3436
      %v3446 = vor.u32 %v3444, %v3445
      %v3447 = vshll.u32 2102212464, %v3435
      %v3448 = vshrl.u32 920167782, %v3436
      %v3449 = vor.u32 %v3447, %v3448
      %v3450 = vshll.u32 920167782, %v3435
      %v3451 = vshrl.u32 1326507024, %v3436
      %v3452 = vor.u32 %v3450, %v3451
      %vm3453 = vcmp.lt.s32.totalorder %v3434, 1
      %vm3454 = vcmp.lt.s32.totalorder %v3434, 2
      %vm3455 = vcmp.lt.s32.totalorder %v3434, 3
      %vm3456 = vcmp.lt.s32.totalorder %v3434, 4
      %v3457 = vsel %vm3453, %v3437, %v3440
      %v3458 = vsel %vm3456, %v3446, 2102212464
      %v3459 = vsel %vm3455, %v3443, %v3458
      %v3460 = vsel %vm3454, %v3457, %v3459
      %v3461 = vsel %vm3453, %v3440, %v3443
      %v3462 = vsel %vm3456, %v3449, 920167782
      %v3463 = vsel %vm3455, %v3446, %v3462
      %v3464 = vsel %vm3454, %v3461, %v3463
      %v3465 = vsel %vm3453, %v3443, %v3446
      %v3466 = vsel %vm3456, %v3452, 1326507024
      %v3467 = vsel %vm3455, %v3449, %v3466
      %v3468 = vsel %vm3454, %v3465, %v3467
      %v3469 = vshll.u32 %v3429, 8
      %v3470 = vmul.u32.u64.compose %v3469, %v3468
      %v3471 = vextract.low.u32 %v3470
      %v3472 = vextract.high.u32 %v3470
      %v3473 = vmul.u32.u64.compose %v3469, %v3464
      %v3474 = vextract.low.u32 %v3473
      %v3475 = vextract.high.u32 %v3473
      %v3476 = vmul.u32 %v3469, %v3460
      %v3477 = vadd.s32 %v3472, %v3474
      %vm3478 = vc.u32 %v3472, %v3474
      %v3479 = vadd.s32 %v3475, 1
      %v3480 = vsel %vm3478, %v3479, %v3475
      %v3481 = vadd.s32 %v3476, %v3480
      %v3482 = vadd.s32 %v3481, 536870912
      %v3483 = vshrl.u32 %v3482, 30
      %v3484 = vshll.u32 %v3483, 30
      %v3485 = vsub.s32 %v3481, %v3484
      %vm3486 = vcmp.lt.s32.totalorder %v3485, 0
      %v3487 = vsub.s32 0, %v3485
      %v3488 = vsel %vm3486, %v3487, %v3485
      %v3489 = vclz %v3488
      %v3490 = vsub.s32 %v3489, 2
      %vm3491 = vcmp.gt.s32.totalorder 0, %v3490
      %v3492 = vsel %vm3491, 0, %v3490
      %v3493 = vsub.s32 32, %v3492
      %v3494 = vshll.u32 %v3485, %v3492
      %v3495 = vshrl.u32 %v3477, %v3493
      %v3496 = vor.u32 %v3494, %v3495
      %v3497 = vsub.s32 4294967266, %v3492
      %v3498 = vadd.s32 %v3497, 127
      %v3499 = vshll.u32 %v3498, 23
      %v3500 = vor.u32 4788187, %v3499
      %v3501 = vand.u32 2147483647, %v3500
      %v3503 = vcvt.s32.f32 %v3496
      %v3504 = vmul.f32 %v3503, %v3501
      %v3505 = vxor.u32 %v3504, 2147483648
      %v3506 = vsel %vm3423, %v3505, %v3504
      %v3507 = vsub.s32 4, %v3483
      %v3508 = vsel %vm3423, %v3507, %v3483
      %v3509 = vsel %vm3422, %v505, %v3506
      %v3510 = vsel %vm3422, 0, %v3508
      %v3511 = vcosq.f32.pop %v3509
      %v3512 = vsinq.f32.pop %v3509
      %vm3513 = vweird.f32 %v505
      %v3514 = vadd.s32 %v3510, 3
      %v3515 = vand.u32 %v3514, 3
      %vm3516 = vcmp.lt.s32.totalorder %v3515, 2
      %vm3517 = vcmp.eq.s32.totalorder %v3515, 0
      %v3518 = vxor.u32 %v3512, 2147483648
      %v3519 = vsel %vm3517, %v3511, %v3518
      %vm3520 = vcmp.eq.s32.totalorder %v3515, 2
      %v3521 = vxor.u32 %v3511, 2147483648
      %v3522 = vsel %vm3520, %v3521, %v3512
      %v3523 = vsel %vm3516, %v3519, %v3522
      %v3524 = vsel %vm3513, nan, %v3523
      %v3525 = vand.u32 2147483647, %v506
      %vm3526 = vcmp.le.f32.partialorder %v3525, 0.7853982
      %vm3527 = vcmp.lt.s32.totalorder %v506, 0
      %v3528 = vand.u32 %v506, 2139095040
      %v3529 = vshrl.u32 %v3528, 23
      %v3530 = vsub.s32 %v3529, 127
      %v3531 = vand.u32 2147483647, %v506
      %v3532 = vand.u32 %v3531, 8388607
      %v3533 = vor.u32 %v3532, 8388608
      %v3534 = vsub.s32 0, %v3533
      %v3535 = vadd.s32 %v3530, 1
      %vm3536 = vcmp.gt.s32.totalorder %v3535, 0
      %v3537 = vsel %vm3536, %v3535, 0
      %v3538 = vshrl.u32 %v3537, 5
      %v3539 = vand.u32 %v3537, 31
      %v3540 = vsub.s32 32, %v3539
      %v3541 = vshrl.u32 683565275, %v3540
      %v3542 = vshll.u32 683565275, %v3539
      %v3543 = vshrl.u32 2475754826, %v3540
      %v3544 = vor.u32 %v3542, %v3543
      %v3545 = vshll.u32 2475754826, %v3539
      %v3546 = vshrl.u32 2131351028, %v3540
      %v3547 = vor.u32 %v3545, %v3546
      %v3548 = vshll.u32 2131351028, %v3539
      %v3549 = vshrl.u32 2102212464, %v3540
      %v3550 = vor.u32 %v3548, %v3549
      %v3551 = vshll.u32 2102212464, %v3539
      %v3552 = vshrl.u32 920167782, %v3540
      %v3553 = vor.u32 %v3551, %v3552
      %v3554 = vshll.u32 920167782, %v3539
      %v3555 = vshrl.u32 1326507024, %v3540
      %v3556 = vor.u32 %v3554, %v3555
      %vm3557 = vcmp.lt.s32.totalorder %v3538, 1
      %vm3558 = vcmp.lt.s32.totalorder %v3538, 2
      %vm3559 = vcmp.lt.s32.totalorder %v3538, 3
      %vm3560 = vcmp.lt.s32.totalorder %v3538, 4
      %v3561 = vsel %vm3557, %v3541, %v3544
      %v3562 = vsel %vm3560, %v3550, 2102212464
      %v3563 = vsel %vm3559, %v3547, %v3562
      %v3564 = vsel %vm3558, %v3561, %v3563
      %v3565 = vsel %vm3557, %v3544, %v3547
      %v3566 = vsel %vm3560, %v3553, 920167782
      %v3567 = vsel %vm3559, %v3550, %v3566
      %v3568 = vsel %vm3558, %v3565, %v3567
      %v3569 = vsel %vm3557, %v3547, %v3550
      %v3570 = vsel %vm3560, %v3556, 1326507024
      %v3571 = vsel %vm3559, %v3553, %v3570
      %v3572 = vsel %vm3558, %v3569, %v3571
      %v3573 = vshll.u32 %v3533, 8
      %v3574 = vmul.u32.u64.compose %v3573, %v3572
      %v3575 = vextract.low.u32 %v3574
      %v3576 = vextract.high.u32 %v3574
      %v3577 = vmul.u32.u64.compose %v3573, %v3568
      %v3578 = vextract.low.u32 %v3577
      %v3579 = vextract.high.u32 %v3577
      %v3580 = vmul.u32 %v3573, %v3564
      %v3581 = vadd.s32 %v3576, %v3578
      %vm3582 = vc.u32 %v3576, %v3578
      %v3583 = vadd.s32 %v3579, 1
      %v3584 = vsel %vm3582, %v3583, %v3579
      %v3585 = vadd.s32 %v3580, %v3584
      %v3586 = vadd.s32 %v3585, 536870912
      %v3587 = vshrl.u32 %v3586, 30
      %v3588 = vshll.u32 %v3587, 30
      %v3589 = vsub.s32 %v3585, %v3588
      %vm3590 = vcmp.lt.s32.totalorder %v3589, 0
      %v3591 = vsub.s32 0, %v3589
      %v3592 = vsel %vm3590, %v3591, %v3589
      %v3593 = vclz %v3592
      %v3594 = vsub.s32 %v3593, 2
      %vm3595 = vcmp.gt.s32.totalorder 0, %v3594
      %v3596 = vsel %vm3595, 0, %v3594
      %v3597 = vsub.s32 32, %v3596
      %v3598 = vshll.u32 %v3589, %v3596
      %v3599 = vshrl.u32 %v3581, %v3597
      %v3600 = vor.u32 %v3598, %v3599
      %v3601 = vsub.s32 4294967266, %v3596
      %v3602 = vadd.s32 %v3601, 127
      %v3603 = vshll.u32 %v3602, 23
      %v3604 = vor.u32 4788187, %v3603
      %v3605 = vand.u32 2147483647, %v3604
      %v3607 = vcvt.s32.f32 %v3600
      %v3608 = vmul.f32 %v3607, %v3605
      %v3609 = vxor.u32 %v3608, 2147483648
      %v3610 = vsel %vm3527, %v3609, %v3608
      %v3611 = vsub.s32 4, %v3587
      %v3612 = vsel %vm3527, %v3611, %v3587
      %v3613 = vsel %vm3526, %v506, %v3610
      %v3614 = vsel %vm3526, 0, %v3612
      %v3615 = vcosq.f32.pop %v3613
      %v3616 = vsinq.f32.pop %v3613
      %vm3617 = vweird.f32 %v506
      %v3618 = vadd.s32 %v3614, 3
      %v3619 = vand.u32 %v3618, 3
      %vm3620 = vcmp.lt.s32.totalorder %v3619, 2
      %vm3621 = vcmp.eq.s32.totalorder %v3619, 0
      %v3622 = vxor.u32 %v3616, 2147483648
      %v3623 = vsel %vm3621, %v3615, %v3622
      %vm3624 = vcmp.eq.s32.totalorder %v3619, 2
      %v3625 = vxor.u32 %v3615, 2147483648
      %v3626 = vsel %vm3624, %v3625, %v3616
      %v3627 = vsel %vm3620, %v3623, %v3626
      %v3628 = vsel %vm3617, nan, %v3627
      %v3629 = vand.u32 2147483647, %v507
      %vm3630 = vcmp.le.f32.partialorder %v3629, 0.7853982
      %vm3631 = vcmp.lt.s32.totalorder %v507, 0
      %v3632 = vand.u32 %v507, 2139095040
      %v3633 = vshrl.u32 %v3632, 23
      %v3634 = vsub.s32 %v3633, 127
      %v3635 = vand.u32 2147483647, %v507
      %v3636 = vand.u32 %v3635, 8388607
      %v3637 = vor.u32 %v3636, 8388608
      %v3638 = vsub.s32 0, %v3637
      %v3639 = vadd.s32 %v3634, 1
      %vm3640 = vcmp.gt.s32.totalorder %v3639, 0
      %v3641 = vsel %vm3640, %v3639, 0
      %v3642 = vshrl.u32 %v3641, 5
      %v3643 = vand.u32 %v3641, 31
      %v3644 = vsub.s32 32, %v3643
      %v3645 = vshrl.u32 683565275, %v3644
      %v3646 = vshll.u32 683565275, %v3643
      %v3647 = vshrl.u32 2475754826, %v3644
      %v3648 = vor.u32 %v3646, %v3647
      %v3649 = vshll.u32 2475754826, %v3643
      %v3650 = vshrl.u32 2131351028, %v3644
      %v3651 = vor.u32 %v3649, %v3650
      %v3652 = vshll.u32 2131351028, %v3643
      %v3653 = vshrl.u32 2102212464, %v3644
      %v3654 = vor.u32 %v3652, %v3653
      %v3655 = vshll.u32 2102212464, %v3643
      %v3656 = vshrl.u32 920167782, %v3644
      %v3657 = vor.u32 %v3655, %v3656
      %v3658 = vshll.u32 920167782, %v3643
      %v3659 = vshrl.u32 1326507024, %v3644
      %v3660 = vor.u32 %v3658, %v3659
      %vm3661 = vcmp.lt.s32.totalorder %v3642, 1
      %vm3662 = vcmp.lt.s32.totalorder %v3642, 2
      %vm3663 = vcmp.lt.s32.totalorder %v3642, 3
      %vm3664 = vcmp.lt.s32.totalorder %v3642, 4
      %v3665 = vsel %vm3661, %v3645, %v3648
      %v3666 = vsel %vm3664, %v3654, 2102212464
      %v3667 = vsel %vm3663, %v3651, %v3666
      %v3668 = vsel %vm3662, %v3665, %v3667
      %v3669 = vsel %vm3661, %v3648, %v3651
      %v3670 = vsel %vm3664, %v3657, 920167782
      %v3671 = vsel %vm3663, %v3654, %v3670
      %v3672 = vsel %vm3662, %v3669, %v3671
      %v3673 = vsel %vm3661, %v3651, %v3654
      %v3674 = vsel %vm3664, %v3660, 1326507024
      %v3675 = vsel %vm3663, %v3657, %v3674
      %v3676 = vsel %vm3662, %v3673, %v3675
      %v3677 = vshll.u32 %v3637, 8
      %v3678 = vmul.u32.u64.compose %v3677, %v3676
      %v3679 = vextract.low.u32 %v3678
      %v3680 = vextract.high.u32 %v3678
      %v3681 = vmul.u32.u64.compose %v3677, %v3672
      %v3682 = vextract.low.u32 %v3681
      %v3683 = vextract.high.u32 %v3681
      %v3684 = vmul.u32 %v3677, %v3668
      %v3685 = vadd.s32 %v3680, %v3682
      %vm3686 = vc.u32 %v3680, %v3682
      %v3687 = vadd.s32 %v3683, 1
      %v3688 = vsel %vm3686, %v3687, %v3683
      %v3689 = vadd.s32 %v3684, %v3688
      %v3690 = vadd.s32 %v3689, 536870912
      %v3691 = vshrl.u32 %v3690, 30
      %v3692 = vshll.u32 %v3691, 30
      %v3693 = vsub.s32 %v3689, %v3692
      %vm3694 = vcmp.lt.s32.totalorder %v3693, 0
      %v3695 = vsub.s32 0, %v3693
      %v3696 = vsel %vm3694, %v3695, %v3693
      %v3697 = vclz %v3696
      %v3698 = vsub.s32 %v3697, 2
      %vm3699 = vcmp.gt.s32.totalorder 0, %v3698
      %v3700 = vsel %vm3699, 0, %v3698
      %v3701 = vsub.s32 32, %v3700
      %v3702 = vshll.u32 %v3693, %v3700
      %v3703 = vshrl.u32 %v3685, %v3701
      %v3704 = vor.u32 %v3702, %v3703
      %v3705 = vsub.s32 4294967266, %v3700
      %v3706 = vadd.s32 %v3705, 127
      %v3707 = vshll.u32 %v3706, 23
      %v3708 = vor.u32 4788187, %v3707
      %v3709 = vand.u32 2147483647, %v3708
      %v3711 = vcvt.s32.f32 %v3704
      %v3712 = vmul.f32 %v3711, %v3709
      %v3713 = vxor.u32 %v3712, 2147483648
      %v3714 = vsel %vm3631, %v3713, %v3712
      %v3715 = vsub.s32 4, %v3691
      %v3716 = vsel %vm3631, %v3715, %v3691
      %v3717 = vsel %vm3630, %v507, %v3714
      %v3718 = vsel %vm3630, 0, %v3716
      %v3719 = vcosq.f32.pop %v3717
      %v3720 = vsinq.f32.pop %v3717
      %vm3721 = vweird.f32 %v507
      %v3722 = vadd.s32 %v3718, 3
      %v3723 = vand.u32 %v3722, 3
      %vm3724 = vcmp.lt.s32.totalorder %v3723, 2
      %vm3725 = vcmp.eq.s32.totalorder %v3723, 0
      %v3726 = vxor.u32 %v3720, 2147483648
      %v3727 = vsel %vm3725, %v3719, %v3726
      %vm3728 = vcmp.eq.s32.totalorder %v3723, 2
      %v3729 = vxor.u32 %v3719, 2147483648
      %v3730 = vsel %vm3728, %v3729, %v3720
      %v3731 = vsel %vm3724, %v3727, %v3730
      %v3732 = vsel %vm3721, nan, %v3731
      %v3733 = vand.u32 2147483647, %v508
      %vm3734 = vcmp.le.f32.partialorder %v3733, 0.7853982
      %vm3735 = vcmp.lt.s32.totalorder %v508, 0
      %v3736 = vand.u32 %v508, 2139095040
      %v3737 = vshrl.u32 %v3736, 23
      %v3738 = vsub.s32 %v3737, 127
      %v3739 = vand.u32 2147483647, %v508
      %v3740 = vand.u32 %v3739, 8388607
      %v3741 = vor.u32 %v3740, 8388608
      %v3742 = vsub.s32 0, %v3741
      %v3743 = vadd.s32 %v3738, 1
      %vm3744 = vcmp.gt.s32.totalorder %v3743, 0
      %v3745 = vsel %vm3744, %v3743, 0
      %v3746 = vshrl.u32 %v3745, 5
      %v3747 = vand.u32 %v3745, 31
      %v3748 = vsub.s32 32, %v3747
      %v3749 = vshrl.u32 683565275, %v3748
      %v3750 = vshll.u32 683565275, %v3747
      %v3751 = vshrl.u32 2475754826, %v3748
      %v3752 = vor.u32 %v3750, %v3751
      %v3753 = vshll.u32 2475754826, %v3747
      %v3754 = vshrl.u32 2131351028, %v3748
      %v3755 = vor.u32 %v3753, %v3754
      %v3756 = vshll.u32 2131351028, %v3747
      %v3757 = vshrl.u32 2102212464, %v3748
      %v3758 = vor.u32 %v3756, %v3757
      %v3759 = vshll.u32 2102212464, %v3747
      %v3760 = vshrl.u32 920167782, %v3748
      %v3761 = vor.u32 %v3759, %v3760
      %v3762 = vshll.u32 920167782, %v3747
      %v3763 = vshrl.u32 1326507024, %v3748
      %v3764 = vor.u32 %v3762, %v3763
      %vm3765 = vcmp.lt.s32.totalorder %v3746, 1
      %vm3766 = vcmp.lt.s32.totalorder %v3746, 2
      %vm3767 = vcmp.lt.s32.totalorder %v3746, 3
      %vm3768 = vcmp.lt.s32.totalorder %v3746, 4
      %v3769 = vsel %vm3765, %v3749, %v3752
      %v3770 = vsel %vm3768, %v3758, 2102212464
      %v3771 = vsel %vm3767, %v3755, %v3770
      %v3772 = vsel %vm3766, %v3769, %v3771
      %v3773 = vsel %vm3765, %v3752, %v3755
      %v3774 = vsel %vm3768, %v3761, 920167782
      %v3775 = vsel %vm3767, %v3758, %v3774
      %v3776 = vsel %vm3766, %v3773, %v3775
      %v3777 = vsel %vm3765, %v3755, %v3758
      %v3778 = vsel %vm3768, %v3764, 1326507024
      %v3779 = vsel %vm3767, %v3761, %v3778
      %v3780 = vsel %vm3766, %v3777, %v3779
      %v3781 = vshll.u32 %v3741, 8
      %v3782 = vmul.u32.u64.compose %v3781, %v3780
      %v3783 = vextract.low.u32 %v3782
      %v3784 = vextract.high.u32 %v3782
      %v3785 = vmul.u32.u64.compose %v3781, %v3776
      %v3786 = vextract.low.u32 %v3785
      %v3787 = vextract.high.u32 %v3785
      %v3788 = vmul.u32 %v3781, %v3772
      %v3789 = vadd.s32 %v3784, %v3786
      %vm3790 = vc.u32 %v3784, %v3786
      %v3791 = vadd.s32 %v3787, 1
      %v3792 = vsel %vm3790, %v3791, %v3787
      %v3793 = vadd.s32 %v3788, %v3792
      %v3794 = vadd.s32 %v3793, 536870912
      %v3795 = vshrl.u32 %v3794, 30
      %v3796 = vshll.u32 %v3795, 30
      %v3797 = vsub.s32 %v3793, %v3796
      %vm3798 = vcmp.lt.s32.totalorder %v3797, 0
      %v3799 = vsub.s32 0, %v3797
      %v3800 = vsel %vm3798, %v3799, %v3797
      %v3801 = vclz %v3800
      %v3802 = vsub.s32 %v3801, 2
      %vm3803 = vcmp.gt.s32.totalorder 0, %v3802
      %v3804 = vsel %vm3803, 0, %v3802
      %v3805 = vsub.s32 32, %v3804
      %v3806 = vshll.u32 %v3797, %v3804
      %v3807 = vshrl.u32 %v3789, %v3805
      %v3808 = vor.u32 %v3806, %v3807
      %v3809 = vsub.s32 4294967266, %v3804
      %v3810 = vadd.s32 %v3809, 127
      %v3811 = vshll.u32 %v3810, 23
      %v3812 = vor.u32 4788187, %v3811
      %v3813 = vand.u32 2147483647, %v3812
      %v3815 = vcvt.s32.f32 %v3808
      %v3816 = vmul.f32 %v3815, %v3813
      %v3817 = vxor.u32 %v3816, 2147483648
      %v3818 = vsel %vm3735, %v3817, %v3816
      %v3819 = vsub.s32 4, %v3795
      %v3820 = vsel %vm3735, %v3819, %v3795
      %v3821 = vsel %vm3734, %v508, %v3818
      %v3822 = vsel %vm3734, 0, %v3820
      %v3823 = vcosq.f32.pop %v3821
      %v3824 = vsinq.f32.pop %v3821
      %vm3825 = vweird.f32 %v508
      %v3826 = vadd.s32 %v3822, 3
      %v3827 = vand.u32 %v3826, 3
      %vm3828 = vcmp.lt.s32.totalorder %v3827, 2
      %vm3829 = vcmp.eq.s32.totalorder %v3827, 0
      %v3830 = vxor.u32 %v3824, 2147483648
      %v3831 = vsel %vm3829, %v3823, %v3830
      %vm3832 = vcmp.eq.s32.totalorder %v3827, 2
      %v3833 = vxor.u32 %v3823, 2147483648
      %v3834 = vsel %vm3832, %v3833, %v3824
      %v3835 = vsel %vm3828, %v3831, %v3834
      %v3836 = vsel %vm3825, nan, %v3835
      %v3837 = vld [vmem:[%s1 + $0x10] sm:$0xff]
      %v3838 = vld [vmem:[%s1 + $0x18] sm:$0xff]
      %v3839 = vld [vmem:[%s1 + $0x20] sm:$0xff]
      %v3840 = vld [vmem:[%s1 + $0x28] sm:$0xff]
      %3842 = vset.pattern.permute.xlu0 36
      %3843 = vperm.xlu0 %3842, %v3837
      %v3844 = vpop.permute.xlu0 %3843
      %3847 = vset.pattern.permute.xlu0 36
      %3848 = vperm.xlu0 %3847, %v3838
      %v3849 = vpop.permute.xlu0 %3848
      %3852 = vset.pattern.permute.xlu0 36
      %3853 = vperm.xlu0 %3852, %v3839
      %v3854 = vpop.permute.xlu0 %3853
      %3857 = vset.pattern.permute.xlu0 36
      %3858 = vperm.xlu0 %3857, %v3840
      %v3859 = vpop.permute.xlu0 %3858
      %vm3861 = vcmask 293888
      %v3862 = vsel %vm3861, %v3837, 0
      %v3864 = vsel %vm3861, %v3838, 0
      %v3866 = vsel %vm3861, %v3839, 0
      %v3868 = vsel %vm3861, %v3840, 0
      %3870 = vmatprep.subr.mxu0 %v716
      %3871 = vmatpush1.msra.mxu0 %v612
      %3872 = vmatprep.subr.mxu0 %v1548
      %3873 = vmatpush1.msra.mxu0 %v1444
      %3874 = vmatprep.subr.mxu0 %v2380
      %3875 = vmatpush1.msra.mxu0 %v2276
      %3876 = vmatprep.subr.mxu0 %v3212
      %3877 = vmatpush1.msra.mxu0 %v3108
      %3878 = vmatprep.subr.mxu0 %v171
      %3879 = vmatpush1.msra.mxu0 %v169
      %3880 = vmatprep.subr.mxu0 0.0
      %3881 = vmatpush1.msra.mxu0 0.0
      %3882 = vmatprep.subr.mxu0 0.0
      %3883 = vmatpush1.msra.mxu0 0.0
      %3884 = vmatprep.subr.mxu0 0.0
      %3885 = vmatpush1.msra.mxu0 0.0
      %3886 = vmatprep.subr.mxu0 0.0
      %3887 = vmatpush1.msra.mxu0 0.0
      %3888 = vmatprep.subr.mxu0 0.0
      %3889 = vmatpush1.msra.mxu0 0.0
      %3890 = vmatprep.subr.mxu0 0.0
      %3891 = vmatpush1.msra.mxu0 0.0
      %3892 = vmatprep.subr.mxu0 0.0
      %3893 = vmatpush1.msra.mxu0 0.0
      %3894 = vmatprep.subr.mxu0 0.0
      %3895 = vmatpush1.msra.mxu0 0.0
      %3896 = vmatprep.subr.mxu0 0.0
      %3897 = vmatpush1.msra.mxu0 0.0
      %3898 = vmatprep.subr.mxu0 0.0
      %3899 = vmatpush1.msra.mxu0 0.0
      %3900 = vmatprep.subr.mxu0 0.0
      %3901 = vmatpush1.msra.mxu0 0.0
      %3902 = vmatprep.subr.mxu0 0.0
      %3903 = vmatpush1.msra.mxu0 0.0
      %3904 = vmatprep.subr.mxu0 0.0
      %3905 = vmatpush1.msra.mxu0 0.0
      %3906 = vmatprep.subr.mxu0 0.0
      %3907 = vmatpush1.msra.mxu0 0.0
      %3908 = vmatprep.subr.mxu0 0.0
      %3909 = vmatpush1.msra.mxu0 0.0
      %3910 = vmatprep.subr.mxu0 0.0
      %3911 = vmatpush1.msra.mxu0 0.0
      %3912 = vmatprep.subr.mxu0 0.0
      %3913 = vmatpush1.msra.mxu0 0.0
      %3914 = vmatprep.subr.mxu0 0.0
      %3915 = vmatpush1.msra.mxu0 0.0
      %3916 = vmatprep.subr.mxu0 0.0
      %3917 = vmatpush1.msra.mxu0 0.0
      %3918 = vmatprep.subr.mxu0 0.0
      %3919 = vmatpush1.msra.mxu0 0.0
      %3920 = vmatprep.subr.mxu0 0.0
      %3921 = vmatpush1.msra.mxu0 0.0
      %3922 = vmatprep.subr.mxu0 0.0
      %3923 = vmatpush1.msra.mxu0 0.0
      %3924 = vmatprep.subr.mxu0 0.0
      %3925 = vmatpush1.msra.mxu0 0.0
      %3926 = vmatprep.subr.mxu0 0.0
      %3927 = vmatpush1.msra.mxu0 0.0
      %3928 = vmatprep.subr.mxu0 0.0
      %3929 = vmatpush1.msra.mxu0 0.0
      %3930 = vmatprep.subr.mxu0 0.0
      %3931 = vmatpush1.msra.mxu0 0.0
      %3932 = vmatprep.subr.mxu0 0.0
      %3933 = vmatpush1.msra.mxu0 0.0
      %3934 = vmatprep.mubr.f32.mxu0 0.0
      %3935 = vmatmul.mubr.f32.gmra.mrb[0].mxu0 %v3862
      %v3936 = vpop.f32.mrb[0].mxu0
      %v3937 = vadd.f32 %v3844, %v3936
      %v3938 = vpop.f32.mrb[0].mxu0
      %v3939 = vadd.f32 %v3844, %v3938
      %3940 = vmatprep.mubr.f32.mxu0 0.0
      %3941 = vmatmul.mubr.f32.gmra.mrb[0].mxu0 %v3864
      %v3942 = vpop.f32.mrb[0].mxu0
      %v3943 = vadd.f32 %v3849, %v3942
      %v3944 = vpop.f32.mrb[0].mxu0
      %v3945 = vadd.f32 %v3849, %v3944
      %3946 = vmatprep.mubr.f32.mxu0 0.0
      %3947 = vmatmul.mubr.f32.gmra.mrb[0].mxu0 %v3866
      %v3948 = vpop.f32.mrb[0].mxu0
      %v3949 = vadd.f32 %v3854, %v3948
      %v3950 = vpop.f32.mrb[0].mxu0
      %v3951 = vadd.f32 %v3854, %v3950
      %3952 = vmatprep.mubr.f32.mxu0 0.0
      %3953 = vmatmul.mubr.f32.gmra.mrb[0].mxu0 %v3868
      %v3954 = vpop.f32.mrb[0].mxu0
      %v3955 = vadd.f32 %v3859, %v3954
      %v3956 = vpop.f32.mrb[0].mxu0
      %v3957 = vadd.f32 %v3859, %v3956
      %3958 = vdwg.mxu0
      %3959 = vmatprep.subr.mxu0 %v924
      %3960 = vmatpush1.msra.mxu0 %v820
      %3961 = vmatprep.subr.mxu0 %v1756
      %3962 = vmatpush1.msra.mxu0 %v1652
      %3963 = vmatprep.subr.mxu0 %v2588
      %3964 = vmatpush1.msra.mxu0 %v2484
      %3965 = vmatprep.subr.mxu0 %v3420
      %3966 = vmatpush1.msra.mxu0 %v3316
      %3967 = vmatprep.subr.mxu0 %v175
      %3968 = vmatpush1.msra.mxu0 %v173
      %3969 = vmatprep.subr.mxu0 0.0
      %3970 = vmatpush1.msra.mxu0 0.0
      %3971 = vmatprep.subr.mxu0 0.0
      %3972 = vmatpush1.msra.mxu0 0.0
      %3973 = vmatprep.subr.mxu0 0.0
      %3974 = vmatpush1.msra.mxu0 0.0
      %3975 = vmatprep.subr.mxu0 0.0
      %3976 = vmatpush1.msra.mxu0 0.0
      %3977 = vmatprep.subr.mxu0 0.0
      %3978 = vmatpush1.msra.mxu0 0.0
      %3979 = vmatprep.subr.mxu0 0.0
      %3980 = vmatpush1.msra.mxu0 0.0
      %3981 = vmatprep.subr.mxu0 0.0
      %3982 = vmatpush1.msra.mxu0 0.0
      %3983 = vmatprep.subr.mxu0 0.0
      %3984 = vmatpush1.msra.mxu0 0.0
      %3985 = vmatprep.subr.mxu0 0.0
      %3986 = vmatpush1.msra.mxu0 0.0
      %3987 = vmatprep.subr.mxu0 0.0
      %3988 = vmatpush1.msra.mxu0 0.0
      %3989 = vmatprep.subr.mxu0 0.0
      %3990 = vmatpush1.msra.mxu0 0.0
      %3991 = vmatprep.subr.mxu0 0.0
      %3992 = vmatpush1.msra.mxu0 0.0
      %3993 = vmatprep.subr.mxu0 0.0
      %3994 = vmatpush1.msra.mxu0 0.0
      %3995 = vmatprep.subr.mxu0 0.0
      %3996 = vmatpush1.msra.mxu0 0.0
      %3997 = vmatprep.subr.mxu0 0.0
      %3998 = vmatpush1.msra.mxu0 0.0
      %3999 = vmatprep.subr.mxu0 0.0
      %4000 = vmatpush1.msra.mxu0 0.0
      %4001 = vmatprep.subr.mxu0 0.0
      %4002 = vmatpush1.msra.mxu0 0.0
      %4003 = vmatprep.subr.mxu0 0.0
      %4004 = vmatpush1.msra.mxu0 0.0
      %4005 = vmatprep.subr.mxu0 0.0
      %4006 = vmatpush1.msra.mxu0 0.0
      %4007 = vmatprep.subr.mxu0 0.0
      %4008 = vmatpush1.msra.mxu0 0.0
      %4009 = vmatprep.subr.mxu0 0.0
      %4010 = vmatpush1.msra.mxu0 0.0
      %4011 = vmatprep.subr.mxu0 0.0
      %4012 = vmatpush1.msra.mxu0 0.0
      %4013 = vmatprep.subr.mxu0 0.0
      %4014 = vmatpush1.msra.mxu0 0.0
      %4015 = vmatprep.subr.mxu0 0.0
      %4016 = vmatpush1.msra.mxu0 0.0
      %4017 = vmatprep.subr.mxu0 0.0
      %4018 = vmatpush1.msra.mxu0 0.0
      %4019 = vmatprep.subr.mxu0 0.0
      %4020 = vmatpush1.msra.mxu0 0.0
      %4021 = vmatprep.subr.mxu0 0.0
      %4022 = vmatpush1.msra.mxu0 0.0
      %4023 = vmatprep.mubr.f32.mxu0 0.0
      %4024 = vmatmul.mubr.f32.gmra.mrb[0].mxu0 %v3862
      %v4025 = vpop.f32.mrb[0].mxu0
      %v4026 = vadd.f32 %v3844, %v4025
      %v4027 = vpop.f32.mrb[0].mxu0
      %v4028 = vadd.f32 %v3844, %v4027
      %4029 = vmatprep.mubr.f32.mxu0 0.0
      %4030 = vmatmul.mubr.f32.gmra.mrb[0].mxu0 %v3864
      %v4031 = vpop.f32.mrb[0].mxu0
      %v4032 = vadd.f32 %v3849, %v4031
      %v4033 = vpop.f32.mrb[0].mxu0
      %v4034 = vadd.f32 %v3849, %v4033
      %4035 = vmatprep.mubr.f32.mxu0 0.0
      %4036 = vmatmul.mubr.f32.gmra.mrb[0].mxu0 %v3866
      %v4037 = vpop.f32.mrb[0].mxu0
      %v4038 = vadd.f32 %v3854, %v4037
      %v4039 = vpop.f32.mrb[0].mxu0
      %v4040 = vadd.f32 %v3854, %v4039
      %4041 = vmatprep.mubr.f32.mxu0 0.0
      %4042 = vmatmul.mubr.f32.gmra.mrb[0].mxu0 %v3868
      %v4043 = vpop.f32.mrb[0].mxu0
      %v4044 = vadd.f32 %v3859, %v4043
      %v4045 = vpop.f32.mrb[0].mxu0
      %v4046 = vadd.f32 %v3859, %v4045
      %4047 = vdwg.mxu0
      %4048 = vmatprep.subr.mxu0 %v1132
      %4049 = vmatpush1.msra.mxu0 %v1028
      %4050 = vmatprep.subr.mxu0 %v1964
      %4051 = vmatpush1.msra.mxu0 %v1860
      %4052 = vmatprep.subr.mxu0 %v2796
      %4053 = vmatpush1.msra.mxu0 %v2692
      %4054 = vmatprep.subr.mxu0 %v3628
      %4055 = vmatpush1.msra.mxu0 %v3524
      %4056 = vmatprep.subr.mxu0 %v179
      %4057 = vmatpush1.msra.mxu0 %v177
      %4058 = vmatprep.subr.mxu0 0.0
      %4059 = vmatpush1.msra.mxu0 0.0
      %4060 = vmatprep.subr.mxu0 0.0
      %4061 = vmatpush1.msra.mxu0 0.0
      %4062 = vmatprep.subr.mxu0 0.0
      %4063 = vmatpush1.msra.mxu0 0.0
      %4064 = vmatprep.subr.mxu0 0.0
      %4065 = vmatpush1.msra.mxu0 0.0
      %4066 = vmatprep.subr.mxu0 0.0
      %4067 = vmatpush1.msra.mxu0 0.0
      %4068 = vmatprep.subr.mxu0 0.0
      %4069 = vmatpush1.msra.mxu0 0.0
      %4070 = vmatprep.subr.mxu0 0.0
      %4071 = vmatpush1.msra.mxu0 0.0
      %4072 = vmatprep.subr.mxu0 0.0
      %4073 = vmatpush1.msra.mxu0 0.0
      %4074 = vmatprep.subr.mxu0 0.0
      %4075 = vmatpush1.msra.mxu0 0.0
      %4076 = vmatprep.subr.mxu0 0.0
      %4077 = vmatpush1.msra.mxu0 0.0
      %4078 = vmatprep.subr.mxu0 0.0
      %4079 = vmatpush1.msra.mxu0 0.0
      %4080 = vmatprep.subr.mxu0 0.0
      %4081 = vmatpush1.msra.mxu0 0.0
      %4082 = vmatprep.subr.mxu0 0.0
      %4083 = vmatpush1.msra.mxu0 0.0
      %4084 = vmatprep.subr.mxu0 0.0
      %4085 = vmatpush1.msra.mxu0 0.0
      %4086 = vmatprep.subr.mxu0 0.0
      %4087 = vmatpush1.msra.mxu0 0.0
      %4088 = vmatprep.subr.mxu0 0.0
      %4089 = vmatpush1.msra.mxu0 0.0
      %4090 = vmatprep.subr.mxu0 0.0
      %4091 = vmatpush1.msra.mxu0 0.0
      %4092 = vmatprep.subr.mxu0 0.0
      %4093 = vmatpush1.msra.mxu0 0.0
      %4094 = vmatprep.subr.mxu0 0.0
      %4095 = vmatpush1.msra.mxu0 0.0
      %4096 = vmatprep.subr.mxu0 0.0
      %4097 = vmatpush1.msra.mxu0 0.0
      %4098 = vmatprep.subr.mxu0 0.0
      %4099 = vmatpush1.msra.mxu0 0.0
      %4100 = vmatprep.subr.mxu0 0.0
      %4101 = vmatpush1.msra.mxu0 0.0
      %4102 = vmatprep.subr.mxu0 0.0
      %4103 = vmatpush1.msra.mxu0 0.0
      %4104 = vmatprep.subr.mxu0 0.0
      %4105 = vmatpush1.msra.mxu0 0.0
      %4106 = vmatprep.subr.mxu0 0.0
      %4107 = vmatpush1.msra.mxu0 0.0
      %4108 = vmatprep.subr.mxu0 0.0
      %4109 = vmatpush1.msra.mxu0 0.0
      %4110 = vmatprep.subr.mxu0 0.0
      %4111 = vmatpush1.msra.mxu0 0.0
      %4112 = vmatprep.mubr.f32.mxu0 0.0
      %4113 = vmatmul.mubr.f32.gmra.mrb[0].mxu0 %v3862
      %v4114 = vpop.f32.mrb[0].mxu0
      %v4115 = vadd.f32 %v3844, %v4114
      %v4116 = vpop.f32.mrb[0].mxu0
      %v4117 = vadd.f32 %v3844, %v4116
      %4118 = vmatprep.mubr.f32.mxu0 0.0
      %4119 = vmatmul.mubr.f32.gmra.mrb[0].mxu0 %v3864
      %v4120 = vpop.f32.mrb[0].mxu0
      %v4121 = vadd.f32 %v3849, %v4120
      %v4122 = vpop.f32.mrb[0].mxu0
      %v4123 = vadd.f32 %v3849, %v4122
      %4124 = vmatprep.mubr.f32.mxu0 0.0
      %4125 = vmatmul.mubr.f32.gmra.mrb[0].mxu0 %v3866
      %v4126 = vpop.f32.mrb[0].mxu0
      %v4127 = vadd.f32 %v3854, %v4126
      %v4128 = vpop.f32.mrb[0].mxu0
      %v4129 = vadd.f32 %v3854, %v4128
      %4130 = vmatprep.mubr.f32.mxu0 0.0
      %4131 = vmatmul.mubr.f32.gmra.mrb[0].mxu0 %v3868
      %v4132 = vpop.f32.mrb[0].mxu0
      %v4133 = vadd.f32 %v3859, %v4132
      %v4134 = vpop.f32.mrb[0].mxu0
      %v4135 = vadd.f32 %v3859, %v4134
      %4136 = vdwg.mxu0
      %4137 = vmatprep.subr.mxu0 %v1340
      %4138 = vmatpush1.msra.mxu0 %v1236
      %4139 = vmatprep.subr.mxu0 %v2172
      %4140 = vmatpush1.msra.mxu0 %v2068
      %4141 = vmatprep.subr.mxu0 %v3004
      %4142 = vmatpush1.msra.mxu0 %v2900
      %4143 = vmatprep.subr.mxu0 %v3836
      %4144 = vmatpush1.msra.mxu0 %v3732
      %4145 = vmatprep.subr.mxu0 %v183
      %4146 = vmatpush1.msra.mxu0 %v181
      %4147 = vmatprep.subr.mxu0 0.0
      %4148 = vmatpush1.msra.mxu0 0.0
      %4149 = vmatprep.subr.mxu0 0.0
      %4150 = vmatpush1.msra.mxu0 0.0
      %4151 = vmatprep.subr.mxu0 0.0
      %4152 = vmatpush1.msra.mxu0 0.0
      %4153 = vmatprep.subr.mxu0 0.0
      %4154 = vmatpush1.msra.mxu0 0.0
      %4155 = vmatprep.subr.mxu0 0.0
      %4156 = vmatpush1.msra.mxu0 0.0
      %4157 = vmatprep.subr.mxu0 0.0
      %4158 = vmatpush1.msra.mxu0 0.0
      %4159 = vmatprep.subr.mxu0 0.0
      %4160 = vmatpush1.msra.mxu0 0.0
      %4161 = vmatprep.subr.mxu0 0.0
      %4162 = vmatpush1.msra.mxu0 0.0
      %4163 = vmatprep.subr.mxu0 0.0
      %4164 = vmatpush1.msra.mxu0 0.0
      %4165 = vmatprep.subr.mxu0 0.0
      %4166 = vmatpush1.msra.mxu0 0.0
      %4167 = vmatprep.subr.mxu0 0.0
      %4168 = vmatpush1.msra.mxu0 0.0
      %4169 = vmatprep.subr.mxu0 0.0
      %4170 = vmatpush1.msra.mxu0 0.0
      %4171 = vmatprep.subr.mxu0 0.0
      %4172 = vmatpush1.msra.mxu0 0.0
      %4173 = vmatprep.subr.mxu0 0.0
      %4174 = vmatpush1.msra.mxu0 0.0
      %4175 = vmatprep.subr.mxu0 0.0
      %4176 = vmatpush1.msra.mxu0 0.0
      %4177 = vmatprep.subr.mxu0 0.0
      %4178 = vmatpush1.msra.mxu0 0.0
      %4179 = vmatprep.subr.mxu0 0.0
      %4180 = vmatpush1.msra.mxu0 0.0
      %4181 = vmatprep.subr.mxu0 0.0
      %4182 = vmatpush1.msra.mxu0 0.0
      %4183 = vmatprep.subr.mxu0 0.0
      %4184 = vmatpush1.msra.mxu0 0.0
      %4185 = vmatprep.subr.mxu0 0.0
      %4186 = vmatpush1.msra.mxu0 0.0
      %4187 = vmatprep.subr.mxu0 0.0
      %4188 = vmatpush1.msra.mxu0 0.0
      %4189 = vmatprep.subr.mxu0 0.0
      %4190 = vmatpush1.msra.mxu0 0.0
      %4191 = vmatprep.subr.mxu0 0.0
      %4192 = vmatpush1.msra.mxu0 0.0
      %4193 = vmatprep.subr.mxu0 0.0
      %4194 = vmatpush1.msra.mxu0 0.0
      %4195 = vmatprep.subr.mxu0 0.0
      %4196 = vmatpush1.msra.mxu0 0.0
      %4197 = vmatprep.subr.mxu0 0.0
      %4198 = vmatpush1.msra.mxu0 0.0
      %4199 = vmatprep.subr.mxu0 0.0
      %4200 = vmatpush1.msra.mxu0 0.0
      %4201 = vmatprep.mubr.f32.mxu0 0.0
      %4202 = vmatmul.mubr.f32.gmra.mrb[0].mxu0 %v3862
      %v4203 = vpop.f32.mrb[0].mxu0
      %v4204 = vadd.f32 %v3844, %v4203
      %v4205 = vpop.f32.mrb[0].mxu0
      %v4206 = vadd.f32 %v3844, %v4205
      %4207 = vmatprep.mubr.f32.mxu0 0.0
      %4208 = vmatmul.mubr.f32.gmra.mrb[0].mxu0 %v3864
      %v4209 = vpop.f32.mrb[0].mxu0
      %v4210 = vadd.f32 %v3849, %v4209
      %v4211 = vpop.f32.mrb[0].mxu0
      %v4212 = vadd.f32 %v3849, %v4211
      %4213 = vmatprep.mubr.f32.mxu0 0.0
      %4214 = vmatmul.mubr.f32.gmra.mrb[0].mxu0 %v3866
      %v4215 = vpop.f32.mrb[0].mxu0
      %v4216 = vadd.f32 %v3854, %v4215
      %v4217 = vpop.f32.mrb[0].mxu0
      %v4218 = vadd.f32 %v3854, %v4217
      %4219 = vmatprep.mubr.f32.mxu0 0.0
      %4220 = vmatmul.mubr.f32.gmra.mrb[0].mxu0 %v3868
      %v4221 = vpop.f32.mrb[0].mxu0
      %v4222 = vadd.f32 %v3859, %v4221
      %v4223 = vpop.f32.mrb[0].mxu0
      %v4224 = vadd.f32 %v3859, %v4223
      %4225 = vdwg.mxu0
      %v4226 = vmax.f32 %v3937, 0.0
      %v4227 = vmax.f32 %v3939, 0.0
      %v4228 = vmax.f32 %v4026, 0.0
      %v4229 = vmax.f32 %v4028, 0.0
      %v4230 = vmax.f32 %v4115, 0.0
      %v4231 = vmax.f32 %v4117, 0.0
      %v4232 = vmax.f32 %v4204, 0.0
      %v4233 = vmax.f32 %v4206, 0.0
      %v4234 = vmax.f32 %v3943, 0.0
      %v4235 = vmax.f32 %v3945, 0.0
      %v4236 = vmax.f32 %v4032, 0.0
      %v4237 = vmax.f32 %v4034, 0.0
      %v4238 = vmax.f32 %v4121, 0.0
      %v4239 = vmax.f32 %v4123, 0.0
      %v4240 = vmax.f32 %v4210, 0.0
      %v4241 = vmax.f32 %v4212, 0.0
      %v4242 = vmax.f32 %v3949, 0.0
      %v4243 = vmax.f32 %v3951, 0.0
      %v4244 = vmax.f32 %v4038, 0.0
      %v4245 = vmax.f32 %v4040, 0.0
      %v4246 = vmax.f32 %v4127, 0.0
      %v4247 = vmax.f32 %v4129, 0.0
      %v4248 = vmax.f32 %v4216, 0.0
      %v4249 = vmax.f32 %v4218, 0.0
      %v4250 = vmax.f32 %v3955, 0.0
      %v4251 = vmax.f32 %v3957, 0.0
      %v4252 = vmax.f32 %v4044, 0.0
      %v4253 = vmax.f32 %v4046, 0.0
      %v4254 = vmax.f32 %v4133, 0.0
      %v4255 = vmax.f32 %v4135, 0.0
      %v4256 = vmax.f32 %v4222, 0.0
      %v4257 = vmax.f32 %v4224, 0.0
      %v4258 = vld [vmem:[%s1 + $0x30] sm:$0xff]
      %v4259 = vld [vmem:[%s1 + $0x38] sm:$0xff]
      %v4260 = vld [vmem:[%s1 + $0x40] sm:$0xff]
      %v4261 = vld [vmem:[%s1 + $0x48] sm:$0xff]
      %4263 = vset.pattern.permute.xlu0 32
      %4264 = vperm.xlu0 %4263, %v4258
      %v4265 = vpop.permute.xlu0 %4264
      %4268 = vset.pattern.permute.xlu0 32
      %4269 = vperm.xlu0 %4268, %v4259
      %v4270 = vpop.permute.xlu0 %4269
      %4273 = vset.pattern.permute.xlu0 32
      %4274 = vperm.xlu0 %4273, %v4260
      %v4275 = vpop.permute.xlu0 %4274
      %4278 = vset.pattern.permute.xlu0 32
      %4279 = vperm.xlu0 %4278, %v4261
      %v4280 = vpop.permute.xlu0 %4279
      %vm4282 = vcmask 261120
      %v4283 = vsel %vm4282, %v4258, 0
      %v4285 = vsel %vm4282, %v4259, 0
      %v4287 = vsel %vm4282, %v4260, 0
      %v4289 = vsel %vm4282, %v4261, 0
      %4291 = vmatprep.subr.mxu0 %v4227
      %4292 = vmatpush1.msra.mxu0 %v4226
      %4293 = vmatprep.subr.mxu0 %v4235
      %4294 = vmatpush1.msra.mxu0 %v4234
      %4295 = vmatprep.subr.mxu0 %v4243
      %4296 = vmatpush1.msra.mxu0 %v4242
      %4297 = vmatprep.subr.mxu0 %v4251
      %4298 = vmatpush1.msra.mxu0 %v4250
      %4299 = vmatprep.subr.mxu0 0.0
      %4300 = vmatpush1.msra.mxu0 0.0
      %4301 = vmatprep.subr.mxu0 0.0
      %4302 = vmatpush1.msra.mxu0 0.0
      %4303 = vmatprep.subr.mxu0 0.0
      %4304 = vmatpush1.msra.mxu0 0.0
      %4305 = vmatprep.subr.mxu0 0.0
      %4306 = vmatpush1.msra.mxu0 0.0
      %4307 = vmatprep.subr.mxu0 0.0
      %4308 = vmatpush1.msra.mxu0 0.0
      %4309 = vmatprep.subr.mxu0 0.0
      %4310 = vmatpush1.msra.mxu0 0.0
      %4311 = vmatprep.subr.mxu0 0.0
      %4312 = vmatpush1.msra.mxu0 0.0
      %4313 = vmatprep.subr.mxu0 0.0
      %4314 = vmatpush1.msra.mxu0 0.0
      %4315 = vmatprep.subr.mxu0 0.0
      %4316 = vmatpush1.msra.mxu0 0.0
      %4317 = vmatprep.subr.mxu0 0.0
      %4318 = vmatpush1.msra.mxu0 0.0
      %4319 = vmatprep.subr.mxu0 0.0
      %4320 = vmatpush1.msra.mxu0 0.0
      %4321 = vmatprep.subr.mxu0 0.0
      %4322 = vmatpush1.msra.mxu0 0.0
      %4323 = vmatprep.subr.mxu0 0.0
      %4324 = vmatpush1.msra.mxu0 0.0
      %4325 = vmatprep.subr.mxu0 0.0
      %4326 = vmatpush1.msra.mxu0 0.0
      %4327 = vmatprep.subr.mxu0 0.0
      %4328 = vmatpush1.msra.mxu0 0.0
      %4329 = vmatprep.subr.mxu0 0.0
      %4330 = vmatpush1.msra.mxu0 0.0
      %4331 = vmatprep.subr.mxu0 0.0
      %4332 = vmatpush1.msra.mxu0 0.0
      %4333 = vmatprep.subr.mxu0 0.0
      %4334 = vmatpush1.msra.mxu0 0.0
      %4335 = vmatprep.subr.mxu0 0.0
      %4336 = vmatpush1.msra.mxu0 0.0
      %4337 = vmatprep.subr.mxu0 0.0
      %4338 = vmatpush1.msra.mxu0 0.0
      %4339 = vmatprep.subr.mxu0 0.0
      %4340 = vmatpush1.msra.mxu0 0.0
      %4341 = vmatprep.subr.mxu0 0.0
      %4342 = vmatpush1.msra.mxu0 0.0
      %4343 = vmatprep.subr.mxu0 0.0
      %4344 = vmatpush1.msra.mxu0 0.0
      %4345 = vmatprep.subr.mxu0 0.0
      %4346 = vmatpush1.msra.mxu0 0.0
      %4347 = vmatprep.subr.mxu0 0.0
      %4348 = vmatpush1.msra.mxu0 0.0
      %4349 = vmatprep.subr.mxu0 0.0
      %4350 = vmatpush1.msra.mxu0 0.0
      %4351 = vmatprep.subr.mxu0 0.0
      %4352 = vmatpush1.msra.mxu0 0.0
      %4353 = vmatprep.subr.mxu0 0.0
      %4354 = vmatpush1.msra.mxu0 0.0
      %4355 = vmatprep.mubr.f32.mxu0 0.0
      %4356 = vmatmul.mubr.f32.gmra.mrb[0].mxu0 %v4283
      %v4357 = vpop.f32.mrb[0].mxu0
      %v4358 = vadd.f32 %v4265, %v4357
      %v4359 = vpop.f32.mrb[0].mxu0
      %v4360 = vadd.f32 %v4265, %v4359
      %4361 = vmatprep.mubr.f32.mxu0 0.0
      %4362 = vmatmul.mubr.f32.gmra.mrb[0].mxu0 %v4285
      %v4363 = vpop.f32.mrb[0].mxu0
      %v4364 = vadd.f32 %v4270, %v4363
      %v4365 = vpop.f32.mrb[0].mxu0
      %v4366 = vadd.f32 %v4270, %v4365
      %4367 = vmatprep.mubr.f32.mxu0 0.0
      %4368 = vmatmul.mubr.f32.gmra.mrb[0].mxu0 %v4287
      %v4369 = vpop.f32.mrb[0].mxu0
      %v4370 = vadd.f32 %v4275, %v4369
      %v4371 = vpop.f32.mrb[0].mxu0
      %v4372 = vadd.f32 %v4275, %v4371
      %4373 = vmatprep.mubr.f32.mxu0 0.0
      %4374 = vmatmul.mubr.f32.gmra.mrb[0].mxu0 %v4289
      %v4375 = vpop.f32.mrb[0].mxu0
      %v4376 = vadd.f32 %v4280, %v4375
      %v4377 = vpop.f32.mrb[0].mxu0
      %v4378 = vadd.f32 %v4280, %v4377
      %4379 = vdwg.mxu0
      %4380 = vmatprep.subr.mxu0 %v4229
      %4381 = vmatpush1.msra.mxu0 %v4228
      %4382 = vmatprep.subr.mxu0 %v4237
      %4383 = vmatpush1.msra.mxu0 %v4236
      %4384 = vmatprep.subr.mxu0 %v4245
      %4385 = vmatpush1.msra.mxu0 %v4244
      %4386 = vmatprep.subr.mxu0 %v4253
      %4387 = vmatpush1.msra.mxu0 %v4252
      %4388 = vmatprep.subr.mxu0 0.0
      %4389 = vmatpush1.msra.mxu0 0.0
      %4390 = vmatprep.subr.mxu0 0.0
      %4391 = vmatpush1.msra.mxu0 0.0
      %4392 = vmatprep.subr.mxu0 0.0
      %4393 = vmatpush1.msra.mxu0 0.0
      %4394 = vmatprep.subr.mxu0 0.0
      %4395 = vmatpush1.msra.mxu0 0.0
      %4396 = vmatprep.subr.mxu0 0.0
      %4397 = vmatpush1.msra.mxu0 0.0
      %4398 = vmatprep.subr.mxu0 0.0
      %4399 = vmatpush1.msra.mxu0 0.0
      %4400 = vmatprep.subr.mxu0 0.0
      %4401 = vmatpush1.msra.mxu0 0.0
      %4402 = vmatprep.subr.mxu0 0.0
      %4403 = vmatpush1.msra.mxu0 0.0
      %4404 = vmatprep.subr.mxu0 0.0
      %4405 = vmatpush1.msra.mxu0 0.0
      %4406 = vmatprep.subr.mxu0 0.0
      %4407 = vmatpush1.msra.mxu0 0.0
      %4408 = vmatprep.subr.mxu0 0.0
      %4409 = vmatpush1.msra.mxu0 0.0
      %4410 = vmatprep.subr.mxu0 0.0
      %4411 = vmatpush1.msra.mxu0 0.0
      %4412 = vmatprep.subr.mxu0 0.0
      %4413 = vmatpush1.msra.mxu0 0.0
      %4414 = vmatprep.subr.mxu0 0.0
      %4415 = vmatpush1.msra.mxu0 0.0
      %4416 = vmatprep.subr.mxu0 0.0
      %4417 = vmatpush1.msra.mxu0 0.0
      %4418 = vmatprep.subr.mxu0 0.0
      %4419 = vmatpush1.msra.mxu0 0.0
      %4420 = vmatprep.subr.mxu0 0.0
      %4421 = vmatpush1.msra.mxu0 0.0
      %4422 = vmatprep.subr.mxu0 0.0
      %4423 = vmatpush1.msra.mxu0 0.0
      %4424 = vmatprep.subr.mxu0 0.0
      %4425 = vmatpush1.msra.mxu0 0.0
      %4426 = vmatprep.subr.mxu0 0.0
      %4427 = vmatpush1.msra.mxu0 0.0
      %4428 = vmatprep.subr.mxu0 0.0
      %4429 = vmatpush1.msra.mxu0 0.0
      %4430 = vmatprep.subr.mxu0 0.0
      %4431 = vmatpush1.msra.mxu0 0.0
      %4432 = vmatprep.subr.mxu0 0.0
      %4433 = vmatpush1.msra.mxu0 0.0
      %4434 = vmatprep.subr.mxu0 0.0
      %4435 = vmatpush1.msra.mxu0 0.0
      %4436 = vmatprep.subr.mxu0 0.0
      %4437 = vmatpush1.msra.mxu0 0.0
      %4438 = vmatprep.subr.mxu0 0.0
      %4439 = vmatpush1.msra.mxu0 0.0
      %4440 = vmatprep.subr.mxu0 0.0
      %4441 = vmatpush1.msra.mxu0 0.0
      %4442 = vmatprep.subr.mxu0 0.0
      %4443 = vmatpush1.msra.mxu0 0.0
      %4444 = vmatprep.mubr.f32.mxu0 0.0
      %4445 = vmatmul.mubr.f32.gmra.mrb[0].mxu0 %v4283
      %v4446 = vpop.f32.mrb[0].mxu0
      %v4447 = vadd.f32 %v4265, %v4446
      %v4448 = vpop.f32.mrb[0].mxu0
      %v4449 = vadd.f32 %v4265, %v4448
      %4450 = vmatprep.mubr.f32.mxu0 0.0
      %4451 = vmatmul.mubr.f32.gmra.mrb[0].mxu0 %v4285
      %v4452 = vpop.f32.mrb[0].mxu0
      %v4453 = vadd.f32 %v4270, %v4452
      %v4454 = vpop.f32.mrb[0].mxu0
      %v4455 = vadd.f32 %v4270, %v4454
      %4456 = vmatprep.mubr.f32.mxu0 0.0
      %4457 = vmatmul.mubr.f32.gmra.mrb[0].mxu0 %v4287
      %v4458 = vpop.f32.mrb[0].mxu0
      %v4459 = vadd.f32 %v4275, %v4458
      %v4460 = vpop.f32.mrb[0].mxu0
      %v4461 = vadd.f32 %v4275, %v4460
      %4462 = vmatprep.mubr.f32.mxu0 0.0
      %4463 = vmatmul.mubr.f32.gmra.mrb[0].mxu0 %v4289
      %v4464 = vpop.f32.mrb[0].mxu0
      %v4465 = vadd.f32 %v4280, %v4464
      %v4466 = vpop.f32.mrb[0].mxu0
      %v4467 = vadd.f32 %v4280, %v4466
      %4468 = vdwg.mxu0
      %4469 = vmatprep.subr.mxu0 %v4231
      %4470 = vmatpush1.msra.mxu0 %v4230
      %4471 = vmatprep.subr.mxu0 %v4239
      %4472 = vmatpush1.msra.mxu0 %v4238
      %4473 = vmatprep.subr.mxu0 %v4247
      %4474 = vmatpush1.msra.mxu0 %v4246
      %4475 = vmatprep.subr.mxu0 %v4255
      %4476 = vmatpush1.msra.mxu0 %v4254
      %4477 = vmatprep.subr.mxu0 0.0
      %4478 = vmatpush1.msra.mxu0 0.0
      %4479 = vmatprep.subr.mxu0 0.0
      %4480 = vmatpush1.msra.mxu0 0.0
      %4481 = vmatprep.subr.mxu0 0.0
      %4482 = vmatpush1.msra.mxu0 0.0
      %4483 = vmatprep.subr.mxu0 0.0
      %4484 = vmatpush1.msra.mxu0 0.0
      %4485 = vmatprep.subr.mxu0 0.0
      %4486 = vmatpush1.msra.mxu0 0.0
      %4487 = vmatprep.subr.mxu0 0.0
      %4488 = vmatpush1.msra.mxu0 0.0
      %4489 = vmatprep.subr.mxu0 0.0
      %4490 = vmatpush1.msra.mxu0 0.0
      %4491 = vmatprep.subr.mxu0 0.0
      %4492 = vmatpush1.msra.mxu0 0.0
      %4493 = vmatprep.subr.mxu0 0.0
      %4494 = vmatpush1.msra.mxu0 0.0
      %4495 = vmatprep.subr.mxu0 0.0
      %4496 = vmatpush1.msra.mxu0 0.0
      %4497 = vmatprep.subr.mxu0 0.0
      %4498 = vmatpush1.msra.mxu0 0.0
      %4499 = vmatprep.subr.mxu0 0.0
      %4500 = vmatpush1.msra.mxu0 0.0
      %4501 = vmatprep.subr.mxu0 0.0
      %4502 = vmatpush1.msra.mxu0 0.0
      %4503 = vmatprep.subr.mxu0 0.0
      %4504 = vmatpush1.msra.mxu0 0.0
      %4505 = vmatprep.subr.mxu0 0.0
      %4506 = vmatpush1.msra.mxu0 0.0
      %4507 = vmatprep.subr.mxu0 0.0
      %4508 = vmatpush1.msra.mxu0 0.0
      %4509 = vmatprep.subr.mxu0 0.0
      %4510 = vmatpush1.msra.mxu0 0.0
      %4511 = vmatprep.subr.mxu0 0.0
      %4512 = vmatpush1.msra.mxu0 0.0
      %4513 = vmatprep.subr.mxu0 0.0
      %4514 = vmatpush1.msra.mxu0 0.0
      %4515 = vmatprep.subr.mxu0 0.0
      %4516 = vmatpush1.msra.mxu0 0.0
      %4517 = vmatprep.subr.mxu0 0.0
      %4518 = vmatpush1.msra.mxu0 0.0
      %4519 = vmatprep.subr.mxu0 0.0
      %4520 = vmatpush1.msra.mxu0 0.0
      %4521 = vmatprep.subr.mxu0 0.0
      %4522 = vmatpush1.msra.mxu0 0.0
      %4523 = vmatprep.subr.mxu0 0.0
      %4524 = vmatpush1.msra.mxu0 0.0
      %4525 = vmatprep.subr.mxu0 0.0
      %4526 = vmatpush1.msra.mxu0 0.0
      %4527 = vmatprep.subr.mxu0 0.0
      %4528 = vmatpush1.msra.mxu0 0.0
      %4529 = vmatprep.subr.mxu0 0.0
      %4530 = vmatpush1.msra.mxu0 0.0
      %4531 = vmatprep.subr.mxu0 0.0
      %4532 = vmatpush1.msra.mxu0 0.0
      %4533 = vmatprep.mubr.f32.mxu0 0.0
      %4534 = vmatmul.mubr.f32.gmra.mrb[0].mxu0 %v4283
      %v4535 = vpop.f32.mrb[0].mxu0
      %v4536 = vadd.f32 %v4265, %v4535
      %v4537 = vpop.f32.mrb[0].mxu0
      %v4538 = vadd.f32 %v4265, %v4537
      %4539 = vmatprep.mubr.f32.mxu0 0.0
      %4540 = vmatmul.mubr.f32.gmra.mrb[0].mxu0 %v4285
      %v4541 = vpop.f32.mrb[0].mxu0
      %v4542 = vadd.f32 %v4270, %v4541
      %v4543 = vpop.f32.mrb[0].mxu0
      %v4544 = vadd.f32 %v4270, %v4543
      %4545 = vmatprep.mubr.f32.mxu0 0.0
      %4546 = vmatmul.mubr.f32.gmra.mrb[0].mxu0 %v4287
      %v4547 = vpop.f32.mrb[0].mxu0
      %v4548 = vadd.f32 %v4275, %v4547
      %v4549 = vpop.f32.mrb[0].mxu0
      %v4550 = vadd.f32 %v4275, %v4549
      %4551 = vmatprep.mubr.f32.mxu0 0.0
      %4552 = vmatmul.mubr.f32.gmra.mrb[0].mxu0 %v4289
      %v4553 = vpop.f32.mrb[0].mxu0
      %v4554 = vadd.f32 %v4280, %v4553
      %v4555 = vpop.f32.mrb[0].mxu0
      %v4556 = vadd.f32 %v4280, %v4555
      %4557 = vdwg.mxu0
      %4558 = vmatprep.subr.mxu0 %v4233
      %4559 = vmatpush1.msra.mxu0 %v4232
      %4560 = vmatprep.subr.mxu0 %v4241
      %4561 = vmatpush1.msra.mxu0 %v4240
      %4562 = vmatprep.subr.mxu0 %v4249
      %4563 = vmatpush1.msra.mxu0 %v4248
      %4564 = vmatprep.subr.mxu0 %v4257
      %4565 = vmatpush1.msra.mxu0 %v4256
      %4566 = vmatprep.subr.mxu0 0.0
      %4567 = vmatpush1.msra.mxu0 0.0
      %4568 = vmatprep.subr.mxu0 0.0
      %4569 = vmatpush1.msra.mxu0 0.0
      %4570 = vmatprep.subr.mxu0 0.0
      %4571 = vmatpush1.msra.mxu0 0.0
      %4572 = vmatprep.subr.mxu0 0.0
      %4573 = vmatpush1.msra.mxu0 0.0
      %4574 = vmatprep.subr.mxu0 0.0
      %4575 = vmatpush1.msra.mxu0 0.0
      %4576 = vmatprep.subr.mxu0 0.0
      %4577 = vmatpush1.msra.mxu0 0.0
      %4578 = vmatprep.subr.mxu0 0.0
      %4579 = vmatpush1.msra.mxu0 0.0
      %4580 = vmatprep.subr.mxu0 0.0
      %4581 = vmatpush1.msra.mxu0 0.0
      %4582 = vmatprep.subr.mxu0 0.0
      %4583 = vmatpush1.msra.mxu0 0.0
      %4584 = vmatprep.subr.mxu0 0.0
      %4585 = vmatpush1.msra.mxu0 0.0
      %4586 = vmatprep.subr.mxu0 0.0
      %4587 = vmatpush1.msra.mxu0 0.0
      %4588 = vmatprep.subr.mxu0 0.0
      %4589 = vmatpush1.msra.mxu0 0.0
      %4590 = vmatprep.subr.mxu0 0.0
      %4591 = vmatpush1.msra.mxu0 0.0
      %4592 = vmatprep.subr.mxu0 0.0
      %4593 = vmatpush1.msra.mxu0 0.0
      %4594 = vmatprep.subr.mxu0 0.0
      %4595 = vmatpush1.msra.mxu0 0.0
      %4596 = vmatprep.subr.mxu0 0.0
      %4597 = vmatpush1.msra.mxu0 0.0
      %4598 = vmatprep.subr.mxu0 0.0
      %4599 = vmatpush1.msra.mxu0 0.0
      %4600 = vmatprep.subr.mxu0 0.0
      %4601 = vmatpush1.msra.mxu0 0.0
      %4602 = vmatprep.subr.mxu0 0.0
      %4603 = vmatpush1.msra.mxu0 0.0
      %4604 = vmatprep.subr.mxu0 0.0
      %4605 = vmatpush1.msra.mxu0 0.0
      %4606 = vmatprep.subr.mxu0 0.0
      %4607 = vmatpush1.msra.mxu0 0.0
      %4608 = vmatprep.subr.mxu0 0.0
      %4609 = vmatpush1.msra.mxu0 0.0
      %4610 = vmatprep.subr.mxu0 0.0
      %4611 = vmatpush1.msra.mxu0 0.0
      %4612 = vmatprep.subr.mxu0 0.0
      %4613 = vmatpush1.msra.mxu0 0.0
      %4614 = vmatprep.subr.mxu0 0.0
      %4615 = vmatpush1.msra.mxu0 0.0
      %4616 = vmatprep.subr.mxu0 0.0
      %4617 = vmatpush1.msra.mxu0 0.0
      %4618 = vmatprep.subr.mxu0 0.0
      %4619 = vmatpush1.msra.mxu0 0.0
      %4620 = vmatprep.subr.mxu0 0.0
      %4621 = vmatpush1.msra.mxu0 0.0
      %4622 = vmatprep.mubr.f32.mxu0 0.0
      %4623 = vmatmul.mubr.f32.gmra.mrb[0].mxu0 %v4283
      %v4624 = vpop.f32.mrb[0].mxu0
      %v4625 = vadd.f32 %v4265, %v4624
      %v4626 = vpop.f32.mrb[0].mxu0
      %v4627 = vadd.f32 %v4265, %v4626
      %4628 = vmatprep.mubr.f32.mxu0 0.0
      %4629 = vmatmul.mubr.f32.gmra.mrb[0].mxu0 %v4285
      %v4630 = vpop.f32.mrb[0].mxu0
      %v4631 = vadd.f32 %v4270, %v4630
      %v4632 = vpop.f32.mrb[0].mxu0
      %v4633 = vadd.f32 %v4270, %v4632
      %4634 = vmatprep.mubr.f32.mxu0 0.0
      %4635 = vmatmul.mubr.f32.gmra.mrb[0].mxu0 %v4287
      %v4636 = vpop.f32.mrb[0].mxu0
      %v4637 = vadd.f32 %v4275, %v4636
      %v4638 = vpop.f32.mrb[0].mxu0
      %v4639 = vadd.f32 %v4275, %v4638
      %4640 = vmatprep.mubr.f32.mxu0 0.0
      %4641 = vmatmul.mubr.f32.gmra.mrb[0].mxu0 %v4289
      %v4642 = vpop.f32.mrb[0].mxu0
      %v4643 = vadd.f32 %v4280, %v4642
      %v4644 = vpop.f32.mrb[0].mxu0
      %v4645 = vadd.f32 %v4280, %v4644
      %4646 = vdwg.mxu0
      %v4647 = vmax.f32 %v4358, 0.0
      %v4648 = vmax.f32 %v4360, 0.0
      %v4649 = vmax.f32 %v4447, 0.0
      %v4650 = vmax.f32 %v4449, 0.0
      %v4651 = vmax.f32 %v4536, 0.0
      %v4652 = vmax.f32 %v4538, 0.0
      %v4653 = vmax.f32 %v4625, 0.0
      %v4654 = vmax.f32 %v4627, 0.0
      %v4655 = vmax.f32 %v4364, 0.0
      %v4656 = vmax.f32 %v4366, 0.0
      %v4657 = vmax.f32 %v4453, 0.0
      %v4658 = vmax.f32 %v4455, 0.0
      %v4659 = vmax.f32 %v4542, 0.0
      %v4660 = vmax.f32 %v4544, 0.0
      %v4661 = vmax.f32 %v4631, 0.0
      %v4662 = vmax.f32 %v4633, 0.0
      %v4663 = vmax.f32 %v4370, 0.0
      %v4664 = vmax.f32 %v4372, 0.0
      %v4665 = vmax.f32 %v4459, 0.0
      %v4666 = vmax.f32 %v4461, 0.0
      %v4667 = vmax.f32 %v4548, 0.0
      %v4668 = vmax.f32 %v4550, 0.0
      %v4669 = vmax.f32 %v4637, 0.0
      %v4670 = vmax.f32 %v4639, 0.0
      %v4671 = vmax.f32 %v4376, 0.0
      %v4672 = vmax.f32 %v4378, 0.0
      %v4673 = vmax.f32 %v4465, 0.0
      %v4674 = vmax.f32 %v4467, 0.0
      %v4675 = vmax.f32 %v4554, 0.0
      %v4676 = vmax.f32 %v4556, 0.0
      %v4677 = vmax.f32 %v4643, 0.0
      %v4678 = vmax.f32 %v4645, 0.0
      %v4679 = vld [vmem:[%s1 + $0x50] sm:$0xff]
      %v4680 = vld [vmem:[%s1 + $0x58] sm:$0xff]
      %v4681 = vld [vmem:[%s1 + $0x60] sm:$0xff]
      %v4682 = vld [vmem:[%s1 + $0x68] sm:$0xff]
      %4684 = vset.pattern.permute.xlu0 32
      %4685 = vperm.xlu0 %4684, %v4679
      %v4686 = vpop.permute.xlu0 %4685
      %4689 = vset.pattern.permute.xlu0 32
      %4690 = vperm.xlu0 %4689, %v4680
      %v4691 = vpop.permute.xlu0 %4690
      %4694 = vset.pattern.permute.xlu0 32
      %4695 = vperm.xlu0 %4694, %v4681
      %v4696 = vpop.permute.xlu0 %4695
      %4699 = vset.pattern.permute.xlu0 32
      %4700 = vperm.xlu0 %4699, %v4682
      %v4701 = vpop.permute.xlu0 %4700
      %v4703 = vsel %vm4282, %v4679, 0
      %v4705 = vsel %vm4282, %v4680, 0
      %v4707 = vsel %vm4282, %v4681, 0
      %v4709 = vsel %vm4282, %v4682, 0
      %4711 = vmatprep.subr.mxu0 %v4648
      %4712 = vmatpush1.msra.mxu0 %v4647
      %4713 = vmatprep.subr.mxu0 %v4656
      %4714 = vmatpush1.msra.mxu0 %v4655
      %4715 = vmatprep.subr.mxu0 %v4664
      %4716 = vmatpush1.msra.mxu0 %v4663
      %4717 = vmatprep.subr.mxu0 %v4672
      %4718 = vmatpush1.msra.mxu0 %v4671
      %4719 = vmatprep.subr.mxu0 0.0
      %4720 = vmatpush1.msra.mxu0 0.0
      %4721 = vmatprep.subr.mxu0 0.0
      %4722 = vmatpush1.msra.mxu0 0.0
      %4723 = vmatprep.subr.mxu0 0.0
      %4724 = vmatpush1.msra.mxu0 0.0
      %4725 = vmatprep.subr.mxu0 0.0
      %4726 = vmatpush1.msra.mxu0 0.0
      %4727 = vmatprep.subr.mxu0 0.0
      %4728 = vmatpush1.msra.mxu0 0.0
      %4729 = vmatprep.subr.mxu0 0.0
      %4730 = vmatpush1.msra.mxu0 0.0
      %4731 = vmatprep.subr.mxu0 0.0
      %4732 = vmatpush1.msra.mxu0 0.0
      %4733 = vmatprep.subr.mxu0 0.0
      %4734 = vmatpush1.msra.mxu0 0.0
      %4735 = vmatprep.subr.mxu0 0.0
      %4736 = vmatpush1.msra.mxu0 0.0
      %4737 = vmatprep.subr.mxu0 0.0
      %4738 = vmatpush1.msra.mxu0 0.0
      %4739 = vmatprep.subr.mxu0 0.0
      %4740 = vmatpush1.msra.mxu0 0.0
      %4741 = vmatprep.subr.mxu0 0.0
      %4742 = vmatpush1.msra.mxu0 0.0
      %4743 = vmatprep.subr.mxu0 0.0
      %4744 = vmatpush1.msra.mxu0 0.0
      %4745 = vmatprep.subr.mxu0 0.0
      %4746 = vmatpush1.msra.mxu0 0.0
      %4747 = vmatprep.subr.mxu0 0.0
      %4748 = vmatpush1.msra.mxu0 0.0
      %4749 = vmatprep.subr.mxu0 0.0
      %4750 = vmatpush1.msra.mxu0 0.0
      %4751 = vmatprep.subr.mxu0 0.0
      %4752 = vmatpush1.msra.mxu0 0.0
      %4753 = vmatprep.subr.mxu0 0.0
      %4754 = vmatpush1.msra.mxu0 0.0
      %4755 = vmatprep.subr.mxu0 0.0
      %4756 = vmatpush1.msra.mxu0 0.0
      %4757 = vmatprep.subr.mxu0 0.0
      %4758 = vmatpush1.msra.mxu0 0.0
      %4759 = vmatprep.subr.mxu0 0.0
      %4760 = vmatpush1.msra.mxu0 0.0
      %4761 = vmatprep.subr.mxu0 0.0
      %4762 = vmatpush1.msra.mxu0 0.0
      %4763 = vmatprep.subr.mxu0 0.0
      %4764 = vmatpush1.msra.mxu0 0.0
      %4765 = vmatprep.subr.mxu0 0.0
      %4766 = vmatpush1.msra.mxu0 0.0
      %4767 = vmatprep.subr.mxu0 0.0
      %4768 = vmatpush1.msra.mxu0 0.0
      %4769 = vmatprep.subr.mxu0 0.0
      %4770 = vmatpush1.msra.mxu0 0.0
      %4771 = vmatprep.subr.mxu0 0.0
      %4772 = vmatpush1.msra.mxu0 0.0
      %4773 = vmatprep.subr.mxu0 0.0
      %4774 = vmatpush1.msra.mxu0 0.0
      %4775 = vmatprep.mubr.f32.mxu0 0.0
      %4776 = vmatmul.mubr.f32.gmra.mrb[0].mxu0 %v4703
      %v4777 = vpop.f32.mrb[0].mxu0
      %v4778 = vadd.f32 %v4686, %v4777
      %v4779 = vpop.f32.mrb[0].mxu0
      %v4780 = vadd.f32 %v4686, %v4779
      %4781 = vmatprep.mubr.f32.mxu0 0.0
      %4782 = vmatmul.mubr.f32.gmra.mrb[0].mxu0 %v4705
      %v4783 = vpop.f32.mrb[0].mxu0
      %v4784 = vadd.f32 %v4691, %v4783
      %v4785 = vpop.f32.mrb[0].mxu0
      %v4786 = vadd.f32 %v4691, %v4785
      %4787 = vmatprep.mubr.f32.mxu0 0.0
      %4788 = vmatmul.mubr.f32.gmra.mrb[0].mxu0 %v4707
      %v4789 = vpop.f32.mrb[0].mxu0
      %v4790 = vadd.f32 %v4696, %v4789
      %v4791 = vpop.f32.mrb[0].mxu0
      %v4792 = vadd.f32 %v4696, %v4791
      %4793 = vmatprep.mubr.f32.mxu0 0.0
      %4794 = vmatmul.mubr.f32.gmra.mrb[0].mxu0 %v4709
      %v4795 = vpop.f32.mrb[0].mxu0
      %v4796 = vadd.f32 %v4701, %v4795
      %v4797 = vpop.f32.mrb[0].mxu0
      %v4798 = vadd.f32 %v4701, %v4797
      %4799 = vdwg.mxu0
      %4800 = vmatprep.subr.mxu0 %v4650
      %4801 = vmatpush1.msra.mxu0 %v4649
      %4802 = vmatprep.subr.mxu0 %v4658
      %4803 = vmatpush1.msra.mxu0 %v4657
      %4804 = vmatprep.subr.mxu0 %v4666
      %4805 = vmatpush1.msra.mxu0 %v4665
      %4806 = vmatprep.subr.mxu0 %v4674
      %4807 = vmatpush1.msra.mxu0 %v4673
      %4808 = vmatprep.subr.mxu0 0.0
      %4809 = vmatpush1.msra.mxu0 0.0
      %4810 = vmatprep.subr.mxu0 0.0
      %4811 = vmatpush1.msra.mxu0 0.0
      %4812 = vmatprep.subr.mxu0 0.0
      %4813 = vmatpush1.msra.mxu0 0.0
      %4814 = vmatprep.subr.mxu0 0.0
      %4815 = vmatpush1.msra.mxu0 0.0
      %4816 = vmatprep.subr.mxu0 0.0
      %4817 = vmatpush1.msra.mxu0 0.0
      %4818 = vmatprep.subr.mxu0 0.0
      %4819 = vmatpush1.msra.mxu0 0.0
      %4820 = vmatprep.subr.mxu0 0.0
      %4821 = vmatpush1.msra.mxu0 0.0
      %4822 = vmatprep.subr.mxu0 0.0
      %4823 = vmatpush1.msra.mxu0 0.0
      %4824 = vmatprep.subr.mxu0 0.0
      %4825 = vmatpush1.msra.mxu0 0.0
      %4826 = vmatprep.subr.mxu0 0.0
      %4827 = vmatpush1.msra.mxu0 0.0
      %4828 = vmatprep.subr.mxu0 0.0
      %4829 = vmatpush1.msra.mxu0 0.0
      %4830 = vmatprep.subr.mxu0 0.0
      %4831 = vmatpush1.msra.mxu0 0.0
      %4832 = vmatprep.subr.mxu0 0.0
      %4833 = vmatpush1.msra.mxu0 0.0
      %4834 = vmatprep.subr.mxu0 0.0
      %4835 = vmatpush1.msra.mxu0 0.0
      %4836 = vmatprep.subr.mxu0 0.0
      %4837 = vmatpush1.msra.mxu0 0.0
      %4838 = vmatprep.subr.mxu0 0.0
      %4839 = vmatpush1.msra.mxu0 0.0
      %4840 = vmatprep.subr.mxu0 0.0
      %4841 = vmatpush1.msra.mxu0 0.0
      %4842 = vmatprep.subr.mxu0 0.0
      %4843 = vmatpush1.msra.mxu0 0.0
      %4844 = vmatprep.subr.mxu0 0.0
      %4845 = vmatpush1.msra.mxu0 0.0
      %4846 = vmatprep.subr.mxu0 0.0
      %4847 = vmatpush1.msra.mxu0 0.0
      %4848 = vmatprep.subr.mxu0 0.0
      %4849 = vmatpush1.msra.mxu0 0.0
      %4850 = vmatprep.subr.mxu0 0.0
      %4851 = vmatpush1.msra.mxu0 0.0
      %4852 = vmatprep.subr.mxu0 0.0
      %4853 = vmatpush1.msra.mxu0 0.0
      %4854 = vmatprep.subr.mxu0 0.0
      %4855 = vmatpush1.msra.mxu0 0.0
      %4856 = vmatprep.subr.mxu0 0.0
      %4857 = vmatpush1.msra.mxu0 0.0
      %4858 = vmatprep.subr.mxu0 0.0
      %4859 = vmatpush1.msra.mxu0 0.0
      %4860 = vmatprep.subr.mxu0 0.0
      %4861 = vmatpush1.msra.mxu0 0.0
      %4862 = vmatprep.subr.mxu0 0.0
      %4863 = vmatpush1.msra.mxu0 0.0
      %4864 = vmatprep.mubr.f32.mxu0 0.0
      %4865 = vmatmul.mubr.f32.gmra.mrb[0].mxu0 %v4703
      %v4866 = vpop.f32.mrb[0].mxu0
      %v4867 = vadd.f32 %v4686, %v4866
      %v4868 = vpop.f32.mrb[0].mxu0
      %v4869 = vadd.f32 %v4686, %v4868
      %4870 = vmatprep.mubr.f32.mxu0 0.0
      %4871 = vmatmul.mubr.f32.gmra.mrb[0].mxu0 %v4705
      %v4872 = vpop.f32.mrb[0].mxu0
      %v4873 = vadd.f32 %v4691, %v4872
      %v4874 = vpop.f32.mrb[0].mxu0
      %v4875 = vadd.f32 %v4691, %v4874
      %4876 = vmatprep.mubr.f32.mxu0 0.0
      %4877 = vmatmul.mubr.f32.gmra.mrb[0].mxu0 %v4707
      %v4878 = vpop.f32.mrb[0].mxu0
      %v4879 = vadd.f32 %v4696, %v4878
      %v4880 = vpop.f32.mrb[0].mxu0
      %v4881 = vadd.f32 %v4696, %v4880
      %4882 = vmatprep.mubr.f32.mxu0 0.0
      %4883 = vmatmul.mubr.f32.gmra.mrb[0].mxu0 %v4709
      %v4884 = vpop.f32.mrb[0].mxu0
      %v4885 = vadd.f32 %v4701, %v4884
      %v4886 = vpop.f32.mrb[0].mxu0
      %v4887 = vadd.f32 %v4701, %v4886
      %4888 = vdwg.mxu0
      %4889 = vmatprep.subr.mxu0 %v4652
      %4890 = vmatpush1.msra.mxu0 %v4651
      %4891 = vmatprep.subr.mxu0 %v4660
      %4892 = vmatpush1.msra.mxu0 %v4659
      %4893 = vmatprep.subr.mxu0 %v4668
      %4894 = vmatpush1.msra.mxu0 %v4667
      %4895 = vmatprep.subr.mxu0 %v4676
      %4896 = vmatpush1.msra.mxu0 %v4675
      %4897 = vmatprep.subr.mxu0 0.0
      %4898 = vmatpush1.msra.mxu0 0.0
      %4899 = vmatprep.subr.mxu0 0.0
      %4900 = vmatpush1.msra.mxu0 0.0
      %4901 = vmatprep.subr.mxu0 0.0
      %4902 = vmatpush1.msra.mxu0 0.0
      %4903 = vmatprep.subr.mxu0 0.0
      %4904 = vmatpush1.msra.mxu0 0.0
      %4905 = vmatprep.subr.mxu0 0.0
      %4906 = vmatpush1.msra.mxu0 0.0
      %4907 = vmatprep.subr.mxu0 0.0
      %4908 = vmatpush1.msra.mxu0 0.0
      %4909 = vmatprep.subr.mxu0 0.0
      %4910 = vmatpush1.msra.mxu0 0.0
      %4911 = vmatprep.subr.mxu0 0.0
      %4912 = vmatpush1.msra.mxu0 0.0
      %4913 = vmatprep.subr.mxu0 0.0
      %4914 = vmatpush1.msra.mxu0 0.0
      %4915 = vmatprep.subr.mxu0 0.0
      %4916 = vmatpush1.msra.mxu0 0.0
      %4917 = vmatprep.subr.mxu0 0.0
      %4918 = vmatpush1.msra.mxu0 0.0
      %4919 = vmatprep.subr.mxu0 0.0
      %4920 = vmatpush1.msra.mxu0 0.0
      %4921 = vmatprep.subr.mxu0 0.0
      %4922 = vmatpush1.msra.mxu0 0.0
      %4923 = vmatprep.subr.mxu0 0.0
      %4924 = vmatpush1.msra.mxu0 0.0
      %4925 = vmatprep.subr.mxu0 0.0
      %4926 = vmatpush1.msra.mxu0 0.0
      %4927 = vmatprep.subr.mxu0 0.0
      %4928 = vmatpush1.msra.mxu0 0.0
      %4929 = vmatprep.subr.mxu0 0.0
      %4930 = vmatpush1.msra.mxu0 0.0
      %4931 = vmatprep.subr.mxu0 0.0
      %4932 = vmatpush1.msra.mxu0 0.0
      %4933 = vmatprep.subr.mxu0 0.0
      %4934 = vmatpush1.msra.mxu0 0.0
      %4935 = vmatprep.subr.mxu0 0.0
      %4936 = vmatpush1.msra.mxu0 0.0
      %4937 = vmatprep.subr.mxu0 0.0
      %4938 = vmatpush1.msra.mxu0 0.0
      %4939 = vmatprep.subr.mxu0 0.0
      %4940 = vmatpush1.msra.mxu0 0.0
      %4941 = vmatprep.subr.mxu0 0.0
      %4942 = vmatpush1.msra.mxu0 0.0
      %4943 = vmatprep.subr.mxu0 0.0
      %4944 = vmatpush1.msra.mxu0 0.0
      %4945 = vmatprep.subr.mxu0 0.0
      %4946 = vmatpush1.msra.mxu0 0.0
      %4947 = vmatprep.subr.mxu0 0.0
      %4948 = vmatpush1.msra.mxu0 0.0
      %4949 = vmatprep.subr.mxu0 0.0
      %4950 = vmatpush1.msra.mxu0 0.0
      %4951 = vmatprep.subr.mxu0 0.0
      %4952 = vmatpush1.msra.mxu0 0.0
      %4953 = vmatprep.mubr.f32.mxu0 0.0
      %4954 = vmatmul.mubr.f32.gmra.mrb[0].mxu0 %v4703
      %v4955 = vpop.f32.mrb[0].mxu0
      %v4956 = vadd.f32 %v4686, %v4955
      %v4957 = vpop.f32.mrb[0].mxu0
      %v4958 = vadd.f32 %v4686, %v4957
      %4959 = vmatprep.mubr.f32.mxu0 0.0
      %4960 = vmatmul.mubr.f32.gmra.mrb[0].mxu0 %v4705
      %v4961 = vpop.f32.mrb[0].mxu0
      %v4962 = vadd.f32 %v4691, %v4961
      %v4963 = vpop.f32.mrb[0].mxu0
      %v4964 = vadd.f32 %v4691, %v4963
      %4965 = vmatprep.mubr.f32.mxu0 0.0
      %4966 = vmatmul.mubr.f32.gmra.mrb[0].mxu0 %v4707
      %v4967 = vpop.f32.mrb[0].mxu0
      %v4968 = vadd.f32 %v4696, %v4967
      %v4969 = vpop.f32.mrb[0].mxu0
      %v4970 = vadd.f32 %v4696, %v4969
      %4971 = vmatprep.mubr.f32.mxu0 0.0
      %4972 = vmatmul.mubr.f32.gmra.mrb[0].mxu0 %v4709
      %v4973 = vpop.f32.mrb[0].mxu0
      %v4974 = vadd.f32 %v4701, %v4973
      %v4975 = vpop.f32.mrb[0].mxu0
      %v4976 = vadd.f32 %v4701, %v4975
      %4977 = vdwg.mxu0
      %4978 = vmatprep.subr.mxu0 %v4654
      %4979 = vmatpush1.msra.mxu0 %v4653
      %4980 = vmatprep.subr.mxu0 %v4662
      %4981 = vmatpush1.msra.mxu0 %v4661
      %4982 = vmatprep.subr.mxu0 %v4670
      %4983 = vmatpush1.msra.mxu0 %v4669
      %4984 = vmatprep.subr.mxu0 %v4678
      %4985 = vmatpush1.msra.mxu0 %v4677
      %4986 = vmatprep.subr.mxu0 0.0
      %4987 = vmatpush1.msra.mxu0 0.0
      %4988 = vmatprep.subr.mxu0 0.0
      %4989 = vmatpush1.msra.mxu0 0.0
      %4990 = vmatprep.subr.mxu0 0.0
      %4991 = vmatpush1.msra.mxu0 0.0
      %4992 = vmatprep.subr.mxu0 0.0
      %4993 = vmatpush1.msra.mxu0 0.0
      %4994 = vmatprep.subr.mxu0 0.0
      %4995 = vmatpush1.msra.mxu0 0.0
      %4996 = vmatprep.subr.mxu0 0.0
      %4997 = vmatpush1.msra.mxu0 0.0
      %4998 = vmatprep.subr.mxu0 0.0
      %4999 = vmatpush1.msra.mxu0 0.0
      %5000 = vmatprep.subr.mxu0 0.0
      %5001 = vmatpush1.msra.mxu0 0.0
      %5002 = vmatprep.subr.mxu0 0.0
      %5003 = vmatpush1.msra.mxu0 0.0
      %5004 = vmatprep.subr.mxu0 0.0
      %5005 = vmatpush1.msra.mxu0 0.0
      %5006 = vmatprep.subr.mxu0 0.0
      %5007 = vmatpush1.msra.mxu0 0.0
      %5008 = vmatprep.subr.mxu0 0.0
      %5009 = vmatpush1.msra.mxu0 0.0
      %5010 = vmatprep.subr.mxu0 0.0
      %5011 = vmatpush1.msra.mxu0 0.0
      %5012 = vmatprep.subr.mxu0 0.0
      %5013 = vmatpush1.msra.mxu0 0.0
      %5014 = vmatprep.subr.mxu0 0.0
      %5015 = vmatpush1.msra.mxu0 0.0
      %5016 = vmatprep.subr.mxu0 0.0
      %5017 = vmatpush1.msra.mxu0 0.0
      %5018 = vmatprep.subr.mxu0 0.0
      %5019 = vmatpush1.msra.mxu0 0.0
      %5020 = vmatprep.subr.mxu0 0.0
      %5021 = vmatpush1.msra.mxu0 0.0
      %5022 = vmatprep.subr.mxu0 0.0
      %5023 = vmatpush1.msra.mxu0 0.0
      %5024 = vmatprep.subr.mxu0 0.0
      %5025 = vmatpush1.msra.mxu0 0.0
      %5026 = vmatprep.subr.mxu0 0.0
      %5027 = vmatpush1.msra.mxu0 0.0
      %5028 = vmatprep.subr.mxu0 0.0
      %5029 = vmatpush1.msra.mxu0 0.0
      %5030 = vmatprep.subr.mxu0 0.0
      %5031 = vmatpush1.msra.mxu0 0.0
      %5032 = vmatprep.subr.mxu0 0.0
      %5033 = vmatpush1.msra.mxu0 0.0
      %5034 = vmatprep.subr.mxu0 0.0
      %5035 = vmatpush1.msra.mxu0 0.0
      %5036 = vmatprep.subr.mxu0 0.0
      %5037 = vmatpush1.msra.mxu0 0.0
      %5038 = vmatprep.subr.mxu0 0.0
      %5039 = vmatpush1.msra.mxu0 0.0
      %5040 = vmatprep.subr.mxu0 0.0
      %5041 = vmatpush1.msra.mxu0 0.0
      %5042 = vmatprep.mubr.f32.mxu0 0.0
      %5043 = vmatmul.mubr.f32.gmra.mrb[0].mxu0 %v4703
      %v5044 = vpop.f32.mrb[0].mxu0
      %v5045 = vadd.f32 %v4686, %v5044
      %v5046 = vpop.f32.mrb[0].mxu0
      %v5047 = vadd.f32 %v4686, %v5046
      %5048 = vmatprep.mubr.f32.mxu0 0.0
      %5049 = vmatmul.mubr.f32.gmra.mrb[0].mxu0 %v4705
      %v5050 = vpop.f32.mrb[0].mxu0
      %v5051 = vadd.f32 %v4691, %v5050
      %v5052 = vpop.f32.mrb[0].mxu0
      %v5053 = vadd.f32 %v4691, %v5052
      %5054 = vmatprep.mubr.f32.mxu0 0.0
      %5055 = vmatmul.mubr.f32.gmra.mrb[0].mxu0 %v4707
      %v5056 = vpop.f32.mrb[0].mxu0
      %v5057 = vadd.f32 %v4696, %v5056
      %v5058 = vpop.f32.mrb[0].mxu0
      %v5059 = vadd.f32 %v4696, %v5058
      %5060 = vmatprep.mubr.f32.mxu0 0.0
      %5061 = vmatmul.mubr.f32.gmra.mrb[0].mxu0 %v4709
      %v5062 = vpop.f32.mrb[0].mxu0
      %v5063 = vadd.f32 %v4701, %v5062
      %v5064 = vpop.f32.mrb[0].mxu0
      %v5065 = vadd.f32 %v4701, %v5064
      %5066 = vdwg.mxu0
      %v5067 = vmax.f32 %v4778, 0.0
      %v5068 = vmax.f32 %v4780, 0.0
      %v5069 = vmax.f32 %v4867, 0.0
      %v5070 = vmax.f32 %v4869, 0.0
      %v5071 = vmax.f32 %v4956, 0.0
      %v5072 = vmax.f32 %v4958, 0.0
      %v5073 = vmax.f32 %v5045, 0.0
      %v5074 = vmax.f32 %v5047, 0.0
      %v5075 = vmax.f32 %v4784, 0.0
      %v5076 = vmax.f32 %v4786, 0.0
      %v5077 = vmax.f32 %v4873, 0.0
      %v5078 = vmax.f32 %v4875, 0.0
      %v5079 = vmax.f32 %v4962, 0.0
      %v5080 = vmax.f32 %v4964, 0.0
      %v5081 = vmax.f32 %v5051, 0.0
      %v5082 = vmax.f32 %v5053, 0.0
      %v5083 = vmax.f32 %v4790, 0.0
      %v5084 = vmax.f32 %v4792, 0.0
      %v5085 = vmax.f32 %v4879, 0.0
      %v5086 = vmax.f32 %v4881, 0.0
      %v5087 = vmax.f32 %v4968, 0.0
      %v5088 = vmax.f32 %v4970, 0.0
      %v5089 = vmax.f32 %v5057, 0.0
      %v5090 = vmax.f32 %v5059, 0.0
      %v5091 = vmax.f32 %v4796, 0.0
      %v5092 = vmax.f32 %v4798, 0.0
      %v5093 = vmax.f32 %v4885, 0.0
      %v5094 = vmax.f32 %v4887, 0.0
      %v5095 = vmax.f32 %v4974, 0.0
      %v5096 = vmax.f32 %v4976, 0.0
      %v5097 = vmax.f32 %v5063, 0.0
      %v5098 = vmax.f32 %v5065, 0.0
      %v5099 = vld [vmem:[%s1 + $0x70] sm:$0x7f]
      %5101 = vset.pattern.permute.xlu0 32
      %5102 = vperm.xlu0 %5101, %v5099
      %v5103 = vpop.permute.xlu0 %5102
      %v5105 = vsel %vm4282, %v5099, 0
      %5107 = vmatprep.subr.mxu0 %v5068
      %5108 = vmatpush1.msra.mxu0 %v5067
      %5109 = vmatprep.subr.mxu0 %v5076
      %5110 = vmatpush1.msra.mxu0 %v5075
      %5111 = vmatprep.subr.mxu0 %v5084
      %5112 = vmatpush1.msra.mxu0 %v5083
      %5113 = vmatprep.subr.mxu0 %v5092
      %5114 = vmatpush1.msra.mxu0 %v5091
      %5115 = vmatprep.subr.mxu0 0.0
      %5116 = vmatpush1.msra.mxu0 0.0
      %5117 = vmatprep.subr.mxu0 0.0
      %5118 = vmatpush1.msra.mxu0 0.0
      %5119 = vmatprep.subr.mxu0 0.0
      %5120 = vmatpush1.msra.mxu0 0.0
      %5121 = vmatprep.subr.mxu0 0.0
      %5122 = vmatpush1.msra.mxu0 0.0
      %5123 = vmatprep.subr.mxu0 0.0
      %5124 = vmatpush1.msra.mxu0 0.0
      %5125 = vmatprep.subr.mxu0 0.0
      %5126 = vmatpush1.msra.mxu0 0.0
      %5127 = vmatprep.subr.mxu0 0.0
      %5128 = vmatpush1.msra.mxu0 0.0
      %5129 = vmatprep.subr.mxu0 0.0
      %5130 = vmatpush1.msra.mxu0 0.0
      %5131 = vmatprep.subr.mxu0 0.0
      %5132 = vmatpush1.msra.mxu0 0.0
      %5133 = vmatprep.subr.mxu0 0.0
      %5134 = vmatpush1.msra.mxu0 0.0
      %5135 = vmatprep.subr.mxu0 0.0
      %5136 = vmatpush1.msra.mxu0 0.0
      %5137 = vmatprep.subr.mxu0 0.0
      %5138 = vmatpush1.msra.mxu0 0.0
      %5139 = vmatprep.subr.mxu0 0.0
      %5140 = vmatpush1.msra.mxu0 0.0
      %5141 = vmatprep.subr.mxu0 0.0
      %5142 = vmatpush1.msra.mxu0 0.0
      %5143 = vmatprep.subr.mxu0 0.0
      %5144 = vmatpush1.msra.mxu0 0.0
      %5145 = vmatprep.subr.mxu0 0.0
      %5146 = vmatpush1.msra.mxu0 0.0
      %5147 = vmatprep.subr.mxu0 0.0
      %5148 = vmatpush1.msra.mxu0 0.0
      %5149 = vmatprep.subr.mxu0 0.0
      %5150 = vmatpush1.msra.mxu0 0.0
      %5151 = vmatprep.subr.mxu0 0.0
      %5152 = vmatpush1.msra.mxu0 0.0
      %5153 = vmatprep.subr.mxu0 0.0
      %5154 = vmatpush1.msra.mxu0 0.0
      %5155 = vmatprep.subr.mxu0 0.0
      %5156 = vmatpush1.msra.mxu0 0.0
      %5157 = vmatprep.subr.mxu0 0.0
      %5158 = vmatpush1.msra.mxu0 0.0
      %5159 = vmatprep.subr.mxu0 0.0
      %5160 = vmatpush1.msra.mxu0 0.0
      %5161 = vmatprep.subr.mxu0 0.0
      %5162 = vmatpush1.msra.mxu0 0.0
      %5163 = vmatprep.subr.mxu0 0.0
      %5164 = vmatpush1.msra.mxu0 0.0
      %5165 = vmatprep.subr.mxu0 0.0
      %5166 = vmatpush1.msra.mxu0 0.0
      %5167 = vmatprep.subr.mxu0 0.0
      %5168 = vmatpush1.msra.mxu0 0.0
      %5169 = vmatprep.subr.mxu0 0.0
      %5170 = vmatpush1.msra.mxu0 0.0
      %5171 = vmatprep.mubr.f32.mxu0 0.0
      %5172 = vmatmul.mubr.f32.gmra.mrb[0].mxu0 %v5105
      %v5173 = vpop.f32.mrb[0].mxu0
      %v5174 = vadd.f32 %v5103, %v5173
      %v5175 = vpop.f32.mrb[0].mxu0
      %v5176 = vadd.f32 %v5103, %v5175
      %5177 = vdwg.mxu0
      %5178 = vmatprep.subr.mxu0 %v5070
      %5179 = vmatpush1.msra.mxu0 %v5069
      %5180 = vmatprep.subr.mxu0 %v5078
      %5181 = vmatpush1.msra.mxu0 %v5077
      %5182 = vmatprep.subr.mxu0 %v5086
      %5183 = vmatpush1.msra.mxu0 %v5085
      %5184 = vmatprep.subr.mxu0 %v5094
      %5185 = vmatpush1.msra.mxu0 %v5093
      %5186 = vmatprep.subr.mxu0 0.0
      %5187 = vmatpush1.msra.mxu0 0.0
      %5188 = vmatprep.subr.mxu0 0.0
      %5189 = vmatpush1.msra.mxu0 0.0
      %5190 = vmatprep.subr.mxu0 0.0
      %5191 = vmatpush1.msra.mxu0 0.0
      %5192 = vmatprep.subr.mxu0 0.0
      %5193 = vmatpush1.msra.mxu0 0.0
      %5194 = vmatprep.subr.mxu0 0.0
      %5195 = vmatpush1.msra.mxu0 0.0
      %5196 = vmatprep.subr.mxu0 0.0
      %5197 = vmatpush1.msra.mxu0 0.0
      %5198 = vmatprep.subr.mxu0 0.0
      %5199 = vmatpush1.msra.mxu0 0.0
      %5200 = vmatprep.subr.mxu0 0.0
      %5201 = vmatpush1.msra.mxu0 0.0
      %5202 = vmatprep.subr.mxu0 0.0
      %5203 = vmatpush1.msra.mxu0 0.0
      %5204 = vmatprep.subr.mxu0 0.0
      %5205 = vmatpush1.msra.mxu0 0.0
      %5206 = vmatprep.subr.mxu0 0.0
      %5207 = vmatpush1.msra.mxu0 0.0
      %5208 = vmatprep.subr.mxu0 0.0
      %5209 = vmatpush1.msra.mxu0 0.0
      %5210 = vmatprep.subr.mxu0 0.0
      %5211 = vmatpush1.msra.mxu0 0.0
      %5212 = vmatprep.subr.mxu0 0.0
      %5213 = vmatpush1.msra.mxu0 0.0
      %5214 = vmatprep.subr.mxu0 0.0
      %5215 = vmatpush1.msra.mxu0 0.0
      %5216 = vmatprep.subr.mxu0 0.0
      %5217 = vmatpush1.msra.mxu0 0.0
      %5218 = vmatprep.subr.mxu0 0.0
      %5219 = vmatpush1.msra.mxu0 0.0
      %5220 = vmatprep.subr.mxu0 0.0
      %5221 = vmatpush1.msra.mxu0 0.0
      %5222 = vmatprep.subr.mxu0 0.0
      %5223 = vmatpush1.msra.mxu0 0.0
      %5224 = vmatprep.subr.mxu0 0.0
      %5225 = vmatpush1.msra.mxu0 0.0
      %5226 = vmatprep.subr.mxu0 0.0
      %5227 = vmatpush1.msra.mxu0 0.0
      %5228 = vmatprep.subr.mxu0 0.0
      %5229 = vmatpush1.msra.mxu0 0.0
      %5230 = vmatprep.subr.mxu0 0.0
      %5231 = vmatpush1.msra.mxu0 0.0
      %5232 = vmatprep.subr.mxu0 0.0
      %5233 = vmatpush1.msra.mxu0 0.0
      %5234 = vmatprep.subr.mxu0 0.0
      %5235 = vmatpush1.msra.mxu0 0.0
      %5236 = vmatprep.subr.mxu0 0.0
      %5237 = vmatpush1.msra.mxu0 0.0
      %5238 = vmatprep.subr.mxu0 0.0
      %5239 = vmatpush1.msra.mxu0 0.0
      %5240 = vmatprep.subr.mxu0 0.0
      %5241 = vmatpush1.msra.mxu0 0.0
      %5242 = vmatprep.mubr.f32.mxu0 0.0
      %5243 = vmatmul.mubr.f32.gmra.mrb[0].mxu0 %v5105
      %v5244 = vpop.f32.mrb[0].mxu0
      %v5245 = vadd.f32 %v5103, %v5244
      %v5246 = vpop.f32.mrb[0].mxu0
      %v5247 = vadd.f32 %v5103, %v5246
      %5248 = vdwg.mxu0
      %5249 = vmatprep.subr.mxu0 %v5072
      %5250 = vmatpush1.msra.mxu0 %v5071
      %5251 = vmatprep.subr.mxu0 %v5080
      %5252 = vmatpush1.msra.mxu0 %v5079
      %5253 = vmatprep.subr.mxu0 %v5088
      %5254 = vmatpush1.msra.mxu0 %v5087
      %5255 = vmatprep.subr.mxu0 %v5096
      %5256 = vmatpush1.msra.mxu0 %v5095
      %5257 = vmatprep.subr.mxu0 0.0
      %5258 = vmatpush1.msra.mxu0 0.0
      %5259 = vmatprep.subr.mxu0 0.0
      %5260 = vmatpush1.msra.mxu0 0.0
      %5261 = vmatprep.subr.mxu0 0.0
      %5262 = vmatpush1.msra.mxu0 0.0
      %5263 = vmatprep.subr.mxu0 0.0
      %5264 = vmatpush1.msra.mxu0 0.0
      %5265 = vmatprep.subr.mxu0 0.0
      %5266 = vmatpush1.msra.mxu0 0.0
      %5267 = vmatprep.subr.mxu0 0.0
      %5268 = vmatpush1.msra.mxu0 0.0
      %5269 = vmatprep.subr.mxu0 0.0
      %5270 = vmatpush1.msra.mxu0 0.0
      %5271 = vmatprep.subr.mxu0 0.0
      %5272 = vmatpush1.msra.mxu0 0.0
      %5273 = vmatprep.subr.mxu0 0.0
      %5274 = vmatpush1.msra.mxu0 0.0
      %5275 = vmatprep.subr.mxu0 0.0
      %5276 = vmatpush1.msra.mxu0 0.0
      %5277 = vmatprep.subr.mxu0 0.0
      %5278 = vmatpush1.msra.mxu0 0.0
      %5279 = vmatprep.subr.mxu0 0.0
      %5280 = vmatpush1.msra.mxu0 0.0
      %5281 = vmatprep.subr.mxu0 0.0
      %5282 = vmatpush1.msra.mxu0 0.0
      %5283 = vmatprep.subr.mxu0 0.0
      %5284 = vmatpush1.msra.mxu0 0.0
      %5285 = vmatprep.subr.mxu0 0.0
      %5286 = vmatpush1.msra.mxu0 0.0
      %5287 = vmatprep.subr.mxu0 0.0
      %5288 = vmatpush1.msra.mxu0 0.0
      %5289 = vmatprep.subr.mxu0 0.0
      %5290 = vmatpush1.msra.mxu0 0.0
      %5291 = vmatprep.subr.mxu0 0.0
      %5292 = vmatpush1.msra.mxu0 0.0
      %5293 = vmatprep.subr.mxu0 0.0
      %5294 = vmatpush1.msra.mxu0 0.0
      %5295 = vmatprep.subr.mxu0 0.0
      %5296 = vmatpush1.msra.mxu0 0.0
      %5297 = vmatprep.subr.mxu0 0.0
      %5298 = vmatpush1.msra.mxu0 0.0
      %5299 = vmatprep.subr.mxu0 0.0
      %5300 = vmatpush1.msra.mxu0 0.0
      %5301 = vmatprep.subr.mxu0 0.0
      %5302 = vmatpush1.msra.mxu0 0.0
      %5303 = vmatprep.subr.mxu0 0.0
      %5304 = vmatpush1.msra.mxu0 0.0
      %5305 = vmatprep.subr.mxu0 0.0
      %5306 = vmatpush1.msra.mxu0 0.0
      %5307 = vmatprep.subr.mxu0 0.0
      %5308 = vmatpush1.msra.mxu0 0.0
      %5309 = vmatprep.subr.mxu0 0.0
      %5310 = vmatpush1.msra.mxu0 0.0
      %5311 = vmatprep.subr.mxu0 0.0
      %5312 = vmatpush1.msra.mxu0 0.0
      %5313 = vmatprep.mubr.f32.mxu0 0.0
      %5314 = vmatmul.mubr.f32.gmra.mrb[0].mxu0 %v5105
      %v5315 = vpop.f32.mrb[0].mxu0
      %v5316 = vadd.f32 %v5103, %v5315
      %v5317 = vpop.f32.mrb[0].mxu0
      %v5318 = vadd.f32 %v5103, %v5317
      %5319 = vdwg.mxu0
      %5320 = vmatprep.subr.mxu0 %v5074
      %5321 = vmatpush1.msra.mxu0 %v5073
      %5322 = vmatprep.subr.mxu0 %v5082
      %5323 = vmatpush1.msra.mxu0 %v5081
      %5324 = vmatprep.subr.mxu0 %v5090
      %5325 = vmatpush1.msra.mxu0 %v5089
      %5326 = vmatprep.subr.mxu0 %v5098
      %5327 = vmatpush1.msra.mxu0 %v5097
      %5328 = vmatprep.subr.mxu0 0.0
      %5329 = vmatpush1.msra.mxu0 0.0
      %5330 = vmatprep.subr.mxu0 0.0
      %5331 = vmatpush1.msra.mxu0 0.0
      %5332 = vmatprep.subr.mxu0 0.0
      %5333 = vmatpush1.msra.mxu0 0.0
      %5334 = vmatprep.subr.mxu0 0.0
      %5335 = vmatpush1.msra.mxu0 0.0
      %5336 = vmatprep.subr.mxu0 0.0
      %5337 = vmatpush1.msra.mxu0 0.0
      %5338 = vmatprep.subr.mxu0 0.0
      %5339 = vmatpush1.msra.mxu0 0.0
      %5340 = vmatprep.subr.mxu0 0.0
      %5341 = vmatpush1.msra.mxu0 0.0
      %5342 = vmatprep.subr.mxu0 0.0
      %5343 = vmatpush1.msra.mxu0 0.0
      %5344 = vmatprep.subr.mxu0 0.0
      %5345 = vmatpush1.msra.mxu0 0.0
      %5346 = vmatprep.subr.mxu0 0.0
      %5347 = vmatpush1.msra.mxu0 0.0
      %5348 = vmatprep.subr.mxu0 0.0
      %5349 = vmatpush1.msra.mxu0 0.0
      %5350 = vmatprep.subr.mxu0 0.0
      %5351 = vmatpush1.msra.mxu0 0.0
      %5352 = vmatprep.subr.mxu0 0.0
      %5353 = vmatpush1.msra.mxu0 0.0
      %5354 = vmatprep.subr.mxu0 0.0
      %5355 = vmatpush1.msra.mxu0 0.0
      %5356 = vmatprep.subr.mxu0 0.0
      %5357 = vmatpush1.msra.mxu0 0.0
      %5358 = vmatprep.subr.mxu0 0.0
      %5359 = vmatpush1.msra.mxu0 0.0
      %5360 = vmatprep.subr.mxu0 0.0
      %5361 = vmatpush1.msra.mxu0 0.0
      %5362 = vmatprep.subr.mxu0 0.0
      %5363 = vmatpush1.msra.mxu0 0.0
      %5364 = vmatprep.subr.mxu0 0.0
      %5365 = vmatpush1.msra.mxu0 0.0
      %5366 = vmatprep.subr.mxu0 0.0
      %5367 = vmatpush1.msra.mxu0 0.0
      %5368 = vmatprep.subr.mxu0 0.0
      %5369 = vmatpush1.msra.mxu0 0.0
      %5370 = vmatprep.subr.mxu0 0.0
      %5371 = vmatpush1.msra.mxu0 0.0
      %5372 = vmatprep.subr.mxu0 0.0
      %5373 = vmatpush1.msra.mxu0 0.0
      %5374 = vmatprep.subr.mxu0 0.0
      %5375 = vmatpush1.msra.mxu0 0.0
      %5376 = vmatprep.subr.mxu0 0.0
      %5377 = vmatpush1.msra.mxu0 0.0
      %5378 = vmatprep.subr.mxu0 0.0
      %5379 = vmatpush1.msra.mxu0 0.0
      %5380 = vmatprep.subr.mxu0 0.0
      %5381 = vmatpush1.msra.mxu0 0.0
      %5382 = vmatprep.subr.mxu0 0.0
      %5383 = vmatpush1.msra.mxu0 0.0
      %5384 = vmatprep.mubr.f32.mxu0 0.0
      %5385 = vmatmul.mubr.f32.gmra.mrb[0].mxu0 %v5105
      %v5386 = vpop.f32.mrb[0].mxu0
      %v5387 = vadd.f32 %v5103, %v5386
      %v5388 = vpop.f32.mrb[0].mxu0
      %v5389 = vadd.f32 %v5103, %v5388
      %5390 = vdwg.mxu0
      %v5391 = vxor.u32 %v5174, 2147483648
      %v5392 = vxor.u32 %v5176, 2147483648
      %v5393 = vxor.u32 %v5245, 2147483648
      %v5394 = vxor.u32 %v5247, 2147483648
      %v5395 = vxor.u32 %v5316, 2147483648
      %v5396 = vxor.u32 %v5318, 2147483648
      %v5397 = vxor.u32 %v5387, 2147483648
      %v5398 = vxor.u32 %v5389, 2147483648
      %v5399 = vmul.f32 %v5391, 1.442695
      %v5400 = vpow.pop %v5399
      %v5401 = vmul.f32 %v5392, 1.442695
      %v5402 = vpow.pop %v5401
      %v5403 = vmul.f32 %v5393, 1.442695
      %v5404 = vpow.pop %v5403
      %v5405 = vmul.f32 %v5394, 1.442695
      %v5406 = vpow.pop %v5405
      %v5407 = vmul.f32 %v5395, 1.442695
      %v5408 = vpow.pop %v5407
      %v5409 = vmul.f32 %v5396, 1.442695
      %v5410 = vpow.pop %v5409
      %v5411 = vmul.f32 %v5397, 1.442695
      %v5412 = vpow.pop %v5411
      %v5413 = vmul.f32 %v5398, 1.442695
      %v5414 = vpow.pop %v5413
      %v5415 = vadd.f32 %v5400, 1.0
      %v5416 = vadd.f32 %v5402, 1.0
      %v5417 = vadd.f32 %v5404, 1.0
      %v5418 = vadd.f32 %v5406, 1.0
      %v5419 = vadd.f32 %v5408, 1.0
      %v5420 = vadd.f32 %v5410, 1.0
      %v5421 = vadd.f32 %v5412, 1.0
      %v5422 = vadd.f32 %v5414, 1.0
      %v5423 = vrcp.pop %v5415
      %v5424 = vmul.f32 1.0, %v5423
      %v5425 = vrcp.pop %v5416
      %v5426 = vmul.f32 1.0, %v5425
      %v5427 = vrcp.pop %v5417
      %v5428 = vmul.f32 1.0, %v5427
      %v5429 = vrcp.pop %v5418
      %v5430 = vmul.f32 1.0, %v5429
      %v5431 = vrcp.pop %v5419
      %v5432 = vmul.f32 1.0, %v5431
      %v5433 = vrcp.pop %v5420
      %v5434 = vmul.f32 1.0, %v5433
      %v5435 = vrcp.pop %v5421
      %v5436 = vmul.f32 1.0, %v5435
      %v5437 = vrcp.pop %v5422
      %v5438 = vmul.f32 1.0, %v5437
      %5439 = vst [vmem:[%s145] sm:$0x7f] %v5424
      %5440 = vst [vmem:[%s145 + $0x8] sm:$0x7f] %v5426
      %5441 = vst [vmem:[%s145 + $0x10] sm:$0x7f] %v5428
      %5442 = vst [vmem:[%s145 + $0x18] sm:$0x7f] %v5430
      %5443 = vst [vmem:[%s145 + $0x20] sm:$0x7f] %v5432
      %5444 = vst [vmem:[%s145 + $0x28] sm:$0x7f] %v5434
      %5445 = vst [vmem:[%s145 + $0x30] sm:$0x7f] %v5436
      %5446 = vst [vmem:[%s145 + $0x38] sm:$0x7f] %v5438
      %s5447 = smul.u32 8, %s13
      %p5448 = scmp.lt.s32.totalorder %s5447, 15
      %s5449 = scalar_select %p5448, %s5447, 15
      %s5450 = smul.addr %s5449, 8
      %s5451 = scalar_lea.vmem %s2, %s5450
      // Predicated region
      $region29: #{fwd.1} parent=27 // pred_check
        %p5452 = pneg %p78
      $region30: #{fwd.1} parent=27 // pred_check_branch
        %5454 = sbr.rel (%p5452) target = $region32
      $region31: #{fwd.1} parent=27 // pred_region
        %s5455 = smul.u32 8, %s13
      $region32: #{fwd.1} parent=27 // pred_fallthru
        _
    $region28: #{fwd.1} parent=5 // pred_fallthru
      _
    %p5456 = scmp.le.s32.totalorder 2, %s8
    // Predicated region
    $region33: #{fwd.1} parent=5 // pred_check
      %p5457 = pneg %p5456
    $region34: #{fwd.1} parent=5 // pred_check_branch
      %5459 = sbr.rel (%p5457) target = $region36
    $region35: #{fwd.1} parent=5 // pred_region
      %s5460 = ssub.s32 %s8, 2
      // Predicated region
      $region37: #{fwd.1} parent=35 // pred_check
        %p5461 = pneg %p84
      $region38: #{fwd.1} parent=35 // pred_check_branch
        %5463 = sbr.rel (%p5461) target = $region40
      $region39: #{fwd.1} parent=35 // pred_region
        %s5464 = smul.u32 8, %s14
        %p5465 = scmp.lt.s32.totalorder %s5464, 15
        %s5466 = scalar_select %p5465, %s5464, 15
        %s5467 = smul.addr %s5466, 8
        %s5468 = scalar_lea.vmem %s2, %s5467
      $region40: #{fwd.1} parent=35 // pred_fallthru
        _
    $region36: #{fwd.1} parent=5 // pred_fallthru
      _
  $region6: #{fwd.1} parent=0 // loop_footer
    %s12 = sadd.s32 1, %s8
  $region7: #{fwd.1} parent=0 // loop_footer_branch
    %7 = sbr.rel target = $region3
  $region8: #{fwd.1} parent=0 // loop_exit
    _

</llo_original>
